<compile_context>
chip_gen: v6e
topology: v6e:2x2x1
jax: 0.10.0
libtpu: 0.0.40
codegen_flags: <defaults>
</compile_context>

<pallas_src>
import functools

import jax
import jax.numpy as jnp
import numpy as np
from jax.experimental import pallas as pl
from jax.experimental.pallas import tpu as pltpu


# ----------------------------------------------------------------------------
# Small in-kernel helpers (only definitely-lowerable ops: slices, adds, iota,
# select, lane/sublane reduces).
# ----------------------------------------------------------------------------
def _lane_block_sum(y):
    """(C, W) -> (C, 128) partial lane sums.

    Full 128-lane chunks are pure VPU vreg adds (no XLU).  A sub-128 remainder can
    only occur when the input fits in a single non-128-multiple tile, so its small
    cross-lane reduce runs at most once per batch row.
    """
    cdim, w = y.shape
    n_full = w // 128
    rem = w - n_full * 128
    if n_full:
        s = y[:, 0:128]
        for g in range(1, n_full):
            s = s + y[:, g * 128:(g + 1) * 128]
    else:
        s = jnp.zeros((cdim, 128), jnp.float32)
    if rem:
        tail = jnp.sum(y[:, n_full * 128:], axis=1, keepdims=True)      # (C, 1)
        lane = jax.lax.broadcasted_iota(jnp.int32, (cdim, 128), 1)
        s = s + jnp.where(lane == 0, tail, 0.0)                          # merge into lane 0
    return s


def _col_to_row(col):
    """(n, 1) -> (1, n) using only broadcast/select/reduce (avoids transpose lowering)."""
    n = col.shape[0]
    r = jax.lax.broadcasted_iota(jnp.int32, (n, n), 0)
    c = jax.lax.broadcasted_iota(jnp.int32, (n, n), 1)
    return jnp.sum(jnp.where(r == c, col, 0.0), axis=0, keepdims=True)


def _point_tile_map(k_tiles, grid_k):
    """Block-index map for a point cloud tiled along its last axis.

    If this input has fewer tiles than the shared k extent, clamp so trailing steps
    revisit the last block (no re-DMA; accumulation is gated off in the kernel).
    """
    if k_tiles == grid_k:
        return lambda b, k: (b, 0, k)
    last = k_tiles - 1
    return lambda b, k: (b, 0, jnp.minimum(k, last))


def _resident_spec(arr):
    """Whole-array block with a constant index map: DMA'd once, stays resident."""
    nd = arr.ndim
    return pl.BlockSpec(arr.shape, lambda *_: (0,) * nd)


# ----------------------------------------------------------------------------
# The fused forward kernel.
#   grid = (B, K):  b "parallel", k "arbitrary" (shared point-tile reduction axis).
#   Per k step: 1x1 conv (+bias, LeakyReLU) on one point tile of each cloud, partial
#   point-sums accumulated into lane-dense VMEM scratch.
#   At k == K-1: heads + last_emb for this batch row, single (1, 6*od) dense store.
# ----------------------------------------------------------------------------
def _fused_forward_kernel(
    inp_ref, bor_ref, pos_ref,
    wf_ref, bf_ref, wb_ref, bb_ref,
    wfg1t_ref, bfg1_ref, wfg2_ref, bfg2_ref,
    wp1_ref, bp1_ref, wp2_ref, bp2_ref,
    we1t_ref, be1_ref, we2_ref, be2_ref,
    wl1_ref, bl1_ref, wl2_ref, bl2_ref,
    o_ref,
    acc_fg, acc_env,
    *, inv_n, inv_b, n_full_f, tail_valid_f, n_full_b, tail_valid_b, grid_k):

    k = pl.program_id(1)

    def leaky(v):                                   # LeakyReLU(negative_slope=0.01)
        return jnp.where(v > 0.0, v, 0.01 * v)

    @pl.when(k == 0)
    def _init():
        acc_fg[...] = jnp.zeros_like(acc_fg)
        acc_env[...] = jnp.zeros_like(acc_env)

    def conv_partial(x, w_ref_, b_ref_, valid):
        """1x1 conv + LeakyReLU on one (Cin, W) point tile, pre-reduced to (Cout, 128)."""
        y = jnp.dot(w_ref_[...], x, preferred_element_type=jnp.float32) + b_ref_[...]
        y = leaky(y)
        if valid is not None:                       # ragged last tile only: mask OOB lanes
            lane = jax.lax.broadcasted_iota(jnp.int32, y.shape, 1)
            y = jnp.where(lane < valid, y, 0.0)
        return _lane_block_sum(y)

    def accumulate(acc_ref_, x_ref_, w_ref_, b_ref_, n_full, tail_valid):
        if n_full == grid_k:                        # input spans the whole k axis: no gating
            acc_ref_[...] += conv_partial(x_ref_[0], w_ref_, b_ref_, None)
        else:
            if n_full > 0:
                @pl.when(k < n_full)
                def _full():
                    acc_ref_[...] += conv_partial(x_ref_[0], w_ref_, b_ref_, None)
            if tail_valid:
                @pl.when(k == n_full)
                def _tail():
                    acc_ref_[...] += conv_partial(x_ref_[0], w_ref_, b_ref_, tail_valid)

    # Running point-sums of both RandLA stand-in convs (see module TODO).
    accumulate(acc_fg, inp_ref, wf_ref, bf_ref, n_full_f, tail_valid_f)     # 5  -> 640
    accumulate(acc_env, bor_ref, wb_ref, bb_ref, n_full_b, tail_valid_b)    # 8  -> 256

    # ---- heads + last_emb + output, once per batch row at its final reduction step ----
    @pl.when(k == grid_k - 1)
    def _heads():
        # FG / ENV head layer-1 in column form with the mean-pool folded into the matmul:
        #   W1^T @ mean_pool = lane_sum(W1^T @ acc) * (1/P)   (tiny (64,128) lane reduce).
        h_fg = jnp.dot(wfg1t_ref[...], acc_fg[...], preferred_element_type=jnp.float32)
        h_fg = leaky(jnp.sum(h_fg, axis=1, keepdims=True) * inv_n + bfg1_ref[...])      # (64,1)
        fg_emb = (jnp.dot(_col_to_row(h_fg), wfg2_ref[...],
                          preferred_element_type=jnp.float32) + bfg2_ref[...])          # (1,od)

        h_env = jnp.dot(we1t_ref[...], acc_env[...], preferred_element_type=jnp.float32)
        h_env = leaky(jnp.sum(h_env, axis=1, keepdims=True) * inv_b + be1_ref[...])     # (64,1)
        env_emb = (jnp.dot(_col_to_row(h_env), we2_ref[...],
                           preferred_element_type=jnp.float32) + be2_ref[...])          # (1,od)

        pos_row = pos_ref[0]                                                            # (1,64)
        h_pos = leaky(jnp.dot(pos_row, wp1_ref[...],
                              preferred_element_type=jnp.float32) + bp1_ref[...])       # (1,64)
        pos_emb = (jnp.dot(h_pos, wp2_ref[...],
                           preferred_element_type=jnp.float32) + bp2_ref[...])          # (1,od)

        # last_emb(concat([FG, POS, ENV])): single (1,192)@(192,256) matmul.
        cat = jnp.concatenate([fg_emb, pos_emb, env_emb], axis=1)                       # (1,3*od)
        h_last = leaky(jnp.dot(cat, wl1_ref[...],
                               preferred_element_type=jnp.float32) + bl1_ref[...])      # (1,256)
        last = (jnp.dot(h_last, wl2_ref[...],
                        preferred_element_type=jnp.float32) + bl2_ref[...])             # (1,3*od)

        # Single lane-dense store: [last_emb | FG | POS | ENV]  (6*od = 384 = 3x128).
        o_ref[0] = jnp.concatenate([last, cat], axis=1)


# ----------------------------------------------------------------------------
# Wrapper: builds the grid / BlockSpecs and invokes the fused kernel once.
#   inp: (B, 5, N)  borders: (B, 8, Pb)  spatialEmbs: (B, 64)  ->  (B, 6*output_dim)
# ----------------------------------------------------------------------------
def posenet_forward(kp, inp, borders, spatialEmbs, *, max_p_tile=2048):
    B, cin_f, n_pts = inp.shape
    _, cin_b, b_pts = borders.shape
    cout_f = kp["wf_t"].shape[0]            # 640
    cout_b = kp["wb_t"].shape[0]            # 256
    emb = spatialEmbs.shape[1]              # 64
    heads = kp["heads"]
    od = heads[2].shape[1]                  # output_dim (from wfg2)

    # Tile the point axis: full extent if it fits, else a 128-multiple cap.
    pt_f = n_pts if n_pts <= max_p_tile else max_p_tile
    pt_b = b_pts if b_pts <= max_p_tile else max_p_tile
    kf, kb = pl.cdiv(n_pts, pt_f), pl.cdiv(b_pts, pt_b)
    grid_k = max(kf, kb)
    n_full_f, tail_valid_f = n_pts // pt_f, n_pts % pt_f
    n_full_b, tail_valid_b = b_pts // pt_b, b_pts % pt_b

    kern = functools.partial(
        _fused_forward_kernel,
        inv_n=1.0 / n_pts, inv_b=1.0 / b_pts,
        n_full_f=n_full_f, tail_valid_f=tail_valid_f,
        n_full_b=n_full_b, tail_valid_b=tail_valid_b,
        grid_k=grid_k)

    in_specs = [
        pl.BlockSpec((1, cin_f, pt_f), _point_tile_map(kf, grid_k)),
        pl.BlockSpec((1, cin_b, pt_b), _point_tile_map(kb, grid_k)),
        pl.BlockSpec((1, 1, emb), lambda b, k: (b, 0, 0)),
        _resident_spec(kp["wf_t"]), _resident_spec(kp["bf_col"]),
        _resident_spec(kp["wb_t"]), _resident_spec(kp["bb_col"]),
    ] + [_resident_spec(w) for w in heads]

    out = pl.pallas_call(
        kern,
        out_shape=jax.ShapeDtypeStruct((B, 1, 6 * od), jnp.float32),
        grid=(B, grid_k),
        in_specs=in_specs,
        out_specs=pl.BlockSpec((1, 1, 6 * od), lambda b, k: (b, 0, 0)),
        scratch_shapes=[pltpu.VMEM((cout_f, 128), jnp.float32),
                        pltpu.VMEM((cout_b, 128), jnp.float32)],
        compiler_params=pltpu.CompilerParams(
            dimension_semantics=("parallel", "arbitrary")),
    )(inp, borders, spatialEmbs.reshape(B, 1, emb),
      kp["wf_t"], kp["bf_col"], kp["wb_t"], kp["bb_col"], *heads)
    return out.reshape(B, 6 * od)


# ----------------------------------------------------------------------------
# One-time transform of module-layout params into kernel layout.
# Folds the forward's torch.cat channel reorder + injected all-zero channel into the
# conv weights (the zero channel's weight row is dropped), so the point clouds are
# consumed in native NCL layout with no HBM concat / transpose pass.
#   fg_inp channels  = [inp3, inp4, 0, inp0, inp1, inp2]
#   env_inp channels = [b3,   b4,   0, b0,   b1,   b2,  b5, b6, b7]
# FG/ENV head layer-1 weights are pre-transposed (column-form use in the kernel).
# ----------------------------------------------------------------------------
def prepare_kernel_params(p):
    wf_eff = p["Wf"][jnp.array([3, 4, 5, 0, 1]), :]            # (5, 640)
    wb_eff = p["Wb"][jnp.array([3, 4, 5, 0, 1, 6, 7, 8]), :]   # (8, 256)
    wfg1, bfg1, wfg2, bfg2 = p["fg"]
    wp1, bp1, wp2, bp2 = p["pos"]
    we1, be1, we2, be2 = p["env"]
    wl1, bl1, wl2, bl2 = p["last"]
    heads = (wfg1.T, bfg1.T, wfg2, bfg2,       # FG head  (layer-1 transposed)
             wp1, bp1, wp2, bp2,               # POS head (row form)
             we1.T, be1.T, we2, be2,           # ENV head (layer-1 transposed)
             wl1, bl1, wl2, bl2)               # last_emb (row form)
    return {
        "wf_t": wf_eff.T,          # (640, 5)
        "bf_col": p["bf"].T,       # (640, 1)
        "wb_t": wb_eff.T,          # (256, 8)
        "bb_col": p["bb"].T,       # (256, 1)
        "heads": heads,
    }


# ----------------------------------------------------------------------------
# Deterministic parameter init (original module-layout shapes).
# ----------------------------------------------------------------------------
def init_params(key, output_dim=64):
    def nrm(k, shape, scale=0.05):
        return scale * jax.random.normal(k, shape, dtype=jnp.float32)

    ks = list(jax.random.split(key, 20))
    p = {}
    p["Wb"] = nrm(ks[0], (9, 256))      # borderConv stand-in: 9 -> 256
    p["bb"] = nrm(ks[1], (1, 256))
    p["Wf"] = nrm(ks[2], (6, 640))      # FGConv stand-in: 6 -> 640
    p["bf"] = nrm(ks[3], (1, 640))
    p["fg"] = (nrm(ks[4], (640, 64)), nrm(ks[5], (1, 64)),
               nrm(ks[6], (64, output_dim)), nrm(ks[7], (1, output_dim)))
    p["pos"] = (nrm(ks[8], (64, 64)), nrm(ks[9], (1, 64)),
                nrm(ks[10], (64, output_dim)), nrm(ks[11], (1, output_dim)))
    p["env"] = (nrm(ks[12], (256, 64)), nrm(ks[13], (1, 64)),
                nrm(ks[14], (64, output_dim)), nrm(ks[15], (1, output_dim)))
    p["last"] = (nrm(ks[16], (3 * output_dim, 256)), nrm(ks[17], (1, 256)),
                 nrm(ks[18], (256, 3 * output_dim)), nrm(ks[19], (1, 3 * output_dim)))
    return p


# ----------------------------------------------------------------------------
# Pure-JAX reference following the ORIGINAL data path (explicit concat with the zero
# channel, un-folded weights) to validate the weight fold + fused kernel numerically.
# ----------------------------------------------------------------------------
def reference_forward(p, inp, borders, spatialEmbs):
    hi = jax.lax.Precision.HIGHEST

    def leaky(x):
        return jnp.where(x > 0, x, 0.01 * x)

    z_i = jnp.zeros_like(inp[:, :1])
    fg_inp = jnp.concatenate([inp[:, -2:], z_i, inp[:, :-2]], axis=1)                 # (B,6,N)
    z_b = jnp.zeros_like(borders[:, :1])
    env_inp = jnp.concatenate([borders[:, 3:5], z_b, borders[:, :3], borders[:, 5:]],
                              axis=1)                                                 # (B,9,Pb)

    def conv_pool(x, W, b):
        y = jnp.einsum('bcp,co->bop', x, W, precision=hi) + b[:, :, None]
        return jnp.mean(leaky(y), axis=-1)

    fg_features = conv_pool(fg_inp, p["Wf"], p["bf"])      # (B, 640)
    env_features = conv_pool(env_inp, p["Wb"], p["bb"])    # (B, 256)

    def mlp(x, w1, b1, w2, b2):
        return jnp.dot(leaky(jnp.dot(x, w1, precision=hi) + b1), w2, precision=hi) + b2

    FG = mlp(fg_features, *p["fg"])
    POS = mlp(spatialEmbs, *p["pos"])
    ENV = mlp(env_features, *p["env"])
    cat = jnp.concatenate([FG, POS, ENV], axis=1)
    return jnp.concatenate([mlp(cat, *p["last"]), FG, POS, ENV], axis=1)


if __name__ == "__main__":
    B = 2
    num_points = 64       # N  (small test size; module default 1000 also works)
    border_points = 32    # Pb (small test size; module default 500 also works)
    output_dim = 64

    key = jax.random.PRNGKey(0)
    k_par, k_inp, k_bor, k_pos, k_inp2, k_bor2 = jax.random.split(key, 6)

    params = init_params(k_par, output_dim=output_dim)
    kparams = prepare_kernel_params(params)          # one-time weight fold

    inp = jax.random.normal(k_inp, (B, 5, num_points), dtype=jnp.float32)
    borders = jax.random.normal(k_bor, (B, 8, border_points), dtype=jnp.float32)
    spatialEmbs = jax.random.normal(k_pos, (B, 64), dtype=jnp.float32)

    fwd = jax.jit(posenet_forward)
    out = jax.block_until_ready(fwd(kparams, inp, borders, spatialEmbs))
    assert out.shape == (B, 6 * output_dim), out.shape
    assert out.dtype == jnp.float32
    ref = reference_forward(params, inp, borders, spatialEmbs)
    np.testing.assert_allclose(np.asarray(out), np.asarray(ref), rtol=2e-2, atol=2e-3)

    # Second config: exercises multi-tile reduction, ragged-tail masking and the
    # clamped index map (borders finish their tiles before the fg cloud does).
    inp2 = jax.random.normal(k_inp2, (B, 5, 300), dtype=jnp.float32)
    borders2 = jax.random.normal(k_bor2, (B, 8, 160), dtype=jnp.float32)
    fwd_tiled = jax.jit(functools.partial(posenet_forward, max_p_tile=128))
    out2 = jax.block_until_ready(fwd_tiled(kparams, inp2, borders2, spatialEmbs))
    ref2 = reference_forward(params, inp2, borders2, spatialEmbs)
    np.testing.assert_allclose(np.asarray(out2), np.asarray(ref2), rtol=2e-2, atol=2e-3)

    print("KERNEL_OK")
</pallas_src>

<mosaic_0001>
module attributes {stable_mosaic.version = 11 : i64} {
  func.func @_fused_forward_kernel(%arg0: i32, %arg1: i32, %arg2: memref<1x5x64xf32, #tpu.memory_space<vmem>>, %arg3: memref<1x8x32xf32, #tpu.memory_space<vmem>>, %arg4: memref<1x1x64xf32, #tpu.memory_space<vmem>>, %arg5: memref<640x5xf32, #tpu.memory_space<vmem>>, %arg6: memref<640x1xf32, #tpu.memory_space<vmem>>, %arg7: memref<256x8xf32, #tpu.memory_space<vmem>>, %arg8: memref<256x1xf32, #tpu.memory_space<vmem>>, %arg9: memref<64x640xf32, #tpu.memory_space<vmem>>, %arg10: memref<64x1xf32, #tpu.memory_space<vmem>>, %arg11: memref<64x64xf32, #tpu.memory_space<vmem>>, %arg12: memref<1x64xf32, #tpu.memory_space<vmem>>, %arg13: memref<64x64xf32, #tpu.memory_space<vmem>>, %arg14: memref<1x64xf32, #tpu.memory_space<vmem>>, %arg15: memref<64x64xf32, #tpu.memory_space<vmem>>, %arg16: memref<1x64xf32, #tpu.memory_space<vmem>>, %arg17: memref<64x256xf32, #tpu.memory_space<vmem>>, %arg18: memref<64x1xf32, #tpu.memory_space<vmem>>, %arg19: memref<64x64xf32, #tpu.memory_space<vmem>>, %arg20: memref<1x64xf32, #tpu.memory_space<vmem>>, %arg21: memref<192x256xf32, #tpu.memory_space<vmem>>, %arg22: memref<1x256xf32, #tpu.memory_space<vmem>>, %arg23: memref<256x192xf32, #tpu.memory_space<vmem>>, %arg24: memref<1x192xf32, #tpu.memory_space<vmem>>, %arg25: memref<1x1x384xf32, #tpu.memory_space<vmem>>, %arg26: memref<640x128xf32, #tpu.memory_space<vmem>>, %arg27: memref<256x128xf32, #tpu.memory_space<vmem>>) attributes {dimension_semantics = [#tpu.dimension_semantics<parallel>, #tpu.dimension_semantics<arbitrary>], iteration_bounds = array<i64: 2, 1>, scalar_prefetch = 0 : i64, scratch_operands = 2 : i64, tpu.core_type = #tpu.core_type<tc>, window_params = [{transform_indices = @transform_0, window_bounds = array<i64: 1, 5, 64>}, {transform_indices = @transform_1, window_bounds = array<i64: 1, 8, 32>}, {transform_indices = @transform_2, window_bounds = array<i64: 1, 1, 64>}, {pipeline_mode = #tpu.pipeline_mode<synchronous>, transform_indices = @transform_3, window_bounds = array<i64: 640, 5>}, {pipeline_mode = #tpu.pipeline_mode<synchronous>, transform_indices = @transform_4, window_bounds = array<i64: 640, 1>}, {pipeline_mode = #tpu.pipeline_mode<synchronous>, transform_indices = @transform_5, window_bounds = array<i64: 256, 8>}, {pipeline_mode = #tpu.pipeline_mode<synchronous>, transform_indices = @transform_6, window_bounds = array<i64: 256, 1>}, {pipeline_mode = #tpu.pipeline_mode<synchronous>, transform_indices = @transform_7, window_bounds = array<i64: 64, 640>}, {pipeline_mode = #tpu.pipeline_mode<synchronous>, transform_indices = @transform_8, window_bounds = array<i64: 64, 1>}, {pipeline_mode = #tpu.pipeline_mode<synchronous>, transform_indices = @transform_9, window_bounds = array<i64: 64, 64>}, {pipeline_mode = #tpu.pipeline_mode<synchronous>, transform_indices = @transform_10, window_bounds = array<i64: 1, 64>}, {pipeline_mode = #tpu.pipeline_mode<synchronous>, transform_indices = @transform_11, window_bounds = array<i64: 64, 64>}, {pipeline_mode = #tpu.pipeline_mode<synchronous>, transform_indices = @transform_12, window_bounds = array<i64: 1, 64>}, {pipeline_mode = #tpu.pipeline_mode<synchronous>, transform_indices = @transform_13, window_bounds = array<i64: 64, 64>}, {pipeline_mode = #tpu.pipeline_mode<synchronous>, transform_indices = @transform_14, window_bounds = array<i64: 1, 64>}, {pipeline_mode = #tpu.pipeline_mode<synchronous>, transform_indices = @transform_15, window_bounds = array<i64: 64, 256>}, {pipeline_mode = #tpu.pipeline_mode<synchronous>, transform_indices = @transform_16, window_bounds = array<i64: 64, 1>}, {pipeline_mode = #tpu.pipeline_mode<synchronous>, transform_indices = @transform_17, window_bounds = array<i64: 64, 64>}, {pipeline_mode = #tpu.pipeline_mode<synchronous>, transform_indices = @transform_18, window_bounds = array<i64: 1, 64>}, {pipeline_mode = #tpu.pipeline_mode<synchronous>, transform_indices = @transform_19, window_bounds = array<i64: 192, 256>}, {pipeline_mode = #tpu.pipeline_mode<synchronous>, transform_indices = @transform_20, window_bounds = array<i64: 1, 256>}, {pipeline_mode = #tpu.pipeline_mode<synchronous>, transform_indices = @transform_21, window_bounds = array<i64: 256, 192>}, {pipeline_mode = #tpu.pipeline_mode<synchronous>, transform_indices = @transform_22, window_bounds = array<i64: 1, 192>}, {transform_indices = @transform_23, window_bounds = array<i64: 1, 1, 384>}]} {
    %c0_i32 = arith.constant 0 : i32
    %0 = arith.cmpi eq, %arg1, %c0_i32 : i32
    %1 = arith.extui %0 : i1 to i32
    %c0_i32_0 = arith.constant 0 : i32
    %2 = arith.cmpi ne, %1, %c0_i32_0 : i32
    scf.if %2 {
      %cst_37 = arith.constant 0.000000e+00 : f32
      %58 = vector.broadcast %cst_37 : f32 to vector<640x128xf32>
      %c0_38 = arith.constant 0 : index
      %c0_39 = arith.constant 0 : index
      %59 = vector.load %arg26[%c0_38, %c0_39] : memref<640x128xf32, #tpu.memory_space<vmem>>, vector<640x128xf32>
      tpu.vector_store %arg26[%c0_38, %c0_39], %58 {strides = array<i32>} : memref<640x128xf32, #tpu.memory_space<vmem>>, vector<640x128xf32>,
      %cst_40 = arith.constant 0.000000e+00 : f32
      %60 = vector.broadcast %cst_40 : f32 to vector<256x128xf32>
      %c0_41 = arith.constant 0 : index
      %c0_42 = arith.constant 0 : index
      %61 = vector.load %arg27[%c0_41, %c0_42] : memref<256x128xf32, #tpu.memory_space<vmem>>, vector<256x128xf32>
      tpu.vector_store %arg27[%c0_41, %c0_42], %60 {strides = array<i32>} : memref<256x128xf32, #tpu.memory_space<vmem>>, vector<256x128xf32>,
    } else {
    }
    %c0 = arith.constant 0 : index
    %c0_1 = arith.constant 0 : index
    %3 = vector.load %arg26[%c0, %c0_1] : memref<640x128xf32, #tpu.memory_space<vmem>>, vector<640x128xf32>
    %c0_2 = arith.constant 0 : index
    %c0_3 = arith.constant 0 : index
    %c0_4 = arith.constant 0 : index
    %4 = vector.load %arg2[%c0_2, %c0_3, %c0_4] : memref<1x5x64xf32, #tpu.memory_space<vmem>>, vector<1x5x64xf32>
    %5 = vector.shape_cast %4 : vector<1x5x64xf32> to vector<5x64xf32>
    %c0_5 = arith.constant 0 : index
    %c0_6 = arith.constant 0 : index
    %6 = vector.load %arg5[%c0_5, %c0_6] : memref<640x5xf32, #tpu.memory_space<vmem>>, vector<640x5xf32>
    %cst = arith.constant dense<0.000000e+00> : vector<640x64xf32>
    %7 = tpu.matmul %6, %5, %cst {dimension_numbers = #tpu.dot_dimension_numbers<[1], [0], [0], [1], [0, 0, 1, 1], [], []>} : vector<640x5xf32>, vector<5x64xf32>, vector<640x64xf32> -> vector<640x64xf32>
    %c0_7 = arith.constant 0 : index
    %c0_8 = arith.constant 0 : index
    %8 = vector.load %arg6[%c0_7, %c0_8] : memref<640x1xf32, #tpu.memory_space<vmem>>, vector<640x1xf32>
    %9 = vector.broadcast %8 : vector<640x1xf32> to vector<640x64xf32>
    %10 = arith.addf %7, %9 : vector<640x64xf32>
    %cst_9 = arith.constant 0.000000e+00 : f32
    %11 = vector.broadcast %cst_9 : f32 to vector<640x64xf32>
    %12 = arith.cmpf ogt, %10, %11 : vector<640x64xf32>
    %cst_10 = arith.constant 0.00999999977 : f32
    %13 = vector.broadcast %cst_10 : f32 to vector<640x64xf32>
    %14 = arith.mulf %13, %10 : vector<640x64xf32>
    %15 = arith.select %12, %10, %14 : vector<640x64xi1>, vector<640x64xf32>
    %cst_11 = arith.constant 0.000000e+00 : f32
    %16 = vector.broadcast %cst_11 : f32 to vector<640x128xf32>
    %cst_12 = arith.constant dense<0.000000e+00> : vector<640xf32>
    %17 = vector.multi_reduction <add>, %15, %cst_12 [1] : vector<640x64xf32> to vector<640xf32>
    %18 = vector.shape_cast %17 : vector<640xf32> to vector<640x1xf32>
    %19 = tpu.iota {dimensions = array<i32: 1>} : vector<640x128xi32>
    %c0_i32_13 = arith.constant 0 : i32
    %20 = vector.broadcast %c0_i32_13 : i32 to vector<640x128xi32>
    %21 = arith.cmpi eq, %19, %20 : vector<640x128xi32>
    %cst_14 = arith.constant 0.000000e+00 : f32
    %22 = vector.shape_cast %18 : vector<640x1xf32> to vector<640x1xf32>
    %23 = vector.broadcast %22 : vector<640x1xf32> to vector<640x128xf32>
    %24 = vector.broadcast %cst_14 : f32 to vector<640x128xf32>
    %25 = arith.select %21, %23, %24 : vector<640x128xi1>, vector<640x128xf32>
    %26 = arith.addf %16, %25 : vector<640x128xf32>
    %27 = arith.addf %3, %26 : vector<640x128xf32>
    %c0_15 = arith.constant 0 : index
    %c0_16 = arith.constant 0 : index
    %28 = vector.load %arg26[%c0_15, %c0_16] : memref<640x128xf32, #tpu.memory_space<vmem>>, vector<640x128xf32>
    tpu.vector_store %arg26[%c0_15, %c0_16], %27 {strides = array<i32>} : memref<640x128xf32, #tpu.memory_space<vmem>>, vector<640x128xf32>,
    %c0_17 = arith.constant 0 : index
    %c0_18 = arith.constant 0 : index
    %29 = vector.load %arg27[%c0_17, %c0_18] : memref<256x128xf32, #tpu.memory_space<vmem>>, vector<256x128xf32>
    %c0_19 = arith.constant 0 : index
    %c0_20 = arith.constant 0 : index
    %c0_21 = arith.constant 0 : index
    %30 = vector.load %arg3[%c0_19, %c0_20, %c0_21] : memref<1x8x32xf32, #tpu.memory_space<vmem>>, vector<1x8x32xf32>
    %31 = vector.shape_cast %30 : vector<1x8x32xf32> to vector<8x32xf32>
    %c0_22 = arith.constant 0 : index
    %c0_23 = arith.constant 0 : index
    %32 = vector.load %arg7[%c0_22, %c0_23] : memref<256x8xf32, #tpu.memory_space<vmem>>, vector<256x8xf32>
    %cst_24 = arith.constant dense<0.000000e+00> : vector<256x32xf32>
    %33 = tpu.matmul %32, %31, %cst_24 {dimension_numbers = #tpu.dot_dimension_numbers<[1], [0], [0], [1], [0, 0, 1, 1], [], []>} : vector<256x8xf32>, vector<8x32xf32>, vector<256x32xf32> -> vector<256x32xf32>
    %c0_25 = arith.constant 0 : index
    %c0_26 = arith.constant 0 : index
    %34 = vector.load %arg8[%c0_25, %c0_26] : memref<256x1xf32, #tpu.memory_space<vmem>>, vector<256x1xf32>
    %35 = vector.broadcast %34 : vector<256x1xf32> to vector<256x32xf32>
    %36 = arith.addf %33, %35 : vector<256x32xf32>
    %cst_27 = arith.constant 0.000000e+00 : f32
    %37 = vector.broadcast %cst_27 : f32 to vector<256x32xf32>
    %38 = arith.cmpf ogt, %36, %37 : vector<256x32xf32>
    %cst_28 = arith.constant 0.00999999977 : f32
    %39 = vector.broadcast %cst_28 : f32 to vector<256x32xf32>
    %40 = arith.mulf %39, %36 : vector<256x32xf32>
    %41 = arith.select %38, %36, %40 : vector<256x32xi1>, vector<256x32xf32>
    %cst_29 = arith.constant 0.000000e+00 : f32
    %42 = vector.broadcast %cst_29 : f32 to vector<256x128xf32>
    %cst_30 = arith.constant dense<0.000000e+00> : vector<256xf32>
    %43 = vector.multi_reduction <add>, %41, %cst_30 [1] : vector<256x32xf32> to vector<256xf32>
    %44 = vector.shape_cast %43 : vector<256xf32> to vector<256x1xf32>
    %45 = tpu.iota {dimensions = array<i32: 1>} : vector<256x128xi32>
    %c0_i32_31 = arith.constant 0 : i32
    %46 = vector.broadcast %c0_i32_31 : i32 to vector<256x128xi32>
    %47 = arith.cmpi eq, %45, %46 : vector<256x128xi32>
    %cst_32 = arith.constant 0.000000e+00 : f32
    %48 = vector.shape_cast %44 : vector<256x1xf32> to vector<256x1xf32>
    %49 = vector.broadcast %48 : vector<256x1xf32> to vector<256x128xf32>
    %50 = vector.broadcast %cst_32 : f32 to vector<256x128xf32>
    %51 = arith.select %47, %49, %50 : vector<256x128xi1>, vector<256x128xf32>
    %52 = arith.addf %42, %51 : vector<256x128xf32>
    %53 = arith.addf %29, %52 : vector<256x128xf32>
    %c0_33 = arith.constant 0 : index
    %c0_34 = arith.constant 0 : index
    %54 = vector.load %arg27[%c0_33, %c0_34] : memref<256x128xf32, #tpu.memory_space<vmem>>, vector<256x128xf32>
    tpu.vector_store %arg27[%c0_33, %c0_34], %53 {strides = array<i32>} : memref<256x128xf32, #tpu.memory_space<vmem>>, vector<256x128xf32>,
    %c0_i32_35 = arith.constant 0 : i32
    %55 = arith.cmpi eq, %arg1, %c0_i32_35 : i32
    %56 = arith.extui %55 : i1 to i32
    %c0_i32_36 = arith.constant 0 : i32
    %57 = arith.cmpi ne, %56, %c0_i32_36 : i32
    scf.if %57 {
      %c0_37 = arith.constant 0 : index
      %c0_38 = arith.constant 0 : index
      %58 = vector.load %arg9[%c0_37, %c0_38] : memref<64x640xf32, #tpu.memory_space<vmem>>, vector<64x640xf32>
      %c0_39 = arith.constant 0 : index
      %c0_40 = arith.constant 0 : index
      %59 = vector.load %arg26[%c0_39, %c0_40] : memref<640x128xf32, #tpu.memory_space<vmem>>, vector<640x128xf32>
      %cst_41 = arith.constant dense<0.000000e+00> : vector<64x128xf32>
      %60 = tpu.matmul %58, %59, %cst_41 {dimension_numbers = #tpu.dot_dimension_numbers<[1], [0], [0], [1], [0, 0, 1, 1], [], []>} : vector<64x640xf32>, vector<640x128xf32>, vector<64x128xf32> -> vector<64x128xf32>
      %cst_42 = arith.constant dense<0.000000e+00> : vector<64xf32>
      %61 = vector.multi_reduction <add>, %60, %cst_42 [1] : vector<64x128xf32> to vector<64xf32>
      %62 = vector.shape_cast %61 : vector<64xf32> to vector<64x1xf32>
      %cst_43 = arith.constant 1.562500e-02 : f32
      %63 = vector.broadcast %cst_43 : f32 to vector<64x1xf32>
      %64 = arith.mulf %62, %63 : vector<64x1xf32>
      %c0_44 = arith.constant 0 : index
      %c0_45 = arith.constant 0 : index
      %65 = vector.load %arg10[%c0_44, %c0_45] : memref<64x1xf32, #tpu.memory_space<vmem>>, vector<64x1xf32>
      %66 = arith.addf %64, %65 : vector<64x1xf32>
      %cst_46 = arith.constant 0.000000e+00 : f32
      %67 = vector.broadcast %cst_46 : f32 to vector<64x1xf32>
      %68 = arith.cmpf ogt, %66, %67 : vector<64x1xf32>
      %cst_47 = arith.constant 0.00999999977 : f32
      %69 = vector.broadcast %cst_47 : f32 to vector<64x1xf32>
      %70 = arith.mulf %69, %66 : vector<64x1xf32>
      %71 = arith.select %68, %66, %70 : vector<64x1xi1>, vector<64x1xf32>
      %72 = tpu.iota {dimensions = array<i32: 0>} : vector<64x64xi32>
      %73 = tpu.iota {dimensions = array<i32: 1>} : vector<64x64xi32>
      %74 = arith.cmpi eq, %72, %73 : vector<64x64xi32>
      %cst_48 = arith.constant 0.000000e+00 : f32
      %75 = vector.shape_cast %71 : vector<64x1xf32> to vector<64x1xf32>
      %76 = vector.broadcast %75 : vector<64x1xf32> to vector<64x64xf32>
      %77 = vector.broadcast %cst_48 : f32 to vector<64x64xf32>
      %78 = arith.select %74, %76, %77 : vector<64x64xi1>, vector<64x64xf32>
      %cst_49 = arith.constant dense<0.000000e+00> : vector<64xf32>
      %79 = vector.multi_reduction <add>, %78, %cst_49 [0] : vector<64x64xf32> to vector<64xf32>
      %80 = vector.shape_cast %79 : vector<64xf32> to vector<1x64xf32>
      %c0_50 = arith.constant 0 : index
      %c0_51 = arith.constant 0 : index
      %81 = vector.load %arg11[%c0_50, %c0_51] : memref<64x64xf32, #tpu.memory_space<vmem>>, vector<64x64xf32>
      %cst_52 = arith.constant dense<0.000000e+00> : vector<1x64xf32>
      %82 = tpu.matmul %80, %81, %cst_52 {dimension_numbers = #tpu.dot_dimension_numbers<[1], [0], [0], [1], [0, 0, 1, 1], [], []>} : vector<1x64xf32>, vector<64x64xf32>, vector<1x64xf32> -> vector<1x64xf32>
      %c0_53 = arith.constant 0 : index
      %c0_54 = arith.constant 0 : index
      %83 = vector.load %arg12[%c0_53, %c0_54] : memref<1x64xf32, #tpu.memory_space<vmem>>, vector<1x64xf32>
      %84 = arith.addf %82, %83 : vector<1x64xf32>
      %c0_55 = arith.constant 0 : index
      %c0_56 = arith.constant 0 : index
      %85 = vector.load %arg17[%c0_55, %c0_56] : memref<64x256xf32, #tpu.memory_space<vmem>>, vector<64x256xf32>
      %c0_57 = arith.constant 0 : index
      %c0_58 = arith.constant 0 : index
      %86 = vector.load %arg27[%c0_57, %c0_58] : memref<256x128xf32, #tpu.memory_space<vmem>>, vector<256x128xf32>
      %cst_59 = arith.constant dense<0.000000e+00> : vector<64x128xf32>
      %87 = tpu.matmul %85, %86, %cst_59 {dimension_numbers = #tpu.dot_dimension_numbers<[1], [0], [0], [1], [0, 0, 1, 1], [], []>} : vector<64x256xf32>, vector<256x128xf32>, vector<64x128xf32> -> vector<64x128xf32>
      %cst_60 = arith.constant dense<0.000000e+00> : vector<64xf32>
      %88 = vector.multi_reduction <add>, %87, %cst_60 [1] : vector<64x128xf32> to vector<64xf32>
      %89 = vector.shape_cast %88 : vector<64xf32> to vector<64x1xf32>
      %cst_61 = arith.constant 3.125000e-02 : f32
      %90 = vector.broadcast %cst_61 : f32 to vector<64x1xf32>
      %91 = arith.mulf %89, %90 : vector<64x1xf32>
      %c0_62 = arith.constant 0 : index
      %c0_63 = arith.constant 0 : index
      %92 = vector.load %arg18[%c0_62, %c0_63] : memref<64x1xf32, #tpu.memory_space<vmem>>, vector<64x1xf32>
      %93 = arith.addf %91, %92 : vector<64x1xf32>
      %cst_64 = arith.constant 0.000000e+00 : f32
      %94 = vector.broadcast %cst_64 : f32 to vector<64x1xf32>
      %95 = arith.cmpf ogt, %93, %94 : vector<64x1xf32>
      %cst_65 = arith.constant 0.00999999977 : f32
      %96 = vector.broadcast %cst_65 : f32 to vector<64x1xf32>
      %97 = arith.mulf %96, %93 : vector<64x1xf32>
      %98 = arith.select %95, %93, %97 : vector<64x1xi1>, vector<64x1xf32>
      %99 = tpu.iota {dimensions = array<i32: 0>} : vector<64x64xi32>
      %100 = tpu.iota {dimensions = array<i32: 1>} : vector<64x64xi32>
      %101 = arith.cmpi eq, %99, %100 : vector<64x64xi32>
      %cst_66 = arith.constant 0.000000e+00 : f32
      %102 = vector.shape_cast %98 : vector<64x1xf32> to vector<64x1xf32>
      %103 = vector.broadcast %102 : vector<64x1xf32> to vector<64x64xf32>
      %104 = vector.broadcast %cst_66 : f32 to vector<64x64xf32>
      %105 = arith.select %101, %103, %104 : vector<64x64xi1>, vector<64x64xf32>
      %cst_67 = arith.constant dense<0.000000e+00> : vector<64xf32>
      %106 = vector.multi_reduction <add>, %105, %cst_67 [0] : vector<64x64xf32> to vector<64xf32>
      %107 = vector.shape_cast %106 : vector<64xf32> to vector<1x64xf32>
      %c0_68 = arith.constant 0 : index
      %c0_69 = arith.constant 0 : index
      %108 = vector.load %arg19[%c0_68, %c0_69] : memref<64x64xf32, #tpu.memory_space<vmem>>, vector<64x64xf32>
      %cst_70 = arith.constant dense<0.000000e+00> : vector<1x64xf32>
      %109 = tpu.matmul %107, %108, %cst_70 {dimension_numbers = #tpu.dot_dimension_numbers<[1], [0], [0], [1], [0, 0, 1, 1], [], []>} : vector<1x64xf32>, vector<64x64xf32>, vector<1x64xf32> -> vector<1x64xf32>
      %c0_71 = arith.constant 0 : index
      %c0_72 = arith.constant 0 : index
      %110 = vector.load %arg20[%c0_71, %c0_72] : memref<1x64xf32, #tpu.memory_space<vmem>>, vector<1x64xf32>
      %111 = arith.addf %109, %110 : vector<1x64xf32>
      %c0_73 = arith.constant 0 : index
      %c0_74 = arith.constant 0 : index
      %c0_75 = arith.constant 0 : index
      %112 = vector.load %arg4[%c0_73, %c0_74, %c0_75] : memref<1x1x64xf32, #tpu.memory_space<vmem>>, vector<1x1x64xf32>
      %113 = vector.shape_cast %112 : vector<1x1x64xf32> to vector<1x64xf32>
      %c0_76 = arith.constant 0 : index
      %c0_77 = arith.constant 0 : index
      %114 = vector.load %arg13[%c0_76, %c0_77] : memref<64x64xf32, #tpu.memory_space<vmem>>, vector<64x64xf32>
      %cst_78 = arith.constant dense<0.000000e+00> : vector<1x64xf32>
      %115 = tpu.matmul %113, %114, %cst_78 {dimension_numbers = #tpu.dot_dimension_numbers<[1], [0], [0], [1], [0, 0, 1, 1], [], []>} : vector<1x64xf32>, vector<64x64xf32>, vector<1x64xf32> -> vector<1x64xf32>
      %c0_79 = arith.constant 0 : index
      %c0_80 = arith.constant 0 : index
      %116 = vector.load %arg14[%c0_79, %c0_80] : memref<1x64xf32, #tpu.memory_space<vmem>>, vector<1x64xf32>
      %117 = arith.addf %115, %116 : vector<1x64xf32>
      %cst_81 = arith.constant 0.000000e+00 : f32
      %118 = vector.broadcast %cst_81 : f32 to vector<1x64xf32>
      %119 = arith.cmpf ogt, %117, %118 : vector<1x64xf32>
      %cst_82 = arith.constant 0.00999999977 : f32
      %120 = vector.broadcast %cst_82 : f32 to vector<1x64xf32>
      %121 = arith.mulf %120, %117 : vector<1x64xf32>
      %122 = arith.select %119, %117, %121 : vector<1x64xi1>, vector<1x64xf32>
      %c0_83 = arith.constant 0 : index
      %c0_84 = arith.constant 0 : index
      %123 = vector.load %arg15[%c0_83, %c0_84] : memref<64x64xf32, #tpu.memory_space<vmem>>, vector<64x64xf32>
      %cst_85 = arith.constant dense<0.000000e+00> : vector<1x64xf32>
      %124 = tpu.matmul %122, %123, %cst_85 {dimension_numbers = #tpu.dot_dimension_numbers<[1], [0], [0], [1], [0, 0, 1, 1], [], []>} : vector<1x64xf32>, vector<64x64xf32>, vector<1x64xf32> -> vector<1x64xf32>
      %c0_86 = arith.constant 0 : index
      %c0_87 = arith.constant 0 : index
      %125 = vector.load %arg16[%c0_86, %c0_87] : memref<1x64xf32, #tpu.memory_space<vmem>>, vector<1x64xf32>
      %126 = arith.addf %124, %125 : vector<1x64xf32>
      %127 = tpu.concatenate %84, %126, %111 in 1 : vector<1x64xf32>, vector<1x64xf32>, vector<1x64xf32> -> vector<1x192xf32>
      %c0_88 = arith.constant 0 : index
      %c0_89 = arith.constant 0 : index
      %128 = vector.load %arg21[%c0_88, %c0_89] : memref<192x256xf32, #tpu.memory_space<vmem>>, vector<192x256xf32>
      %cst_90 = arith.constant dense<0.000000e+00> : vector<1x256xf32>
      %129 = tpu.matmul %127, %128, %cst_90 {dimension_numbers = #tpu.dot_dimension_numbers<[1], [0], [0], [1], [0, 0, 1, 1], [], []>} : vector<1x192xf32>, vector<192x256xf32>, vector<1x256xf32> -> vector<1x256xf32>
      %c0_91 = arith.constant 0 : index
      %c0_92 = arith.constant 0 : index
      %130 = vector.load %arg22[%c0_91, %c0_92] : memref<1x256xf32, #tpu.memory_space<vmem>>, vector<1x256xf32>
      %131 = arith.addf %129, %130 : vector<1x256xf32>
      %cst_93 = arith.constant 0.000000e+00 : f32
      %132 = vector.broadcast %cst_93 : f32 to vector<1x256xf32>
      %133 = arith.cmpf ogt, %131, %132 : vector<1x256xf32>
      %cst_94 = arith.constant 0.00999999977 : f32
      %134 = vector.broadcast %cst_94 : f32 to vector<1x256xf32>
      %135 = arith.mulf %134, %131 : vector<1x256xf32>
      %136 = arith.select %133, %131, %135 : vector<1x256xi1>, vector<1x256xf32>
      %c0_95 = arith.constant 0 : index
      %c0_96 = arith.constant 0 : index
      %137 = vector.load %arg23[%c0_95, %c0_96] : memref<256x192xf32, #tpu.memory_space<vmem>>, vector<256x192xf32>
      %cst_97 = arith.constant dense<0.000000e+00> : vector<1x192xf32>
      %138 = tpu.matmul %136, %137, %cst_97 {dimension_numbers = #tpu.dot_dimension_numbers<[1], [0], [0], [1], [0, 0, 1, 1], [], []>} : vector<1x256xf32>, vector<256x192xf32>, vector<1x192xf32> -> vector<1x192xf32>
      %c0_98 = arith.constant 0 : index
      %c0_99 = arith.constant 0 : index
      %139 = vector.load %arg24[%c0_98, %c0_99] : memref<1x192xf32, #tpu.memory_space<vmem>>, vector<1x192xf32>
      %140 = arith.addf %138, %139 : vector<1x192xf32>
      %141 = tpu.concatenate %140, %127 in 1 : vector<1x192xf32>, vector<1x192xf32> -> vector<1x384xf32>
      %c0_100 = arith.constant 0 : index
      %c0_101 = arith.constant 0 : index
      %c0_102 = arith.constant 0 : index
      %142 = vector.load %arg25[%c0_100, %c0_101, %c0_102] : memref<1x1x384xf32, #tpu.memory_space<vmem>>, vector<1x1x384xf32>
      %143 = vector.shape_cast %142 : vector<1x1x384xf32> to vector<1x384xf32>
      %144 = vector.shape_cast %141 : vector<1x384xf32> to vector<1x1x384xf32>
      tpu.vector_store %arg25[%c0_100, %c0_101, %c0_102], %144 {strides = array<i32>} : memref<1x1x384xf32, #tpu.memory_space<vmem>>, vector<1x1x384xf32>,
    } else {
    }
    return
  }
  func.func @transform_0(%arg0: i32, %arg1: i32) -> (i32, i32, i32) {
    %c0_i32 = arith.constant 0 : i32
    %c0_i32_0 = arith.constant 0 : i32
    return %arg0, %c0_i32, %arg1 : i32, i32, i32
  }
  func.func @transform_1(%arg0: i32, %arg1: i32) -> (i32, i32, i32) {
    %c0_i32 = arith.constant 0 : i32
    %c0_i32_0 = arith.constant 0 : i32
    return %arg0, %c0_i32, %arg1 : i32, i32, i32
  }
  func.func @transform_2(%arg0: i32, %arg1: i32) -> (i32, i32, i32) {
    %c0_i32 = arith.constant 0 : i32
    %c0_i32_0 = arith.constant 0 : i32
    %c0_i32_1 = arith.constant 0 : i32
    return %arg0, %c0_i32, %c0_i32_0 : i32, i32, i32
  }
  func.func @transform_3(%arg0: i32, %arg1: i32) -> (i32, i32) {
    %c0_i32 = arith.constant 0 : i32
    %c0_i32_0 = arith.constant 0 : i32
    %c0_i32_1 = arith.constant 0 : i32
    return %c0_i32, %c0_i32_0 : i32, i32
  }
  func.func @transform_4(%arg0: i32, %arg1: i32) -> (i32, i32) {
    %c0_i32 = arith.constant 0 : i32
    %c0_i32_0 = arith.constant 0 : i32
    %c0_i32_1 = arith.constant 0 : i32
    return %c0_i32, %c0_i32_0 : i32, i32
  }
  func.func @transform_5(%arg0: i32, %arg1: i32) -> (i32, i32) {
    %c0_i32 = arith.constant 0 : i32
    %c0_i32_0 = arith.constant 0 : i32
    %c0_i32_1 = arith.constant 0 : i32
    return %c0_i32, %c0_i32_0 : i32, i32
  }
  func.func @transform_6(%arg0: i32, %arg1: i32) -> (i32, i32) {
    %c0_i32 = arith.constant 0 : i32
    %c0_i32_0 = arith.constant 0 : i32
    %c0_i32_1 = arith.constant 0 : i32
    return %c0_i32, %c0_i32_0 : i32, i32
  }
  func.func @transform_7(%arg0: i32, %arg1: i32) -> (i32, i32) {
    %c0_i32 = arith.constant 0 : i32
    %c0_i32_0 = arith.constant 0 : i32
    %c0_i32_1 = arith.constant 0 : i32
    return %c0_i32, %c0_i32_0 : i32, i32
  }
  func.func @transform_8(%arg0: i32, %arg1: i32) -> (i32, i32) {
    %c0_i32 = arith.constant 0 : i32
    %c0_i32_0 = arith.constant 0 : i32
    %c0_i32_1 = arith.constant 0 : i32
    return %c0_i32, %c0_i32_0 : i32, i32
  }
  func.func @transform_9(%arg0: i32, %arg1: i32) -> (i32, i32) {
    %c0_i32 = arith.constant 0 : i32
    %c0_i32_0 = arith.constant 0 : i32
    %c0_i32_1 = arith.constant 0 : i32
    return %c0_i32, %c0_i32_0 : i32, i32
  }
  func.func @transform_10(%arg0: i32, %arg1: i32) -> (i32, i32) {
    %c0_i32 = arith.constant 0 : i32
    %c0_i32_0 = arith.constant 0 : i32
    %c0_i32_1 = arith.constant 0 : i32
    return %c0_i32, %c0_i32_0 : i32, i32
  }
  func.func @transform_11(%arg0: i32, %arg1: i32) -> (i32, i32) {
    %c0_i32 = arith.constant 0 : i32
    %c0_i32_0 = arith.constant 0 : i32
    %c0_i32_1 = arith.constant 0 : i32
    return %c0_i32, %c0_i32_0 : i32, i32
  }
  func.func @transform_12(%arg0: i32, %arg1: i32) -> (i32, i32) {
    %c0_i32 = arith.constant 0 : i32
    %c0_i32_0 = arith.constant 0 : i32
    %c0_i32_1 = arith.constant 0 : i32
    return %c0_i32, %c0_i32_0 : i32, i32
  }
  func.func @transform_13(%arg0: i32, %arg1: i32) -> (i32, i32) {
    %c0_i32 = arith.constant 0 : i32
    %c0_i32_0 = arith.constant 0 : i32
    %c0_i32_1 = arith.constant 0 : i32
    return %c0_i32, %c0_i32_0 : i32, i32
  }
  func.func @transform_14(%arg0: i32, %arg1: i32) -> (i32, i32) {
    %c0_i32 = arith.constant 0 : i32
    %c0_i32_0 = arith.constant 0 : i32
    %c0_i32_1 = arith.constant 0 : i32
    return %c0_i32, %c0_i32_0 : i32, i32
  }
  func.func @transform_15(%arg0: i32, %arg1: i32) -> (i32, i32) {
    %c0_i32 = arith.constant 0 : i32
    %c0_i32_0 = arith.constant 0 : i32
    %c0_i32_1 = arith.constant 0 : i32
    return %c0_i32, %c0_i32_0 : i32, i32
  }
  func.func @transform_16(%arg0: i32, %arg1: i32) -> (i32, i32) {
    %c0_i32 = arith.constant 0 : i32
    %c0_i32_0 = arith.constant 0 : i32
    %c0_i32_1 = arith.constant 0 : i32
    return %c0_i32, %c0_i32_0 : i32, i32
  }
  func.func @transform_17(%arg0: i32, %arg1: i32) -> (i32, i32) {
    %c0_i32 = arith.constant 0 : i32
    %c0_i32_0 = arith.constant 0 : i32
    %c0_i32_1 = arith.constant 0 : i32
    return %c0_i32, %c0_i32_0 : i32, i32
  }
  func.func @transform_18(%arg0: i32, %arg1: i32) -> (i32, i32) {
    %c0_i32 = arith.constant 0 : i32
    %c0_i32_0 = arith.constant 0 : i32
    %c0_i32_1 = arith.constant 0 : i32
    return %c0_i32, %c0_i32_0 : i32, i32
  }
  func.func @transform_19(%arg0: i32, %arg1: i32) -> (i32, i32) {
    %c0_i32 = arith.constant 0 : i32
    %c0_i32_0 = arith.constant 0 : i32
    %c0_i32_1 = arith.constant 0 : i32
    return %c0_i32, %c0_i32_0 : i32, i32
  }
  func.func @transform_20(%arg0: i32, %arg1: i32) -> (i32, i32) {
    %c0_i32 = arith.constant 0 : i32
    %c0_i32_0 = arith.constant 0 : i32
    %c0_i32_1 = arith.constant 0 : i32
    return %c0_i32, %c0_i32_0 : i32, i32
  }
  func.func @transform_21(%arg0: i32, %arg1: i32) -> (i32, i32) {
    %c0_i32 = arith.constant 0 : i32
    %c0_i32_0 = arith.constant 0 : i32
    %c0_i32_1 = arith.constant 0 : i32
    return %c0_i32, %c0_i32_0 : i32, i32
  }
  func.func @transform_22(%arg0: i32, %arg1: i32) -> (i32, i32) {
    %c0_i32 = arith.constant 0 : i32
    %c0_i32_0 = arith.constant 0 : i32
    %c0_i32_1 = arith.constant 0 : i32
    return %c0_i32, %c0_i32_0 : i32, i32
  }
  func.func @transform_23(%arg0: i32, %arg1: i32) -> (i32, i32, i32) {
    %c0_i32 = arith.constant 0 : i32
    %c0_i32_0 = arith.constant 0 : i32
    %c0_i32_1 = arith.constant 0 : i32
    return %arg0, %c0_i32, %c0_i32_0 : i32, i32, i32
  }
}

</mosaic_0001>

<llo_original>
// kernel: posenet_forward.1
$region0: #{posenet_forward.1}
  #allocation0 [shape = 'u32[]', space=smem, size = 0x4, offset = 0x4, fixed_abs, tag = 'smem constant byte address 0x4 - core index']
  #allocation1 [shape = 'u32[144,128]{1,0:T(1,128)}', space=vmem, size = 0x12000, scoped, tag = 'internal scratch']
  #allocation2 [shape = 'f32[640,128]{1,0:T(8,128)}', space=vmem, size = 0x50000, scoped, tag = 'scratch operand']
  #allocation3 [shape = 'f32[256,128]{1,0:T(8,128)}', space=vmem, size = 0x20000, scoped, tag = 'scratch operand']
  %s0 = inlined_call_operand.vmem [shape: f32[2,5,64], index: 0, kind: input, shape index: {}]
  %s1 = inlined_call_operand.vmem [shape: f32[2,8,32], index: 1, kind: input, shape index: {}]
  %s2 = inlined_call_operand.vmem [shape: f32[2,1,64], index: 2, kind: input, shape index: {}]
  %s3 = inlined_call_operand.vmem [shape: f32[640,5], index: 3, kind: input, shape index: {}]
  %s4 = inlined_call_operand.vmem [shape: f32[640,1], index: 4, kind: input, shape index: {}]
  %s5 = inlined_call_operand.vmem [shape: f32[256,8], index: 5, kind: input, shape index: {}]
  %s6 = inlined_call_operand.vmem [shape: f32[256,1], index: 6, kind: input, shape index: {}]
  %s7 = inlined_call_operand.vmem [shape: f32[64,640], index: 7, kind: input, shape index: {}]
  %s8 = inlined_call_operand.vmem [shape: f32[64,1], index: 8, kind: input, shape index: {}]
  %s9 = inlined_call_operand.vmem [shape: f32[64,64], index: 9, kind: input, shape index: {}]
  %s10 = inlined_call_operand.vmem [shape: f32[1,64], index: 10, kind: input, shape index: {}]
  %s11 = inlined_call_operand.vmem [shape: f32[64,64], index: 11, kind: input, shape index: {}]
  %s12 = inlined_call_operand.vmem [shape: f32[1,64], index: 12, kind: input, shape index: {}]
  %s13 = inlined_call_operand.vmem [shape: f32[64,64], index: 13, kind: input, shape index: {}]
  %s14 = inlined_call_operand.vmem [shape: f32[1,64], index: 14, kind: input, shape index: {}]
  %s15 = inlined_call_operand.vmem [shape: f32[64,256], index: 15, kind: input, shape index: {}]
  %s16 = inlined_call_operand.vmem [shape: f32[64,1], index: 16, kind: input, shape index: {}]
  %s17 = inlined_call_operand.vmem [shape: f32[64,64], index: 17, kind: input, shape index: {}]
  %s18 = inlined_call_operand.vmem [shape: f32[1,64], index: 18, kind: input, shape index: {}]
  %s19 = inlined_call_operand.vmem [shape: f32[192,256], index: 19, kind: input, shape index: {}]
  %s20 = inlined_call_operand.vmem [shape: f32[1,256], index: 20, kind: input, shape index: {}]
  %s21 = inlined_call_operand.vmem [shape: f32[256,192], index: 21, kind: input, shape index: {}]
  %s22 = inlined_call_operand.vmem [shape: f32[1,192], index: 22, kind: input, shape index: {}]
  %s23 = inlined_call_operand.vmem [shape: f32[2,1,384], index: 23, kind: output, shape index: {}]
  %s24 = sld [smem:[#allocation0]]
  $region133: #{posenet_forward.1} parent=0
    _
  %s26 = ssub.s32 1, %s24
  %s27 = scalar_select 0, %s26, %s24
  loop: start=0, step=1, limit=4
  $region2: #{posenet_forward.1} parent=0 // loop_pre_header
    _
  $region3: #{posenet_forward.1} parent=0 // loop_header
    %s29 = sphi 0, %s33
    %p30 = scmp.ge.s32.totalorder %s29, 4
    %s36 = sphi 0, %s48
    %s37 = sphi 0, %s44
    %s38 = sphi 0, %s36
    %s39 = sphi 0, %s37
    %s40 = sphi 0, %s38
    %s41 = sphi 0, %s39
    %s53 = sphi 0, %s55
    %s56 = sphi 0, %s53
    %s57 = sphi 0, %s56
    %s73 = sphi 0, %s57
    %s81 = sphi 0, %s83
    %s84 = sphi 0, %s81
    %s85 = sphi 0, %s84
    %s101 = sphi 0, %s85
    %s107 = sphi 0, %s109
    %s110 = sphi 0, %s107
    %s111 = sphi 0, %s110
    %s127 = sphi 0, %s111
    %s131 = sphi 0, %s131
    %s133 = sphi 0, %s131
    %s134 = sphi 0, %s133
    %s148 = sphi 0, %s134
    %s152 = sphi 0, %s152
    %s154 = sphi 0, %s152
    %s155 = sphi 0, %s154
    %s169 = sphi 0, %s155
    %s173 = sphi 0, %s173
    %s175 = sphi 0, %s173
    %s176 = sphi 0, %s175
    %s190 = sphi 0, %s176
    %s194 = sphi 0, %s194
    %s196 = sphi 0, %s194
    %s197 = sphi 0, %s196
    %s211 = sphi 0, %s197
    %s215 = sphi 0, %s215
    %s217 = sphi 0, %s215
    %s218 = sphi 0, %s217
    %s232 = sphi 0, %s218
    %s236 = sphi 0, %s236
    %s238 = sphi 0, %s236
    %s239 = sphi 0, %s238
    %s253 = sphi 0, %s239
    %s257 = sphi 0, %s257
    %s259 = sphi 0, %s257
    %s260 = sphi 0, %s259
    %s274 = sphi 0, %s260
    %s278 = sphi 0, %s278
    %s280 = sphi 0, %s278
    %s281 = sphi 0, %s280
    %s295 = sphi 0, %s281
    %s299 = sphi 0, %s299
    %s301 = sphi 0, %s299
    %s302 = sphi 0, %s301
    %s316 = sphi 0, %s302
    %s320 = sphi 0, %s320
    %s322 = sphi 0, %s320
    %s323 = sphi 0, %s322
    %s337 = sphi 0, %s323
    %s341 = sphi 0, %s341
    %s343 = sphi 0, %s341
    %s344 = sphi 0, %s343
    %s358 = sphi 0, %s344
    %s362 = sphi 0, %s362
    %s364 = sphi 0, %s362
    %s365 = sphi 0, %s364
    %s379 = sphi 0, %s365
    %s383 = sphi 0, %s383
    %s385 = sphi 0, %s383
    %s386 = sphi 0, %s385
    %s400 = sphi 0, %s386
    %s404 = sphi 0, %s404
    %s406 = sphi 0, %s404
    %s407 = sphi 0, %s406
    %s421 = sphi 0, %s407
    %s425 = sphi 0, %s425
    %s427 = sphi 0, %s425
    %s428 = sphi 0, %s427
    %s442 = sphi 0, %s428
    %s446 = sphi 0, %s446
    %s448 = sphi 0, %s446
    %s449 = sphi 0, %s448
    %s463 = sphi 0, %s449
    %s467 = sphi 0, %s467
    %s469 = sphi 0, %s467
    %s470 = sphi 0, %s469
    %s484 = sphi 0, %s470
    %s488 = sphi 0, %s488
    %s490 = sphi 0, %s488
    %s491 = sphi 0, %s490
    %s505 = sphi 0, %s491
    %s509 = sphi 0, %s509
    %s511 = sphi 0, %s509
    %s512 = sphi 0, %s511
    %s526 = sphi 0, %s512
    %s530 = sphi 0, %s530
    %s532 = sphi 0, %s530
    %s533 = sphi 0, %s532
    %s547 = sphi 0, %s533
    %s553 = sphi 0, %s555
    %s556 = sphi 0, %s553
    %s557 = sphi 0, %s556
    %s573 = sphi 0, %s557
  $region4: #{posenet_forward.1} parent=0 // loop_header_branch
    %32 = sbr.rel (%p30) target = $region8
  $region5: #{posenet_forward.1} parent=0 // loop_body
    %s34 = ssub.s32 %s29, 1
    %s35 = ssub.s32 %s29, 2
    %s42 = sadd.s32 1, %s37
    %p43 = scmp.ge.s32.totalorder %s42, 1
    %s44 = scalar_select %p43, 0, %s42
    %s45 = sadd.s32 1, %s36
    %s46 = scalar_select %p43, %s45, %s36
    %p47 = scmp.ge.s32.totalorder %s46, 2
    %s48 = scalar_select %p47, 0, %s46
    %s49 = ssub.s32 %s36, %s48
    %s50 = ssub.s32 %s37, %s44
    %s51 = sor.u32 %s49, %s50
    %p52 = scmp.eq.s32.totalorder %s51, 0
    %s54 = sadd.s32 %s53, 1
    %s55 = scalar_select %p52, %s53, %s54
    %p58 = pneg %p52
    %p59 = scmp.eq.s32.totalorder %s29, 1
    %p60 = por %p58, %p59
    %p61 = scmp.ne.s32.totalorder %s53, %s56
    %p62 = scmp.eq.s32.totalorder %s29, 0
    %p63 = por %p61, %p62
    %p64 = scmp.ne.s32.totalorder %s53, %s56
    %p65 = scmp.eq.s32.totalorder %s34, 1
    %p66 = por %p64, %p65
    %p67 = scmp.ne.s32.totalorder %s56, %s57
    %p68 = scmp.eq.s32.totalorder %s34, 0
    %p69 = por %p67, %p68
    %p70 = scmp.ne.s32.totalorder %s56, %s57
    %p71 = scmp.eq.s32.totalorder %s35, 1
    %p72 = por %p70, %p71
    %p74 = scmp.ne.s32.totalorder %s57, %s73
    %p75 = scmp.eq.s32.totalorder %s35, 0
    %p76 = por %p74, %p75
    %s77 = ssub.s32 %s36, %s48
    %s78 = ssub.s32 %s37, %s44
    %s79 = sor.u32 %s77, %s78
    %p80 = scmp.eq.s32.totalorder %s79, 0
    %s82 = sadd.s32 %s81, 1
    %s83 = scalar_select %p80, %s81, %s82
    %p86 = pneg %p80
    %p87 = scmp.eq.s32.totalorder %s29, 1
    %p88 = por %p86, %p87
    %p89 = scmp.ne.s32.totalorder %s81, %s84
    %p90 = scmp.eq.s32.totalorder %s29, 0
    %p91 = por %p89, %p90
    %p92 = scmp.ne.s32.totalorder %s81, %s84
    %p93 = scmp.eq.s32.totalorder %s34, 1
    %p94 = por %p92, %p93
    %p95 = scmp.ne.s32.totalorder %s84, %s85
    %p96 = scmp.eq.s32.totalorder %s34, 0
    %p97 = por %p95, %p96
    %p98 = scmp.ne.s32.totalorder %s84, %s85
    %p99 = scmp.eq.s32.totalorder %s35, 1
    %p100 = por %p98, %p99
    %p102 = scmp.ne.s32.totalorder %s85, %s101
    %p103 = scmp.eq.s32.totalorder %s35, 0
    %p104 = por %p102, %p103
    %s105 = ssub.s32 %s36, %s48
    %p106 = scmp.eq.s32.totalorder %s105, 0
    %s108 = sadd.s32 %s107, 1
    %s109 = scalar_select %p106, %s107, %s108
    %p112 = pneg %p106
    %p113 = scmp.eq.s32.totalorder %s29, 1
    %p114 = por %p112, %p113
    %p115 = scmp.ne.s32.totalorder %s107, %s110
    %p116 = scmp.eq.s32.totalorder %s29, 0
    %p117 = por %p115, %p116
    %p118 = scmp.ne.s32.totalorder %s107, %s110
    %p119 = scmp.eq.s32.totalorder %s34, 1
    %p120 = por %p118, %p119
    %p121 = scmp.ne.s32.totalorder %s110, %s111
    %p122 = scmp.eq.s32.totalorder %s34, 0
    %p123 = por %p121, %p122
    %p124 = scmp.ne.s32.totalorder %s110, %s111
    %p125 = scmp.eq.s32.totalorder %s35, 1
    %p126 = por %p124, %p125
    %p128 = scmp.ne.s32.totalorder %s111, %s127
    %p129 = scmp.eq.s32.totalorder %s35, 0
    %p130 = por %p128, %p129
    %s132 = sadd.s32 %s131, 1
    %p135 = scmp.eq.s32.totalorder %s29, 1
    %p136 = scmp.ne.s32.totalorder %s131, %s133
    %p137 = scmp.eq.s32.totalorder %s29, 0
    %p138 = por %p136, %p137
    %p139 = scmp.ne.s32.totalorder %s131, %s133
    %p140 = scmp.eq.s32.totalorder %s34, 1
    %p141 = por %p139, %p140
    %p142 = scmp.ne.s32.totalorder %s133, %s134
    %p143 = scmp.eq.s32.totalorder %s34, 0
    %p144 = por %p142, %p143
    %p145 = scmp.ne.s32.totalorder %s133, %s134
    %p146 = scmp.eq.s32.totalorder %s35, 1
    %p147 = por %p145, %p146
    %p149 = scmp.ne.s32.totalorder %s134, %s148
    %p150 = scmp.eq.s32.totalorder %s35, 0
    %p151 = por %p149, %p150
    %s153 = sadd.s32 %s152, 1
    %p156 = scmp.eq.s32.totalorder %s29, 1
    %p157 = scmp.ne.s32.totalorder %s152, %s154
    %p158 = scmp.eq.s32.totalorder %s29, 0
    %p159 = por %p157, %p158
    %p160 = scmp.ne.s32.totalorder %s152, %s154
    %p161 = scmp.eq.s32.totalorder %s34, 1
    %p162 = por %p160, %p161
    %p163 = scmp.ne.s32.totalorder %s154, %s155
    %p164 = scmp.eq.s32.totalorder %s34, 0
    %p165 = por %p163, %p164
    %p166 = scmp.ne.s32.totalorder %s154, %s155
    %p167 = scmp.eq.s32.totalorder %s35, 1
    %p168 = por %p166, %p167
    %p170 = scmp.ne.s32.totalorder %s155, %s169
    %p171 = scmp.eq.s32.totalorder %s35, 0
    %p172 = por %p170, %p171
    %s174 = sadd.s32 %s173, 1
    %p177 = scmp.eq.s32.totalorder %s29, 1
    %p178 = scmp.ne.s32.totalorder %s173, %s175
    %p179 = scmp.eq.s32.totalorder %s29, 0
    %p180 = por %p178, %p179
    %p181 = scmp.ne.s32.totalorder %s173, %s175
    %p182 = scmp.eq.s32.totalorder %s34, 1
    %p183 = por %p181, %p182
    %p184 = scmp.ne.s32.totalorder %s175, %s176
    %p185 = scmp.eq.s32.totalorder %s34, 0
    %p186 = por %p184, %p185
    %p187 = scmp.ne.s32.totalorder %s175, %s176
    %p188 = scmp.eq.s32.totalorder %s35, 1
    %p189 = por %p187, %p188
    %p191 = scmp.ne.s32.totalorder %s176, %s190
    %p192 = scmp.eq.s32.totalorder %s35, 0
    %p193 = por %p191, %p192
    %s195 = sadd.s32 %s194, 1
    %p198 = scmp.eq.s32.totalorder %s29, 1
    %p199 = scmp.ne.s32.totalorder %s194, %s196
    %p200 = scmp.eq.s32.totalorder %s29, 0
    %p201 = por %p199, %p200
    %p202 = scmp.ne.s32.totalorder %s194, %s196
    %p203 = scmp.eq.s32.totalorder %s34, 1
    %p204 = por %p202, %p203
    %p205 = scmp.ne.s32.totalorder %s196, %s197
    %p206 = scmp.eq.s32.totalorder %s34, 0
    %p207 = por %p205, %p206
    %p208 = scmp.ne.s32.totalorder %s196, %s197
    %p209 = scmp.eq.s32.totalorder %s35, 1
    %p210 = por %p208, %p209
    %p212 = scmp.ne.s32.totalorder %s197, %s211
    %p213 = scmp.eq.s32.totalorder %s35, 0
    %p214 = por %p212, %p213
    %s216 = sadd.s32 %s215, 1
    %p219 = scmp.eq.s32.totalorder %s29, 1
    %p220 = scmp.ne.s32.totalorder %s215, %s217
    %p221 = scmp.eq.s32.totalorder %s29, 0
    %p222 = por %p220, %p221
    %p223 = scmp.ne.s32.totalorder %s215, %s217
    %p224 = scmp.eq.s32.totalorder %s34, 1
    %p225 = por %p223, %p224
    %p226 = scmp.ne.s32.totalorder %s217, %s218
    %p227 = scmp.eq.s32.totalorder %s34, 0
    %p228 = por %p226, %p227
    %p229 = scmp.ne.s32.totalorder %s217, %s218
    %p230 = scmp.eq.s32.totalorder %s35, 1
    %p231 = por %p229, %p230
    %p233 = scmp.ne.s32.totalorder %s218, %s232
    %p234 = scmp.eq.s32.totalorder %s35, 0
    %p235 = por %p233, %p234
    %s237 = sadd.s32 %s236, 1
    %p240 = scmp.eq.s32.totalorder %s29, 1
    %p241 = scmp.ne.s32.totalorder %s236, %s238
    %p242 = scmp.eq.s32.totalorder %s29, 0
    %p243 = por %p241, %p242
    %p244 = scmp.ne.s32.totalorder %s236, %s238
    %p245 = scmp.eq.s32.totalorder %s34, 1
    %p246 = por %p244, %p245
    %p247 = scmp.ne.s32.totalorder %s238, %s239
    %p248 = scmp.eq.s32.totalorder %s34, 0
    %p249 = por %p247, %p248
    %p250 = scmp.ne.s32.totalorder %s238, %s239
    %p251 = scmp.eq.s32.totalorder %s35, 1
    %p252 = por %p250, %p251
    %p254 = scmp.ne.s32.totalorder %s239, %s253
    %p255 = scmp.eq.s32.totalorder %s35, 0
    %p256 = por %p254, %p255
    %s258 = sadd.s32 %s257, 1
    %p261 = scmp.eq.s32.totalorder %s29, 1
    %p262 = scmp.ne.s32.totalorder %s257, %s259
    %p263 = scmp.eq.s32.totalorder %s29, 0
    %p264 = por %p262, %p263
    %p265 = scmp.ne.s32.totalorder %s257, %s259
    %p266 = scmp.eq.s32.totalorder %s34, 1
    %p267 = por %p265, %p266
    %p268 = scmp.ne.s32.totalorder %s259, %s260
    %p269 = scmp.eq.s32.totalorder %s34, 0
    %p270 = por %p268, %p269
    %p271 = scmp.ne.s32.totalorder %s259, %s260
    %p272 = scmp.eq.s32.totalorder %s35, 1
    %p273 = por %p271, %p272
    %p275 = scmp.ne.s32.totalorder %s260, %s274
    %p276 = scmp.eq.s32.totalorder %s35, 0
    %p277 = por %p275, %p276
    %s279 = sadd.s32 %s278, 1
    %p282 = scmp.eq.s32.totalorder %s29, 1
    %p283 = scmp.ne.s32.totalorder %s278, %s280
    %p284 = scmp.eq.s32.totalorder %s29, 0
    %p285 = por %p283, %p284
    %p286 = scmp.ne.s32.totalorder %s278, %s280
    %p287 = scmp.eq.s32.totalorder %s34, 1
    %p288 = por %p286, %p287
    %p289 = scmp.ne.s32.totalorder %s280, %s281
    %p290 = scmp.eq.s32.totalorder %s34, 0
    %p291 = por %p289, %p290
    %p292 = scmp.ne.s32.totalorder %s280, %s281
    %p293 = scmp.eq.s32.totalorder %s35, 1
    %p294 = por %p292, %p293
    %p296 = scmp.ne.s32.totalorder %s281, %s295
    %p297 = scmp.eq.s32.totalorder %s35, 0
    %p298 = por %p296, %p297
    %s300 = sadd.s32 %s299, 1
    %p303 = scmp.eq.s32.totalorder %s29, 1
    %p304 = scmp.ne.s32.totalorder %s299, %s301
    %p305 = scmp.eq.s32.totalorder %s29, 0
    %p306 = por %p304, %p305
    %p307 = scmp.ne.s32.totalorder %s299, %s301
    %p308 = scmp.eq.s32.totalorder %s34, 1
    %p309 = por %p307, %p308
    %p310 = scmp.ne.s32.totalorder %s301, %s302
    %p311 = scmp.eq.s32.totalorder %s34, 0
    %p312 = por %p310, %p311
    %p313 = scmp.ne.s32.totalorder %s301, %s302
    %p314 = scmp.eq.s32.totalorder %s35, 1
    %p315 = por %p313, %p314
    %p317 = scmp.ne.s32.totalorder %s302, %s316
    %p318 = scmp.eq.s32.totalorder %s35, 0
    %p319 = por %p317, %p318
    %s321 = sadd.s32 %s320, 1
    %p324 = scmp.eq.s32.totalorder %s29, 1
    %p325 = scmp.ne.s32.totalorder %s320, %s322
    %p326 = scmp.eq.s32.totalorder %s29, 0
    %p327 = por %p325, %p326
    %p328 = scmp.ne.s32.totalorder %s320, %s322
    %p329 = scmp.eq.s32.totalorder %s34, 1
    %p330 = por %p328, %p329
    %p331 = scmp.ne.s32.totalorder %s322, %s323
    %p332 = scmp.eq.s32.totalorder %s34, 0
    %p333 = por %p331, %p332
    %p334 = scmp.ne.s32.totalorder %s322, %s323
    %p335 = scmp.eq.s32.totalorder %s35, 1
    %p336 = por %p334, %p335
    %p338 = scmp.ne.s32.totalorder %s323, %s337
    %p339 = scmp.eq.s32.totalorder %s35, 0
    %p340 = por %p338, %p339
    %s342 = sadd.s32 %s341, 1
    %p345 = scmp.eq.s32.totalorder %s29, 1
    %p346 = scmp.ne.s32.totalorder %s341, %s343
    %p347 = scmp.eq.s32.totalorder %s29, 0
    %p348 = por %p346, %p347
    %p349 = scmp.ne.s32.totalorder %s341, %s343
    %p350 = scmp.eq.s32.totalorder %s34, 1
    %p351 = por %p349, %p350
    %p352 = scmp.ne.s32.totalorder %s343, %s344
    %p353 = scmp.eq.s32.totalorder %s34, 0
    %p354 = por %p352, %p353
    %p355 = scmp.ne.s32.totalorder %s343, %s344
    %p356 = scmp.eq.s32.totalorder %s35, 1
    %p357 = por %p355, %p356
    %p359 = scmp.ne.s32.totalorder %s344, %s358
    %p360 = scmp.eq.s32.totalorder %s35, 0
    %p361 = por %p359, %p360
    %s363 = sadd.s32 %s362, 1
    %p366 = scmp.eq.s32.totalorder %s29, 1
    %p367 = scmp.ne.s32.totalorder %s362, %s364
    %p368 = scmp.eq.s32.totalorder %s29, 0
    %p369 = por %p367, %p368
    %p370 = scmp.ne.s32.totalorder %s362, %s364
    %p371 = scmp.eq.s32.totalorder %s34, 1
    %p372 = por %p370, %p371
    %p373 = scmp.ne.s32.totalorder %s364, %s365
    %p374 = scmp.eq.s32.totalorder %s34, 0
    %p375 = por %p373, %p374
    %p376 = scmp.ne.s32.totalorder %s364, %s365
    %p377 = scmp.eq.s32.totalorder %s35, 1
    %p378 = por %p376, %p377
    %p380 = scmp.ne.s32.totalorder %s365, %s379
    %p381 = scmp.eq.s32.totalorder %s35, 0
    %p382 = por %p380, %p381
    %s384 = sadd.s32 %s383, 1
    %p387 = scmp.eq.s32.totalorder %s29, 1
    %p388 = scmp.ne.s32.totalorder %s383, %s385
    %p389 = scmp.eq.s32.totalorder %s29, 0
    %p390 = por %p388, %p389
    %p391 = scmp.ne.s32.totalorder %s383, %s385
    %p392 = scmp.eq.s32.totalorder %s34, 1
    %p393 = por %p391, %p392
    %p394 = scmp.ne.s32.totalorder %s385, %s386
    %p395 = scmp.eq.s32.totalorder %s34, 0
    %p396 = por %p394, %p395
    %p397 = scmp.ne.s32.totalorder %s385, %s386
    %p398 = scmp.eq.s32.totalorder %s35, 1
    %p399 = por %p397, %p398
    %p401 = scmp.ne.s32.totalorder %s386, %s400
    %p402 = scmp.eq.s32.totalorder %s35, 0
    %p403 = por %p401, %p402
    %s405 = sadd.s32 %s404, 1
    %p408 = scmp.eq.s32.totalorder %s29, 1
    %p409 = scmp.ne.s32.totalorder %s404, %s406
    %p410 = scmp.eq.s32.totalorder %s29, 0
    %p411 = por %p409, %p410
    %p412 = scmp.ne.s32.totalorder %s404, %s406
    %p413 = scmp.eq.s32.totalorder %s34, 1
    %p414 = por %p412, %p413
    %p415 = scmp.ne.s32.totalorder %s406, %s407
    %p416 = scmp.eq.s32.totalorder %s34, 0
    %p417 = por %p415, %p416
    %p418 = scmp.ne.s32.totalorder %s406, %s407
    %p419 = scmp.eq.s32.totalorder %s35, 1
    %p420 = por %p418, %p419
    %p422 = scmp.ne.s32.totalorder %s407, %s421
    %p423 = scmp.eq.s32.totalorder %s35, 0
    %p424 = por %p422, %p423
    %s426 = sadd.s32 %s425, 1
    %p429 = scmp.eq.s32.totalorder %s29, 1
    %p430 = scmp.ne.s32.totalorder %s425, %s427
    %p431 = scmp.eq.s32.totalorder %s29, 0
    %p432 = por %p430, %p431
    %p433 = scmp.ne.s32.totalorder %s425, %s427
    %p434 = scmp.eq.s32.totalorder %s34, 1
    %p435 = por %p433, %p434
    %p436 = scmp.ne.s32.totalorder %s427, %s428
    %p437 = scmp.eq.s32.totalorder %s34, 0
    %p438 = por %p436, %p437
    %p439 = scmp.ne.s32.totalorder %s427, %s428
    %p440 = scmp.eq.s32.totalorder %s35, 1
    %p441 = por %p439, %p440
    %p443 = scmp.ne.s32.totalorder %s428, %s442
    %p444 = scmp.eq.s32.totalorder %s35, 0
    %p445 = por %p443, %p444
    %s447 = sadd.s32 %s446, 1
    %p450 = scmp.eq.s32.totalorder %s29, 1
    %p451 = scmp.ne.s32.totalorder %s446, %s448
    %p452 = scmp.eq.s32.totalorder %s29, 0
    %p453 = por %p451, %p452
    %p454 = scmp.ne.s32.totalorder %s446, %s448
    %p455 = scmp.eq.s32.totalorder %s34, 1
    %p456 = por %p454, %p455
    %p457 = scmp.ne.s32.totalorder %s448, %s449
    %p458 = scmp.eq.s32.totalorder %s34, 0
    %p459 = por %p457, %p458
    %p460 = scmp.ne.s32.totalorder %s448, %s449
    %p461 = scmp.eq.s32.totalorder %s35, 1
    %p462 = por %p460, %p461
    %p464 = scmp.ne.s32.totalorder %s449, %s463
    %p465 = scmp.eq.s32.totalorder %s35, 0
    %p466 = por %p464, %p465
    %s468 = sadd.s32 %s467, 1
    %p471 = scmp.eq.s32.totalorder %s29, 1
    %p472 = scmp.ne.s32.totalorder %s467, %s469
    %p473 = scmp.eq.s32.totalorder %s29, 0
    %p474 = por %p472, %p473
    %p475 = scmp.ne.s32.totalorder %s467, %s469
    %p476 = scmp.eq.s32.totalorder %s34, 1
    %p477 = por %p475, %p476
    %p478 = scmp.ne.s32.totalorder %s469, %s470
    %p479 = scmp.eq.s32.totalorder %s34, 0
    %p480 = por %p478, %p479
    %p481 = scmp.ne.s32.totalorder %s469, %s470
    %p482 = scmp.eq.s32.totalorder %s35, 1
    %p483 = por %p481, %p482
    %p485 = scmp.ne.s32.totalorder %s470, %s484
    %p486 = scmp.eq.s32.totalorder %s35, 0
    %p487 = por %p485, %p486
    %s489 = sadd.s32 %s488, 1
    %p492 = scmp.eq.s32.totalorder %s29, 1
    %p493 = scmp.ne.s32.totalorder %s488, %s490
    %p494 = scmp.eq.s32.totalorder %s29, 0
    %p495 = por %p493, %p494
    %p496 = scmp.ne.s32.totalorder %s488, %s490
    %p497 = scmp.eq.s32.totalorder %s34, 1
    %p498 = por %p496, %p497
    %p499 = scmp.ne.s32.totalorder %s490, %s491
    %p500 = scmp.eq.s32.totalorder %s34, 0
    %p501 = por %p499, %p500
    %p502 = scmp.ne.s32.totalorder %s490, %s491
    %p503 = scmp.eq.s32.totalorder %s35, 1
    %p504 = por %p502, %p503
    %p506 = scmp.ne.s32.totalorder %s491, %s505
    %p507 = scmp.eq.s32.totalorder %s35, 0
    %p508 = por %p506, %p507
    %s510 = sadd.s32 %s509, 1
    %p513 = scmp.eq.s32.totalorder %s29, 1
    %p514 = scmp.ne.s32.totalorder %s509, %s511
    %p515 = scmp.eq.s32.totalorder %s29, 0
    %p516 = por %p514, %p515
    %p517 = scmp.ne.s32.totalorder %s509, %s511
    %p518 = scmp.eq.s32.totalorder %s34, 1
    %p519 = por %p517, %p518
    %p520 = scmp.ne.s32.totalorder %s511, %s512
    %p521 = scmp.eq.s32.totalorder %s34, 0
    %p522 = por %p520, %p521
    %p523 = scmp.ne.s32.totalorder %s511, %s512
    %p524 = scmp.eq.s32.totalorder %s35, 1
    %p525 = por %p523, %p524
    %p527 = scmp.ne.s32.totalorder %s512, %s526
    %p528 = scmp.eq.s32.totalorder %s35, 0
    %p529 = por %p527, %p528
    %s531 = sadd.s32 %s530, 1
    %p534 = scmp.eq.s32.totalorder %s29, 1
    %p535 = scmp.ne.s32.totalorder %s530, %s532
    %p536 = scmp.eq.s32.totalorder %s29, 0
    %p537 = por %p535, %p536
    %p538 = scmp.ne.s32.totalorder %s530, %s532
    %p539 = scmp.eq.s32.totalorder %s34, 1
    %p540 = por %p538, %p539
    %p541 = scmp.ne.s32.totalorder %s532, %s533
    %p542 = scmp.eq.s32.totalorder %s34, 0
    %p543 = por %p541, %p542
    %p544 = scmp.ne.s32.totalorder %s532, %s533
    %p545 = scmp.eq.s32.totalorder %s35, 1
    %p546 = por %p544, %p545
    %p548 = scmp.ne.s32.totalorder %s533, %s547
    %p549 = scmp.eq.s32.totalorder %s35, 0
    %p550 = por %p548, %p549
    %s551 = ssub.s32 %s36, %s48
    %p552 = scmp.eq.s32.totalorder %s551, 0
    %s554 = sadd.s32 %s553, 1
    %s555 = scalar_select %p552, %s553, %s554
    %p558 = pneg %p552
    %p559 = scmp.eq.s32.totalorder %s29, 1
    %p560 = por %p558, %p559
    %p561 = scmp.ne.s32.totalorder %s553, %s556
    %p562 = scmp.eq.s32.totalorder %s29, 0
    %p563 = por %p561, %p562
    %p564 = scmp.ne.s32.totalorder %s553, %s556
    %p565 = scmp.eq.s32.totalorder %s34, 1
    %p566 = por %p564, %p565
    %p567 = scmp.ne.s32.totalorder %s556, %s557
    %p568 = scmp.eq.s32.totalorder %s34, 0
    %p569 = por %p567, %p568
    %p570 = scmp.ne.s32.totalorder %s556, %s557
    %p571 = scmp.eq.s32.totalorder %s35, 1
    %p572 = por %p570, %p571
    %p574 = scmp.ne.s32.totalorder %s557, %s573
    %p575 = scmp.eq.s32.totalorder %s35, 0
    %p576 = por %p574, %p575
    %p577 = scmp.le.s32.totalorder 1, %s29
    %p578 = scmp.lt.s32.totalorder %s29, 3
    %p579 = pnand %p577, %p578
    %p580 = pneg %p579
    // Predicated region
    $region9: #{posenet_forward.1} parent=5 // pred_check
      _
    $region10: #{posenet_forward.1} parent=5 // pred_check_branch
      %582 = sbr.rel (%p579) target = $region12
    $region11: #{posenet_forward.1} parent=5 // pred_region
      %s583 = ssub.s32 %s29, 1
      // Predicated region
      $region13: #{posenet_forward.1} parent=11 // pred_check
        %p584 = pneg %p144
      $region14: #{posenet_forward.1} parent=11 // pred_check_branch
        %586 = sbr.rel (%p584) target = $region16
      $region15: #{posenet_forward.1} parent=11 // pred_region
        _
      $region16: #{posenet_forward.1} parent=11 // pred_fallthru
        _
      // Predicated region
      $region17: #{posenet_forward.1} parent=11 // pred_check
        %p587 = pneg %p165
      $region18: #{posenet_forward.1} parent=11 // pred_check_branch
        %589 = sbr.rel (%p587) target = $region20
      $region19: #{posenet_forward.1} parent=11 // pred_region
        _
      $region20: #{posenet_forward.1} parent=11 // pred_fallthru
        _
      // Predicated region
      $region21: #{posenet_forward.1} parent=11 // pred_check
        %p590 = pneg %p186
      $region22: #{posenet_forward.1} parent=11 // pred_check_branch
        %592 = sbr.rel (%p590) target = $region24
      $region23: #{posenet_forward.1} parent=11 // pred_region
        _
      $region24: #{posenet_forward.1} parent=11 // pred_fallthru
        _
      // Predicated region
      $region25: #{posenet_forward.1} parent=11 // pred_check
        %p593 = pneg %p207
      $region26: #{posenet_forward.1} parent=11 // pred_check_branch
        %595 = sbr.rel (%p593) target = $region28
      $region27: #{posenet_forward.1} parent=11 // pred_region
        _
      $region28: #{posenet_forward.1} parent=11 // pred_fallthru
        _
      // Predicated region
      $region29: #{posenet_forward.1} parent=11 // pred_check
        %p596 = pneg %p228
      $region30: #{posenet_forward.1} parent=11 // pred_check_branch
        %598 = sbr.rel (%p596) target = $region32
      $region31: #{posenet_forward.1} parent=11 // pred_region
        _
      $region32: #{posenet_forward.1} parent=11 // pred_fallthru
        _
      // Predicated region
      $region33: #{posenet_forward.1} parent=11 // pred_check
        %p599 = pneg %p249
      $region34: #{posenet_forward.1} parent=11 // pred_check_branch
        %601 = sbr.rel (%p599) target = $region36
      $region35: #{posenet_forward.1} parent=11 // pred_region
        _
      $region36: #{posenet_forward.1} parent=11 // pred_fallthru
        _
      // Predicated region
      $region37: #{posenet_forward.1} parent=11 // pred_check
        %p602 = pneg %p270
      $region38: #{posenet_forward.1} parent=11 // pred_check_branch
        %604 = sbr.rel (%p602) target = $region40
      $region39: #{posenet_forward.1} parent=11 // pred_region
        _
      $region40: #{posenet_forward.1} parent=11 // pred_fallthru
        _
      // Predicated region
      $region41: #{posenet_forward.1} parent=11 // pred_check
        %p605 = pneg %p291
      $region42: #{posenet_forward.1} parent=11 // pred_check_branch
        %607 = sbr.rel (%p605) target = $region44
      $region43: #{posenet_forward.1} parent=11 // pred_region
        _
      $region44: #{posenet_forward.1} parent=11 // pred_fallthru
        _
      // Predicated region
      $region45: #{posenet_forward.1} parent=11 // pred_check
        %p608 = pneg %p312
      $region46: #{posenet_forward.1} parent=11 // pred_check_branch
        %610 = sbr.rel (%p608) target = $region48
      $region47: #{posenet_forward.1} parent=11 // pred_region
        _
      $region48: #{posenet_forward.1} parent=11 // pred_fallthru
        _
      // Predicated region
      $region49: #{posenet_forward.1} parent=11 // pred_check
        %p611 = pneg %p333
      $region50: #{posenet_forward.1} parent=11 // pred_check_branch
        %613 = sbr.rel (%p611) target = $region52
      $region51: #{posenet_forward.1} parent=11 // pred_region
        _
      $region52: #{posenet_forward.1} parent=11 // pred_fallthru
        _
      // Predicated region
      $region53: #{posenet_forward.1} parent=11 // pred_check
        %p614 = pneg %p354
      $region54: #{posenet_forward.1} parent=11 // pred_check_branch
        %616 = sbr.rel (%p614) target = $region56
      $region55: #{posenet_forward.1} parent=11 // pred_region
        _
      $region56: #{posenet_forward.1} parent=11 // pred_fallthru
        _
      // Predicated region
      $region57: #{posenet_forward.1} parent=11 // pred_check
        %p617 = pneg %p375
      $region58: #{posenet_forward.1} parent=11 // pred_check_branch
        %619 = sbr.rel (%p617) target = $region60
      $region59: #{posenet_forward.1} parent=11 // pred_region
        _
      $region60: #{posenet_forward.1} parent=11 // pred_fallthru
        _
      // Predicated region
      $region61: #{posenet_forward.1} parent=11 // pred_check
        %p620 = pneg %p396
      $region62: #{posenet_forward.1} parent=11 // pred_check_branch
        %622 = sbr.rel (%p620) target = $region64
      $region63: #{posenet_forward.1} parent=11 // pred_region
        _
      $region64: #{posenet_forward.1} parent=11 // pred_fallthru
        _
      // Predicated region
      $region65: #{posenet_forward.1} parent=11 // pred_check
        %p623 = pneg %p417
      $region66: #{posenet_forward.1} parent=11 // pred_check_branch
        %625 = sbr.rel (%p623) target = $region68
      $region67: #{posenet_forward.1} parent=11 // pred_region
        _
      $region68: #{posenet_forward.1} parent=11 // pred_fallthru
        _
      // Predicated region
      $region69: #{posenet_forward.1} parent=11 // pred_check
        %p626 = pneg %p438
      $region70: #{posenet_forward.1} parent=11 // pred_check_branch
        %628 = sbr.rel (%p626) target = $region72
      $region71: #{posenet_forward.1} parent=11 // pred_region
        _
      $region72: #{posenet_forward.1} parent=11 // pred_fallthru
        _
      // Predicated region
      $region73: #{posenet_forward.1} parent=11 // pred_check
        %p629 = pneg %p459
      $region74: #{posenet_forward.1} parent=11 // pred_check_branch
        %631 = sbr.rel (%p629) target = $region76
      $region75: #{posenet_forward.1} parent=11 // pred_region
        _
      $region76: #{posenet_forward.1} parent=11 // pred_fallthru
        _
      // Predicated region
      $region77: #{posenet_forward.1} parent=11 // pred_check
        %p632 = pneg %p480
      $region78: #{posenet_forward.1} parent=11 // pred_check_branch
        %634 = sbr.rel (%p632) target = $region80
      $region79: #{posenet_forward.1} parent=11 // pred_region
        _
      $region80: #{posenet_forward.1} parent=11 // pred_fallthru
        _
      // Predicated region
      $region81: #{posenet_forward.1} parent=11 // pred_check
        %p635 = pneg %p501
      $region82: #{posenet_forward.1} parent=11 // pred_check_branch
        %637 = sbr.rel (%p635) target = $region84
      $region83: #{posenet_forward.1} parent=11 // pred_region
        _
      $region84: #{posenet_forward.1} parent=11 // pred_fallthru
        _
      // Predicated region
      $region85: #{posenet_forward.1} parent=11 // pred_check
        %p638 = pneg %p522
      $region86: #{posenet_forward.1} parent=11 // pred_check_branch
        %640 = sbr.rel (%p638) target = $region88
      $region87: #{posenet_forward.1} parent=11 // pred_region
        _
      $region88: #{posenet_forward.1} parent=11 // pred_fallthru
        _
      // Predicated region
      $region89: #{posenet_forward.1} parent=11 // pred_check
        %p641 = pneg %p543
      $region90: #{posenet_forward.1} parent=11 // pred_check_branch
        %643 = sbr.rel (%p641) target = $region92
      $region91: #{posenet_forward.1} parent=11 // pred_region
        _
      $region92: #{posenet_forward.1} parent=11 // pred_fallthru
        _
    $region12: #{posenet_forward.1} parent=5 // pred_fallthru
      _
    %p644 = scmp.lt.s32.totalorder %s29, 2
    // Predicated region
    $region93: #{posenet_forward.1} parent=5 // pred_check
      %p645 = pneg %p644
    $region94: #{posenet_forward.1} parent=5 // pred_check_branch
      %647 = sbr.rel (%p645) target = $region96
    $region95: #{posenet_forward.1} parent=5 // pred_region
      // Predicated region
      $region97: #{posenet_forward.1} parent=95 // pred_check
        %p648 = pneg %p63
      $region98: #{posenet_forward.1} parent=95 // pred_check_branch
        %650 = sbr.rel (%p648) target = $region100
      $region99: #{posenet_forward.1} parent=95 // pred_region
        %p651 = scmp.lt.s32.totalorder %s36, 1
        %s652 = scalar_select %p651, %s36, 1
        %p653 = scmp.lt.s32.totalorder %s37, 0
        %s654 = scalar_select %p653, %s37, 0
        %s655 = sadd.s32 %s654, %s652
        %s656 = smul.addr %s655, 8
        %s657 = scalar_lea.vmem %s0, %s656
      $region100: #{posenet_forward.1} parent=95 // pred_fallthru
        _
      // Predicated region
      $region101: #{posenet_forward.1} parent=95 // pred_check
        %p658 = pneg %p91
      $region102: #{posenet_forward.1} parent=95 // pred_check_branch
        %660 = sbr.rel (%p658) target = $region104
      $region103: #{posenet_forward.1} parent=95 // pred_region
        %p661 = scmp.lt.s32.totalorder %s36, 1
        %s662 = scalar_select %p661, %s36, 1
        %p663 = scmp.lt.s32.totalorder %s37, 0
        %s664 = scalar_select %p663, %s37, 0
        %s665 = sadd.s32 %s664, %s662
        %s666 = smul.addr %s665, 8
        %s667 = scalar_lea.vmem %s1, %s666
      $region104: #{posenet_forward.1} parent=95 // pred_fallthru
        _
      // Predicated region
      $region105: #{posenet_forward.1} parent=95 // pred_check
        %p668 = pneg %p117
      $region106: #{posenet_forward.1} parent=95 // pred_check_branch
        %670 = sbr.rel (%p668) target = $region108
      $region107: #{posenet_forward.1} parent=95 // pred_region
        %p671 = scmp.lt.s32.totalorder %s36, 1
        %s672 = scalar_select %p671, %s36, 1
        %s673 = scalar_lea.vmem %s2, %s672
      $region108: #{posenet_forward.1} parent=95 // pred_fallthru
        _
    $region96: #{posenet_forward.1} parent=5 // pred_fallthru
      _
    %p674 = scmp.le.s32.totalorder 1, %s29
    %p675 = scmp.lt.s32.totalorder %s29, 3
    %p676 = pnand %p674, %p675
    %p677 = pneg %p676
    // Predicated region
    $region109: #{posenet_forward.1} parent=5 // pred_check
      _
    $region110: #{posenet_forward.1} parent=5 // pred_check_branch
      %679 = sbr.rel (%p676) target = $region112
    $region111: #{posenet_forward.1} parent=5 // pred_region
      %s680 = ssub.s32 %s29, 1
      %p681 = scmp.lt.s32.totalorder %s38, 1
      %s682 = scalar_select %p681, %s38, 1
      %p683 = scmp.lt.s32.totalorder %s39, 0
      %s684 = scalar_select %p683, %s39, 0
      %s685 = sadd.s32 %s684, %s682
      %s686 = smul.addr %s685, 8
      %s687 = scalar_lea.vmem %s0, %s686
      %p688 = pneg %p69
      %p689 = pneg %p66
      %p690 = scmp.lt.s32.totalorder %s38, 1
      %s691 = scalar_select %p690, %s38, 1
      %p692 = scmp.lt.s32.totalorder %s39, 0
      %s693 = scalar_select %p692, %s39, 0
      %s694 = sadd.s32 %s693, %s691
      %s695 = smul.addr %s694, 8
      %s696 = scalar_lea.vmem %s1, %s695
      %p697 = pneg %p97
      %p698 = pneg %p94
      %p699 = scmp.lt.s32.totalorder %s38, 1
      %s700 = scalar_select %p699, %s38, 1
      %s701 = scalar_lea.vmem %s2, %s700
      %p702 = pneg %p123
      %p703 = pneg %p120
      %p704 = pneg %p144
      %p705 = pneg %p141
      %p706 = pneg %p165
      %p707 = pneg %p162
      %p708 = pneg %p186
      %p709 = pneg %p183
      %p710 = pneg %p207
      %p711 = pneg %p204
      %p712 = pneg %p228
      %p713 = pneg %p225
      %p714 = pneg %p249
      %p715 = pneg %p246
      %p716 = pneg %p270
      %p717 = pneg %p267
      %p718 = pneg %p291
      %p719 = pneg %p288
      %p720 = pneg %p312
      %p721 = pneg %p309
      %p722 = pneg %p333
      %p723 = pneg %p330
      %p724 = pneg %p354
      %p725 = pneg %p351
      %p726 = pneg %p375
      %p727 = pneg %p372
      %p728 = pneg %p396
      %p729 = pneg %p393
      %p730 = pneg %p417
      %p731 = pneg %p414
      %p732 = pneg %p438
      %p733 = pneg %p435
      %p734 = pneg %p459
      %p735 = pneg %p456
      %p736 = pneg %p480
      %p737 = pneg %p477
      %p738 = pneg %p501
      %p739 = pneg %p498
      %p740 = pneg %p522
      %p741 = pneg %p519
      %p742 = pneg %p543
      %p743 = pneg %p540
      %p744 = pneg %p569
      %p745 = pneg %p566
      %p746 = scmp.lt.s32.totalorder %s38, 1
      %s747 = scalar_select %p746, %s38, 1
      %s748 = smul.addr %s747, 3
      %s749 = scalar_lea.vmem %s23, %s748
      %p750 = scmp.lt.s32.totalorder %s38, 1
      %s751 = scalar_select %p750, %s38, 1
      %p752 = scmp.lt.s32.totalorder %s39, 0
      %s753 = scalar_select %p752, %s39, 0
      %s754 = sadd.s32 %s753, %s751
      %s755 = smul.addr %s754, 8
      %s756 = scalar_lea.vmem %s0, %s755
      %p757 = scmp.lt.s32.totalorder %s38, 1
      %s758 = scalar_select %p757, %s38, 1
      %p759 = scmp.lt.s32.totalorder %s39, 0
      %s760 = scalar_select %p759, %s39, 0
      %s761 = sadd.s32 %s760, %s758
      %s762 = smul.addr %s761, 8
      %s763 = scalar_lea.vmem %s1, %s762
      %p764 = scmp.lt.s32.totalorder %s38, 1
      %s765 = scalar_select %p764, %s38, 1
      %s766 = scalar_lea.vmem %s2, %s765
      %p767 = scmp.lt.s32.totalorder %s38, 1
      %s768 = scalar_select %p767, %s38, 1
      %s769 = smul.addr %s768, 3
      %s770 = scalar_lea.vmem %s23, %s769
      %p771 = scmp.eq.s32.totalorder %s39, 0
      // Predicated region
      $region113: #{posenet_forward.1} parent=111 // pred_check
        %p772 = pneg %p771
      $region114: #{posenet_forward.1} parent=111 // pred_check_branch
        %774 = sbr.rel (%p772) target = $region116
      $region115: #{posenet_forward.1} parent=111 // pred_region
        %775 = vst [vmem:[#allocation2] sm:$0xff] 0.0
        %776 = vst [vmem:[#allocation2 + $0x8] sm:$0xff] 0.0
        %777 = vst [vmem:[#allocation2 + $0x10] sm:$0xff] 0.0
        %778 = vst [vmem:[#allocation2 + $0x18] sm:$0xff] 0.0
        %779 = vst [vmem:[#allocation2 + $0x20] sm:$0xff] 0.0
        %780 = vst [vmem:[#allocation2 + $0x28] sm:$0xff] 0.0
        %781 = vst [vmem:[#allocation2 + $0x30] sm:$0xff] 0.0
        %782 = vst [vmem:[#allocation2 + $0x38] sm:$0xff] 0.0
        %783 = vst [vmem:[#allocation2 + $0x40] sm:$0xff] 0.0
        %784 = vst [vmem:[#allocation2 + $0x48] sm:$0xff] 0.0
        %785 = vst [vmem:[#allocation2 + $0x50] sm:$0xff] 0.0
        %786 = vst [vmem:[#allocation2 + $0x58] sm:$0xff] 0.0
        %787 = vst [vmem:[#allocation2 + $0x60] sm:$0xff] 0.0
        %788 = vst [vmem:[#allocation2 + $0x68] sm:$0xff] 0.0
        %789 = vst [vmem:[#allocation2 + $0x70] sm:$0xff] 0.0
        %790 = vst [vmem:[#allocation2 + $0x78] sm:$0xff] 0.0
        %791 = vst [vmem:[#allocation2 + $0x80] sm:$0xff] 0.0
        %792 = vst [vmem:[#allocation2 + $0x88] sm:$0xff] 0.0
        %793 = vst [vmem:[#allocation2 + $0x90] sm:$0xff] 0.0
        %794 = vst [vmem:[#allocation2 + $0x98] sm:$0xff] 0.0
        %795 = vst [vmem:[#allocation2 + $0xa0] sm:$0xff] 0.0
        %796 = vst [vmem:[#allocation2 + $0xa8] sm:$0xff] 0.0
        %797 = vst [vmem:[#allocation2 + $0xb0] sm:$0xff] 0.0
        %798 = vst [vmem:[#allocation2 + $0xb8] sm:$0xff] 0.0
        %799 = vst [vmem:[#allocation2 + $0xc0] sm:$0xff] 0.0
        %800 = vst [vmem:[#allocation2 + $0xc8] sm:$0xff] 0.0
        %801 = vst [vmem:[#allocation2 + $0xd0] sm:$0xff] 0.0
        %802 = vst [vmem:[#allocation2 + $0xd8] sm:$0xff] 0.0
        %803 = vst [vmem:[#allocation2 + $0xe0] sm:$0xff] 0.0
        %804 = vst [vmem:[#allocation2 + $0xe8] sm:$0xff] 0.0
        %805 = vst [vmem:[#allocation2 + $0xf0] sm:$0xff] 0.0
        %806 = vst [vmem:[#allocation2 + $0xf8] sm:$0xff] 0.0
        %807 = vst [vmem:[#allocation2 + $0x100] sm:$0xff] 0.0
        %808 = vst [vmem:[#allocation2 + $0x108] sm:$0xff] 0.0
        %809 = vst [vmem:[#allocation2 + $0x110] sm:$0xff] 0.0
        %810 = vst [vmem:[#allocation2 + $0x118] sm:$0xff] 0.0
        %811 = vst [vmem:[#allocation2 + $0x120] sm:$0xff] 0.0
        %812 = vst [vmem:[#allocation2 + $0x128] sm:$0xff] 0.0
        %813 = vst [vmem:[#allocation2 + $0x130] sm:$0xff] 0.0
        %814 = vst [vmem:[#allocation2 + $0x138] sm:$0xff] 0.0
        %815 = vst [vmem:[#allocation2 + $0x140] sm:$0xff] 0.0
        %816 = vst [vmem:[#allocation2 + $0x148] sm:$0xff] 0.0
        %817 = vst [vmem:[#allocation2 + $0x150] sm:$0xff] 0.0
        %818 = vst [vmem:[#allocation2 + $0x158] sm:$0xff] 0.0
        %819 = vst [vmem:[#allocation2 + $0x160] sm:$0xff] 0.0
        %820 = vst [vmem:[#allocation2 + $0x168] sm:$0xff] 0.0
        %821 = vst [vmem:[#allocation2 + $0x170] sm:$0xff] 0.0
        %822 = vst [vmem:[#allocation2 + $0x178] sm:$0xff] 0.0
        %823 = vst [vmem:[#allocation2 + $0x180] sm:$0xff] 0.0
        %824 = vst [vmem:[#allocation2 + $0x188] sm:$0xff] 0.0
        %825 = vst [vmem:[#allocation2 + $0x190] sm:$0xff] 0.0
        %826 = vst [vmem:[#allocation2 + $0x198] sm:$0xff] 0.0
        %827 = vst [vmem:[#allocation2 + $0x1a0] sm:$0xff] 0.0
        %828 = vst [vmem:[#allocation2 + $0x1a8] sm:$0xff] 0.0
        %829 = vst [vmem:[#allocation2 + $0x1b0] sm:$0xff] 0.0
        %830 = vst [vmem:[#allocation2 + $0x1b8] sm:$0xff] 0.0
        %831 = vst [vmem:[#allocation2 + $0x1c0] sm:$0xff] 0.0
        %832 = vst [vmem:[#allocation2 + $0x1c8] sm:$0xff] 0.0
        %833 = vst [vmem:[#allocation2 + $0x1d0] sm:$0xff] 0.0
        %834 = vst [vmem:[#allocation2 + $0x1d8] sm:$0xff] 0.0
        %835 = vst [vmem:[#allocation2 + $0x1e0] sm:$0xff] 0.0
        %836 = vst [vmem:[#allocation2 + $0x1e8] sm:$0xff] 0.0
        %837 = vst [vmem:[#allocation2 + $0x1f0] sm:$0xff] 0.0
        %838 = vst [vmem:[#allocation2 + $0x1f8] sm:$0xff] 0.0
        %839 = vst [vmem:[#allocation2 + $0x200] sm:$0xff] 0.0
        %840 = vst [vmem:[#allocation2 + $0x208] sm:$0xff] 0.0
        %841 = vst [vmem:[#allocation2 + $0x210] sm:$0xff] 0.0
        %842 = vst [vmem:[#allocation2 + $0x218] sm:$0xff] 0.0
        %843 = vst [vmem:[#allocation2 + $0x220] sm:$0xff] 0.0
        %844 = vst [vmem:[#allocation2 + $0x228] sm:$0xff] 0.0
        %845 = vst [vmem:[#allocation2 + $0x230] sm:$0xff] 0.0
        %846 = vst [vmem:[#allocation2 + $0x238] sm:$0xff] 0.0
        %847 = vst [vmem:[#allocation2 + $0x240] sm:$0xff] 0.0
        %848 = vst [vmem:[#allocation2 + $0x248] sm:$0xff] 0.0
        %849 = vst [vmem:[#allocation2 + $0x250] sm:$0xff] 0.0
        %850 = vst [vmem:[#allocation2 + $0x258] sm:$0xff] 0.0
        %851 = vst [vmem:[#allocation2 + $0x260] sm:$0xff] 0.0
        %852 = vst [vmem:[#allocation2 + $0x268] sm:$0xff] 0.0
        %853 = vst [vmem:[#allocation2 + $0x270] sm:$0xff] 0.0
        %854 = vst [vmem:[#allocation2 + $0x278] sm:$0xff] 0.0
        %855 = vst [vmem:[#allocation3] sm:$0xff] 0.0
        %856 = vst [vmem:[#allocation3 + $0x8] sm:$0xff] 0.0
        %857 = vst [vmem:[#allocation3 + $0x10] sm:$0xff] 0.0
        %858 = vst [vmem:[#allocation3 + $0x18] sm:$0xff] 0.0
        %859 = vst [vmem:[#allocation3 + $0x20] sm:$0xff] 0.0
        %860 = vst [vmem:[#allocation3 + $0x28] sm:$0xff] 0.0
        %861 = vst [vmem:[#allocation3 + $0x30] sm:$0xff] 0.0
        %862 = vst [vmem:[#allocation3 + $0x38] sm:$0xff] 0.0
        %863 = vst [vmem:[#allocation3 + $0x40] sm:$0xff] 0.0
        %864 = vst [vmem:[#allocation3 + $0x48] sm:$0xff] 0.0
        %865 = vst [vmem:[#allocation3 + $0x50] sm:$0xff] 0.0
        %866 = vst [vmem:[#allocation3 + $0x58] sm:$0xff] 0.0
        %867 = vst [vmem:[#allocation3 + $0x60] sm:$0xff] 0.0
        %868 = vst [vmem:[#allocation3 + $0x68] sm:$0xff] 0.0
        %869 = vst [vmem:[#allocation3 + $0x70] sm:$0xff] 0.0
        %870 = vst [vmem:[#allocation3 + $0x78] sm:$0xff] 0.0
        %871 = vst [vmem:[#allocation3 + $0x80] sm:$0xff] 0.0
        %872 = vst [vmem:[#allocation3 + $0x88] sm:$0xff] 0.0
        %873 = vst [vmem:[#allocation3 + $0x90] sm:$0xff] 0.0
        %874 = vst [vmem:[#allocation3 + $0x98] sm:$0xff] 0.0
        %875 = vst [vmem:[#allocation3 + $0xa0] sm:$0xff] 0.0
        %876 = vst [vmem:[#allocation3 + $0xa8] sm:$0xff] 0.0
        %877 = vst [vmem:[#allocation3 + $0xb0] sm:$0xff] 0.0
        %878 = vst [vmem:[#allocation3 + $0xb8] sm:$0xff] 0.0
        %879 = vst [vmem:[#allocation3 + $0xc0] sm:$0xff] 0.0
        %880 = vst [vmem:[#allocation3 + $0xc8] sm:$0xff] 0.0
        %881 = vst [vmem:[#allocation3 + $0xd0] sm:$0xff] 0.0
        %882 = vst [vmem:[#allocation3 + $0xd8] sm:$0xff] 0.0
        %883 = vst [vmem:[#allocation3 + $0xe0] sm:$0xff] 0.0
        %884 = vst [vmem:[#allocation3 + $0xe8] sm:$0xff] 0.0
        %885 = vst [vmem:[#allocation3 + $0xf0] sm:$0xff] 0.0
        %886 = vst [vmem:[#allocation3 + $0xf8] sm:$0xff] 0.0
      $region116: #{posenet_forward.1} parent=111 // pred_fallthru
        _
      %v887 = vld [vmem:[#allocation2] sm:$0xff]
      %v888 = vld [vmem:[#allocation2 + $0x8] sm:$0xff]
      %v889 = vld [vmem:[#allocation2 + $0x10] sm:$0xff]
      %v890 = vld [vmem:[#allocation2 + $0x18] sm:$0xff]
      %v891 = vld [vmem:[#allocation2 + $0x20] sm:$0xff]
      %v892 = vld [vmem:[#allocation2 + $0x28] sm:$0xff]
      %v893 = vld [vmem:[#allocation2 + $0x30] sm:$0xff]
      %v894 = vld [vmem:[#allocation2 + $0x38] sm:$0xff]
      %v895 = vld [vmem:[#allocation2 + $0x40] sm:$0xff]
      %v896 = vld [vmem:[#allocation2 + $0x48] sm:$0xff]
      %v897 = vld [vmem:[#allocation2 + $0x50] sm:$0xff]
      %v898 = vld [vmem:[#allocation2 + $0x58] sm:$0xff]
      %v899 = vld [vmem:[#allocation2 + $0x60] sm:$0xff]
      %v900 = vld [vmem:[#allocation2 + $0x68] sm:$0xff]
      %v901 = vld [vmem:[#allocation2 + $0x70] sm:$0xff]
      %v902 = vld [vmem:[#allocation2 + $0x78] sm:$0xff]
      %v903 = vld [vmem:[#allocation2 + $0x80] sm:$0xff]
      %v904 = vld [vmem:[#allocation2 + $0x88] sm:$0xff]
      %v905 = vld [vmem:[#allocation2 + $0x90] sm:$0xff]
      %v906 = vld [vmem:[#allocation2 + $0x98] sm:$0xff]
      %v907 = vld [vmem:[#allocation2 + $0xa0] sm:$0xff]
      %v908 = vld [vmem:[#allocation2 + $0xa8] sm:$0xff]
      %v909 = vld [vmem:[#allocation2 + $0xb0] sm:$0xff]
      %v910 = vld [vmem:[#allocation2 + $0xb8] sm:$0xff]
      %v911 = vld [vmem:[#allocation2 + $0xc0] sm:$0xff]
      %v912 = vld [vmem:[#allocation2 + $0xc8] sm:$0xff]
      %v913 = vld [vmem:[#allocation2 + $0xd0] sm:$0xff]
      %v914 = vld [vmem:[#allocation2 + $0xd8] sm:$0xff]
      %v915 = vld [vmem:[#allocation2 + $0xe0] sm:$0xff]
      %v916 = vld [vmem:[#allocation2 + $0xe8] sm:$0xff]
      %v917 = vld [vmem:[#allocation2 + $0xf0] sm:$0xff]
      %v918 = vld [vmem:[#allocation2 + $0xf8] sm:$0xff]
      %v919 = vld [vmem:[#allocation2 + $0x100] sm:$0xff]
      %v920 = vld [vmem:[#allocation2 + $0x108] sm:$0xff]
      %v921 = vld [vmem:[#allocation2 + $0x110] sm:$0xff]
      %v922 = vld [vmem:[#allocation2 + $0x118] sm:$0xff]
      %v923 = vld [vmem:[#allocation2 + $0x120] sm:$0xff]
      %v924 = vld [vmem:[#allocation2 + $0x128] sm:$0xff]
      %v925 = vld [vmem:[#allocation2 + $0x130] sm:$0xff]
      %v926 = vld [vmem:[#allocation2 + $0x138] sm:$0xff]
      %v927 = vld [vmem:[#allocation2 + $0x140] sm:$0xff]
      %v928 = vld [vmem:[#allocation2 + $0x148] sm:$0xff]
      %v929 = vld [vmem:[#allocation2 + $0x150] sm:$0xff]
      %v930 = vld [vmem:[#allocation2 + $0x158] sm:$0xff]
      %v931 = vld [vmem:[#allocation2 + $0x160] sm:$0xff]
      %v932 = vld [vmem:[#allocation2 + $0x168] sm:$0xff]
      %v933 = vld [vmem:[#allocation2 + $0x170] sm:$0xff]
      %v934 = vld [vmem:[#allocation2 + $0x178] sm:$0xff]
      %v935 = vld [vmem:[#allocation2 + $0x180] sm:$0xff]
      %v936 = vld [vmem:[#allocation2 + $0x188] sm:$0xff]
      %v937 = vld [vmem:[#allocation2 + $0x190] sm:$0xff]
      %v938 = vld [vmem:[#allocation2 + $0x198] sm:$0xff]
      %v939 = vld [vmem:[#allocation2 + $0x1a0] sm:$0xff]
      %v940 = vld [vmem:[#allocation2 + $0x1a8] sm:$0xff]
      %v941 = vld [vmem:[#allocation2 + $0x1b0] sm:$0xff]
      %v942 = vld [vmem:[#allocation2 + $0x1b8] sm:$0xff]
      %v943 = vld [vmem:[#allocation2 + $0x1c0] sm:$0xff]
      %v944 = vld [vmem:[#allocation2 + $0x1c8] sm:$0xff]
      %v945 = vld [vmem:[#allocation2 + $0x1d0] sm:$0xff]
      %v946 = vld [vmem:[#allocation2 + $0x1d8] sm:$0xff]
      %v947 = vld [vmem:[#allocation2 + $0x1e0] sm:$0xff]
      %v948 = vld [vmem:[#allocation2 + $0x1e8] sm:$0xff]
      %v949 = vld [vmem:[#allocation2 + $0x1f0] sm:$0xff]
      %v950 = vld [vmem:[#allocation2 + $0x1f8] sm:$0xff]
      %v951 = vld [vmem:[#allocation2 + $0x200] sm:$0xff]
      %v952 = vld [vmem:[#allocation2 + $0x208] sm:$0xff]
      %v953 = vld [vmem:[#allocation2 + $0x210] sm:$0xff]
      %v954 = vld [vmem:[#allocation2 + $0x218] sm:$0xff]
      %v955 = vld [vmem:[#allocation2 + $0x220] sm:$0xff]
      %v956 = vld [vmem:[#allocation2 + $0x228] sm:$0xff]
      %v957 = vld [vmem:[#allocation2 + $0x230] sm:$0xff]
      %v958 = vld [vmem:[#allocation2 + $0x238] sm:$0xff]
      %v959 = vld [vmem:[#allocation2 + $0x240] sm:$0xff]
      %v960 = vld [vmem:[#allocation2 + $0x248] sm:$0xff]
      %v961 = vld [vmem:[#allocation2 + $0x250] sm:$0xff]
      %v962 = vld [vmem:[#allocation2 + $0x258] sm:$0xff]
      %v963 = vld [vmem:[#allocation2 + $0x260] sm:$0xff]
      %v964 = vld [vmem:[#allocation2 + $0x268] sm:$0xff]
      %v965 = vld [vmem:[#allocation2 + $0x270] sm:$0xff]
      %v966 = vld [vmem:[#allocation2 + $0x278] sm:$0xff]
      %v967 = vld [vmem:[%s756] sm:$0x1f]
      %v968 = vld [vmem:[%s3] sm:$0xff]
      %v969 = vld [vmem:[%s3 + $0x8] sm:$0xff]
      %v970 = vld [vmem:[%s3 + $0x10] sm:$0xff]
      %v971 = vld [vmem:[%s3 + $0x18] sm:$0xff]
      %v972 = vld [vmem:[%s3 + $0x20] sm:$0xff]
      %v973 = vld [vmem:[%s3 + $0x28] sm:$0xff]
      %v974 = vld [vmem:[%s3 + $0x30] sm:$0xff]
      %v975 = vld [vmem:[%s3 + $0x38] sm:$0xff]
      %v976 = vld [vmem:[%s3 + $0x40] sm:$0xff]
      %v977 = vld [vmem:[%s3 + $0x48] sm:$0xff]
      %v978 = vld [vmem:[%s3 + $0x50] sm:$0xff]
      %v979 = vld [vmem:[%s3 + $0x58] sm:$0xff]
      %v980 = vld [vmem:[%s3 + $0x60] sm:$0xff]
      %v981 = vld [vmem:[%s3 + $0x68] sm:$0xff]
      %v982 = vld [vmem:[%s3 + $0x70] sm:$0xff]
      %v983 = vld [vmem:[%s3 + $0x78] sm:$0xff]
      %v984 = vld [vmem:[%s3 + $0x80] sm:$0xff]
      %v985 = vld [vmem:[%s3 + $0x88] sm:$0xff]
      %v986 = vld [vmem:[%s3 + $0x90] sm:$0xff]
      %v987 = vld [vmem:[%s3 + $0x98] sm:$0xff]
      %v988 = vld [vmem:[%s3 + $0xa0] sm:$0xff]
      %v989 = vld [vmem:[%s3 + $0xa8] sm:$0xff]
      %v990 = vld [vmem:[%s3 + $0xb0] sm:$0xff]
      %v991 = vld [vmem:[%s3 + $0xb8] sm:$0xff]
      %v992 = vld [vmem:[%s3 + $0xc0] sm:$0xff]
      %v993 = vld [vmem:[%s3 + $0xc8] sm:$0xff]
      %v994 = vld [vmem:[%s3 + $0xd0] sm:$0xff]
      %v995 = vld [vmem:[%s3 + $0xd8] sm:$0xff]
      %v996 = vld [vmem:[%s3 + $0xe0] sm:$0xff]
      %v997 = vld [vmem:[%s3 + $0xe8] sm:$0xff]
      %v998 = vld [vmem:[%s3 + $0xf0] sm:$0xff]
      %v999 = vld [vmem:[%s3 + $0xf8] sm:$0xff]
      %v1000 = vld [vmem:[%s3 + $0x100] sm:$0xff]
      %v1001 = vld [vmem:[%s3 + $0x108] sm:$0xff]
      %v1002 = vld [vmem:[%s3 + $0x110] sm:$0xff]
      %v1003 = vld [vmem:[%s3 + $0x118] sm:$0xff]
      %v1004 = vld [vmem:[%s3 + $0x120] sm:$0xff]
      %v1005 = vld [vmem:[%s3 + $0x128] sm:$0xff]
      %v1006 = vld [vmem:[%s3 + $0x130] sm:$0xff]
      %v1007 = vld [vmem:[%s3 + $0x138] sm:$0xff]
      %v1008 = vld [vmem:[%s3 + $0x140] sm:$0xff]
      %v1009 = vld [vmem:[%s3 + $0x148] sm:$0xff]
      %v1010 = vld [vmem:[%s3 + $0x150] sm:$0xff]
      %v1011 = vld [vmem:[%s3 + $0x158] sm:$0xff]
      %v1012 = vld [vmem:[%s3 + $0x160] sm:$0xff]
      %v1013 = vld [vmem:[%s3 + $0x168] sm:$0xff]
      %v1014 = vld [vmem:[%s3 + $0x170] sm:$0xff]
      %v1015 = vld [vmem:[%s3 + $0x178] sm:$0xff]
      %v1016 = vld [vmem:[%s3 + $0x180] sm:$0xff]
      %v1017 = vld [vmem:[%s3 + $0x188] sm:$0xff]
      %v1018 = vld [vmem:[%s3 + $0x190] sm:$0xff]
      %v1019 = vld [vmem:[%s3 + $0x198] sm:$0xff]
      %v1020 = vld [vmem:[%s3 + $0x1a0] sm:$0xff]
      %v1021 = vld [vmem:[%s3 + $0x1a8] sm:$0xff]
      %v1022 = vld [vmem:[%s3 + $0x1b0] sm:$0xff]
      %v1023 = vld [vmem:[%s3 + $0x1b8] sm:$0xff]
      %v1024 = vld [vmem:[%s3 + $0x1c0] sm:$0xff]
      %v1025 = vld [vmem:[%s3 + $0x1c8] sm:$0xff]
      %v1026 = vld [vmem:[%s3 + $0x1d0] sm:$0xff]
      %v1027 = vld [vmem:[%s3 + $0x1d8] sm:$0xff]
      %v1028 = vld [vmem:[%s3 + $0x1e0] sm:$0xff]
      %v1029 = vld [vmem:[%s3 + $0x1e8] sm:$0xff]
      %v1030 = vld [vmem:[%s3 + $0x1f0] sm:$0xff]
      %v1031 = vld [vmem:[%s3 + $0x1f8] sm:$0xff]
      %v1032 = vld [vmem:[%s3 + $0x200] sm:$0xff]
      %v1033 = vld [vmem:[%s3 + $0x208] sm:$0xff]
      %v1034 = vld [vmem:[%s3 + $0x210] sm:$0xff]
      %v1035 = vld [vmem:[%s3 + $0x218] sm:$0xff]
      %v1036 = vld [vmem:[%s3 + $0x220] sm:$0xff]
      %v1037 = vld [vmem:[%s3 + $0x228] sm:$0xff]
      %v1038 = vld [vmem:[%s3 + $0x230] sm:$0xff]
      %v1039 = vld [vmem:[%s3 + $0x238] sm:$0xff]
      %v1040 = vld [vmem:[%s3 + $0x240] sm:$0xff]
      %v1041 = vld [vmem:[%s3 + $0x248] sm:$0xff]
      %v1042 = vld [vmem:[%s3 + $0x250] sm:$0xff]
      %v1043 = vld [vmem:[%s3 + $0x258] sm:$0xff]
      %v1044 = vld [vmem:[%s3 + $0x260] sm:$0xff]
      %v1045 = vld [vmem:[%s3 + $0x268] sm:$0xff]
      %v1046 = vld [vmem:[%s3 + $0x270] sm:$0xff]
      %v1047 = vld [vmem:[%s3 + $0x278] sm:$0xff]
      %v1048 = vld [vmem:[%s4] sm:$0xff]
      %v1049 = vld [vmem:[%s4 + $0x8] sm:$0xff]
      %v1050 = vld [vmem:[%s4 + $0x10] sm:$0xff]
      %v1051 = vld [vmem:[%s4 + $0x18] sm:$0xff]
      %v1052 = vld [vmem:[%s4 + $0x20] sm:$0xff]
      %v1053 = vld [vmem:[%s4 + $0x28] sm:$0xff]
      %v1054 = vld [vmem:[%s4 + $0x30] sm:$0xff]
      %v1055 = vld [vmem:[%s4 + $0x38] sm:$0xff]
      %v1056 = vld [vmem:[%s4 + $0x40] sm:$0xff]
      %v1057 = vld [vmem:[%s4 + $0x48] sm:$0xff]
      %v1058 = vld [vmem:[%s4 + $0x50] sm:$0xff]
      %v1059 = vld [vmem:[%s4 + $0x58] sm:$0xff]
      %v1060 = vld [vmem:[%s4 + $0x60] sm:$0xff]
      %v1061 = vld [vmem:[%s4 + $0x68] sm:$0xff]
      %v1062 = vld [vmem:[%s4 + $0x70] sm:$0xff]
      %v1063 = vld [vmem:[%s4 + $0x78] sm:$0xff]
      %v1064 = vld [vmem:[%s4 + $0x80] sm:$0xff]
      %v1065 = vld [vmem:[%s4 + $0x88] sm:$0xff]
      %v1066 = vld [vmem:[%s4 + $0x90] sm:$0xff]
      %v1067 = vld [vmem:[%s4 + $0x98] sm:$0xff]
      %v1068 = vld [vmem:[%s4 + $0xa0] sm:$0xff]
      %v1069 = vld [vmem:[%s4 + $0xa8] sm:$0xff]
      %v1070 = vld [vmem:[%s4 + $0xb0] sm:$0xff]
      %v1071 = vld [vmem:[%s4 + $0xb8] sm:$0xff]
      %v1072 = vld [vmem:[%s4 + $0xc0] sm:$0xff]
      %v1073 = vld [vmem:[%s4 + $0xc8] sm:$0xff]
      %v1074 = vld [vmem:[%s4 + $0xd0] sm:$0xff]
      %v1075 = vld [vmem:[%s4 + $0xd8] sm:$0xff]
      %v1076 = vld [vmem:[%s4 + $0xe0] sm:$0xff]
      %v1077 = vld [vmem:[%s4 + $0xe8] sm:$0xff]
      %v1078 = vld [vmem:[%s4 + $0xf0] sm:$0xff]
      %v1079 = vld [vmem:[%s4 + $0xf8] sm:$0xff]
      %v1080 = vld [vmem:[%s4 + $0x100] sm:$0xff]
      %v1081 = vld [vmem:[%s4 + $0x108] sm:$0xff]
      %v1082 = vld [vmem:[%s4 + $0x110] sm:$0xff]
      %v1083 = vld [vmem:[%s4 + $0x118] sm:$0xff]
      %v1084 = vld [vmem:[%s4 + $0x120] sm:$0xff]
      %v1085 = vld [vmem:[%s4 + $0x128] sm:$0xff]
      %v1086 = vld [vmem:[%s4 + $0x130] sm:$0xff]
      %v1087 = vld [vmem:[%s4 + $0x138] sm:$0xff]
      %v1088 = vld [vmem:[%s4 + $0x140] sm:$0xff]
      %v1089 = vld [vmem:[%s4 + $0x148] sm:$0xff]
      %v1090 = vld [vmem:[%s4 + $0x150] sm:$0xff]
      %v1091 = vld [vmem:[%s4 + $0x158] sm:$0xff]
      %v1092 = vld [vmem:[%s4 + $0x160] sm:$0xff]
      %v1093 = vld [vmem:[%s4 + $0x168] sm:$0xff]
      %v1094 = vld [vmem:[%s4 + $0x170] sm:$0xff]
      %v1095 = vld [vmem:[%s4 + $0x178] sm:$0xff]
      %v1096 = vld [vmem:[%s4 + $0x180] sm:$0xff]
      %v1097 = vld [vmem:[%s4 + $0x188] sm:$0xff]
      %v1098 = vld [vmem:[%s4 + $0x190] sm:$0xff]
      %v1099 = vld [vmem:[%s4 + $0x198] sm:$0xff]
      %v1100 = vld [vmem:[%s4 + $0x1a0] sm:$0xff]
      %v1101 = vld [vmem:[%s4 + $0x1a8] sm:$0xff]
      %v1102 = vld [vmem:[%s4 + $0x1b0] sm:$0xff]
      %v1103 = vld [vmem:[%s4 + $0x1b8] sm:$0xff]
      %v1104 = vld [vmem:[%s4 + $0x1c0] sm:$0xff]
      %v1105 = vld [vmem:[%s4 + $0x1c8] sm:$0xff]
      %v1106 = vld [vmem:[%s4 + $0x1d0] sm:$0xff]
      %v1107 = vld [vmem:[%s4 + $0x1d8] sm:$0xff]
      %v1108 = vld [vmem:[%s4 + $0x1e0] sm:$0xff]
      %v1109 = vld [vmem:[%s4 + $0x1e8] sm:$0xff]
      %v1110 = vld [vmem:[%s4 + $0x1f0] sm:$0xff]
      %v1111 = vld [vmem:[%s4 + $0x1f8] sm:$0xff]
      %v1112 = vld [vmem:[%s4 + $0x200] sm:$0xff]
      %v1113 = vld [vmem:[%s4 + $0x208] sm:$0xff]
      %v1114 = vld [vmem:[%s4 + $0x210] sm:$0xff]
      %v1115 = vld [vmem:[%s4 + $0x218] sm:$0xff]
      %v1116 = vld [vmem:[%s4 + $0x220] sm:$0xff]
      %v1117 = vld [vmem:[%s4 + $0x228] sm:$0xff]
      %v1118 = vld [vmem:[%s4 + $0x230] sm:$0xff]
      %v1119 = vld [vmem:[%s4 + $0x238] sm:$0xff]
      %v1120 = vld [vmem:[%s4 + $0x240] sm:$0xff]
      %v1121 = vld [vmem:[%s4 + $0x248] sm:$0xff]
      %v1122 = vld [vmem:[%s4 + $0x250] sm:$0xff]
      %v1123 = vld [vmem:[%s4 + $0x258] sm:$0xff]
      %v1124 = vld [vmem:[%s4 + $0x260] sm:$0xff]
      %v1125 = vld [vmem:[%s4 + $0x268] sm:$0xff]
      %v1126 = vld [vmem:[%s4 + $0x270] sm:$0xff]
      %v1127 = vld [vmem:[%s4 + $0x278] sm:$0xff]
      %1129 = vset.pattern.permute.xlu0 0
      %1130 = vperm.xlu0 %1129, %v1048
      %v1131 = vpop.permute.xlu0 %1130
      %1134 = vset.pattern.permute.xlu0 0
      %1135 = vperm.xlu0 %1134, %v1049
      %v1136 = vpop.permute.xlu0 %1135
      %1139 = vset.pattern.permute.xlu0 0
      %1140 = vperm.xlu0 %1139, %v1050
      %v1141 = vpop.permute.xlu0 %1140
      %1144 = vset.pattern.permute.xlu0 0
      %1145 = vperm.xlu0 %1144, %v1051
      %v1146 = vpop.permute.xlu0 %1145
      %1149 = vset.pattern.permute.xlu0 0
      %1150 = vperm.xlu0 %1149, %v1052
      %v1151 = vpop.permute.xlu0 %1150
      %1154 = vset.pattern.permute.xlu0 0
      %1155 = vperm.xlu0 %1154, %v1053
      %v1156 = vpop.permute.xlu0 %1155
      %1159 = vset.pattern.permute.xlu0 0
      %1160 = vperm.xlu0 %1159, %v1054
      %v1161 = vpop.permute.xlu0 %1160
      %1164 = vset.pattern.permute.xlu0 0
      %1165 = vperm.xlu0 %1164, %v1055
      %v1166 = vpop.permute.xlu0 %1165
      %1169 = vset.pattern.permute.xlu0 0
      %1170 = vperm.xlu0 %1169, %v1056
      %v1171 = vpop.permute.xlu0 %1170
      %1174 = vset.pattern.permute.xlu0 0
      %1175 = vperm.xlu0 %1174, %v1057
      %v1176 = vpop.permute.xlu0 %1175
      %1179 = vset.pattern.permute.xlu0 0
      %1180 = vperm.xlu0 %1179, %v1058
      %v1181 = vpop.permute.xlu0 %1180
      %1184 = vset.pattern.permute.xlu0 0
      %1185 = vperm.xlu0 %1184, %v1059
      %v1186 = vpop.permute.xlu0 %1185
      %1189 = vset.pattern.permute.xlu0 0
      %1190 = vperm.xlu0 %1189, %v1060
      %v1191 = vpop.permute.xlu0 %1190
      %1194 = vset.pattern.permute.xlu0 0
      %1195 = vperm.xlu0 %1194, %v1061
      %v1196 = vpop.permute.xlu0 %1195
      %1199 = vset.pattern.permute.xlu0 0
      %1200 = vperm.xlu0 %1199, %v1062
      %v1201 = vpop.permute.xlu0 %1200
      %1204 = vset.pattern.permute.xlu0 0
      %1205 = vperm.xlu0 %1204, %v1063
      %v1206 = vpop.permute.xlu0 %1205
      %1209 = vset.pattern.permute.xlu0 0
      %1210 = vperm.xlu0 %1209, %v1064
      %v1211 = vpop.permute.xlu0 %1210
      %1214 = vset.pattern.permute.xlu0 0
      %1215 = vperm.xlu0 %1214, %v1065
      %v1216 = vpop.permute.xlu0 %1215
      %1219 = vset.pattern.permute.xlu0 0
      %1220 = vperm.xlu0 %1219, %v1066
      %v1221 = vpop.permute.xlu0 %1220
      %1224 = vset.pattern.permute.xlu0 0
      %1225 = vperm.xlu0 %1224, %v1067
      %v1226 = vpop.permute.xlu0 %1225
      %1229 = vset.pattern.permute.xlu0 0
      %1230 = vperm.xlu0 %1229, %v1068
      %v1231 = vpop.permute.xlu0 %1230
      %1234 = vset.pattern.permute.xlu0 0
      %1235 = vperm.xlu0 %1234, %v1069
      %v1236 = vpop.permute.xlu0 %1235
      %1239 = vset.pattern.permute.xlu0 0
      %1240 = vperm.xlu0 %1239, %v1070
      %v1241 = vpop.permute.xlu0 %1240
      %1244 = vset.pattern.permute.xlu0 0
      %1245 = vperm.xlu0 %1244, %v1071
      %v1246 = vpop.permute.xlu0 %1245
      %1249 = vset.pattern.permute.xlu0 0
      %1250 = vperm.xlu0 %1249, %v1072
      %v1251 = vpop.permute.xlu0 %1250
      %1254 = vset.pattern.permute.xlu0 0
      %1255 = vperm.xlu0 %1254, %v1073
      %v1256 = vpop.permute.xlu0 %1255
      %1259 = vset.pattern.permute.xlu0 0
      %1260 = vperm.xlu0 %1259, %v1074
      %v1261 = vpop.permute.xlu0 %1260
      %1264 = vset.pattern.permute.xlu0 0
      %1265 = vperm.xlu0 %1264, %v1075
      %v1266 = vpop.permute.xlu0 %1265
      %1269 = vset.pattern.permute.xlu0 0
      %1270 = vperm.xlu0 %1269, %v1076
      %v1271 = vpop.permute.xlu0 %1270
      %1274 = vset.pattern.permute.xlu0 0
      %1275 = vperm.xlu0 %1274, %v1077
      %v1276 = vpop.permute.xlu0 %1275
      %1279 = vset.pattern.permute.xlu0 0
      %1280 = vperm.xlu0 %1279, %v1078
      %v1281 = vpop.permute.xlu0 %1280
      %1284 = vset.pattern.permute.xlu0 0
      %1285 = vperm.xlu0 %1284, %v1079
      %v1286 = vpop.permute.xlu0 %1285
      %1289 = vset.pattern.permute.xlu0 0
      %1290 = vperm.xlu0 %1289, %v1080
      %v1291 = vpop.permute.xlu0 %1290
      %1294 = vset.pattern.permute.xlu0 0
      %1295 = vperm.xlu0 %1294, %v1081
      %v1296 = vpop.permute.xlu0 %1295
      %1299 = vset.pattern.permute.xlu0 0
      %1300 = vperm.xlu0 %1299, %v1082
      %v1301 = vpop.permute.xlu0 %1300
      %1304 = vset.pattern.permute.xlu0 0
      %1305 = vperm.xlu0 %1304, %v1083
      %v1306 = vpop.permute.xlu0 %1305
      %1309 = vset.pattern.permute.xlu0 0
      %1310 = vperm.xlu0 %1309, %v1084
      %v1311 = vpop.permute.xlu0 %1310
      %1314 = vset.pattern.permute.xlu0 0
      %1315 = vperm.xlu0 %1314, %v1085
      %v1316 = vpop.permute.xlu0 %1315
      %1319 = vset.pattern.permute.xlu0 0
      %1320 = vperm.xlu0 %1319, %v1086
      %v1321 = vpop.permute.xlu0 %1320
      %1324 = vset.pattern.permute.xlu0 0
      %1325 = vperm.xlu0 %1324, %v1087
      %v1326 = vpop.permute.xlu0 %1325
      %1329 = vset.pattern.permute.xlu0 0
      %1330 = vperm.xlu0 %1329, %v1088
      %v1331 = vpop.permute.xlu0 %1330
      %1334 = vset.pattern.permute.xlu0 0
      %1335 = vperm.xlu0 %1334, %v1089
      %v1336 = vpop.permute.xlu0 %1335
      %1339 = vset.pattern.permute.xlu0 0
      %1340 = vperm.xlu0 %1339, %v1090
      %v1341 = vpop.permute.xlu0 %1340
      %1344 = vset.pattern.permute.xlu0 0
      %1345 = vperm.xlu0 %1344, %v1091
      %v1346 = vpop.permute.xlu0 %1345
      %1349 = vset.pattern.permute.xlu0 0
      %1350 = vperm.xlu0 %1349, %v1092
      %v1351 = vpop.permute.xlu0 %1350
      %1354 = vset.pattern.permute.xlu0 0
      %1355 = vperm.xlu0 %1354, %v1093
      %v1356 = vpop.permute.xlu0 %1355
      %1359 = vset.pattern.permute.xlu0 0
      %1360 = vperm.xlu0 %1359, %v1094
      %v1361 = vpop.permute.xlu0 %1360
      %1364 = vset.pattern.permute.xlu0 0
      %1365 = vperm.xlu0 %1364, %v1095
      %v1366 = vpop.permute.xlu0 %1365
      %1369 = vset.pattern.permute.xlu0 0
      %1370 = vperm.xlu0 %1369, %v1096
      %v1371 = vpop.permute.xlu0 %1370
      %1374 = vset.pattern.permute.xlu0 0
      %1375 = vperm.xlu0 %1374, %v1097
      %v1376 = vpop.permute.xlu0 %1375
      %1379 = vset.pattern.permute.xlu0 0
      %1380 = vperm.xlu0 %1379, %v1098
      %v1381 = vpop.permute.xlu0 %1380
      %1384 = vset.pattern.permute.xlu0 0
      %1385 = vperm.xlu0 %1384, %v1099
      %v1386 = vpop.permute.xlu0 %1385
      %1389 = vset.pattern.permute.xlu0 0
      %1390 = vperm.xlu0 %1389, %v1100
      %v1391 = vpop.permute.xlu0 %1390
      %1394 = vset.pattern.permute.xlu0 0
      %1395 = vperm.xlu0 %1394, %v1101
      %v1396 = vpop.permute.xlu0 %1395
      %1399 = vset.pattern.permute.xlu0 0
      %1400 = vperm.xlu0 %1399, %v1102
      %v1401 = vpop.permute.xlu0 %1400
      %1404 = vset.pattern.permute.xlu0 0
      %1405 = vperm.xlu0 %1404, %v1103
      %v1406 = vpop.permute.xlu0 %1405
      %1409 = vset.pattern.permute.xlu0 0
      %1410 = vperm.xlu0 %1409, %v1104
      %v1411 = vpop.permute.xlu0 %1410
      %1414 = vset.pattern.permute.xlu0 0
      %1415 = vperm.xlu0 %1414, %v1105
      %v1416 = vpop.permute.xlu0 %1415
      %1419 = vset.pattern.permute.xlu0 0
      %1420 = vperm.xlu0 %1419, %v1106
      %v1421 = vpop.permute.xlu0 %1420
      %1424 = vset.pattern.permute.xlu0 0
      %1425 = vperm.xlu0 %1424, %v1107
      %v1426 = vpop.permute.xlu0 %1425
      %1429 = vset.pattern.permute.xlu0 0
      %1430 = vperm.xlu0 %1429, %v1108
      %v1431 = vpop.permute.xlu0 %1430
      %1434 = vset.pattern.permute.xlu0 0
      %1435 = vperm.xlu0 %1434, %v1109
      %v1436 = vpop.permute.xlu0 %1435
      %1439 = vset.pattern.permute.xlu0 0
      %1440 = vperm.xlu0 %1439, %v1110
      %v1441 = vpop.permute.xlu0 %1440
      %1444 = vset.pattern.permute.xlu0 0
      %1445 = vperm.xlu0 %1444, %v1111
      %v1446 = vpop.permute.xlu0 %1445
      %1449 = vset.pattern.permute.xlu0 0
      %1450 = vperm.xlu0 %1449, %v1112
      %v1451 = vpop.permute.xlu0 %1450
      %1454 = vset.pattern.permute.xlu0 0
      %1455 = vperm.xlu0 %1454, %v1113
      %v1456 = vpop.permute.xlu0 %1455
      %1459 = vset.pattern.permute.xlu0 0
      %1460 = vperm.xlu0 %1459, %v1114
      %v1461 = vpop.permute.xlu0 %1460
      %1464 = vset.pattern.permute.xlu0 0
      %1465 = vperm.xlu0 %1464, %v1115
      %v1466 = vpop.permute.xlu0 %1465
      %1469 = vset.pattern.permute.xlu0 0
      %1470 = vperm.xlu0 %1469, %v1116
      %v1471 = vpop.permute.xlu0 %1470
      %1474 = vset.pattern.permute.xlu0 0
      %1475 = vperm.xlu0 %1474, %v1117
      %v1476 = vpop.permute.xlu0 %1475
      %1479 = vset.pattern.permute.xlu0 0
      %1480 = vperm.xlu0 %1479, %v1118
      %v1481 = vpop.permute.xlu0 %1480
      %1484 = vset.pattern.permute.xlu0 0
      %1485 = vperm.xlu0 %1484, %v1119
      %v1486 = vpop.permute.xlu0 %1485
      %1489 = vset.pattern.permute.xlu0 0
      %1490 = vperm.xlu0 %1489, %v1120
      %v1491 = vpop.permute.xlu0 %1490
      %1494 = vset.pattern.permute.xlu0 0
      %1495 = vperm.xlu0 %1494, %v1121
      %v1496 = vpop.permute.xlu0 %1495
      %1499 = vset.pattern.permute.xlu0 0
      %1500 = vperm.xlu0 %1499, %v1122
      %v1501 = vpop.permute.xlu0 %1500
      %1504 = vset.pattern.permute.xlu0 0
      %1505 = vperm.xlu0 %1504, %v1123
      %v1506 = vpop.permute.xlu0 %1505
      %1509 = vset.pattern.permute.xlu0 0
      %1510 = vperm.xlu0 %1509, %v1124
      %v1511 = vpop.permute.xlu0 %1510
      %1514 = vset.pattern.permute.xlu0 0
      %1515 = vperm.xlu0 %1514, %v1125
      %v1516 = vpop.permute.xlu0 %1515
      %1519 = vset.pattern.permute.xlu0 0
      %1520 = vperm.xlu0 %1519, %v1126
      %v1521 = vpop.permute.xlu0 %1520
      %1524 = vset.pattern.permute.xlu0 0
      %1525 = vperm.xlu0 %1524, %v1127
      %v1526 = vpop.permute.xlu0 %1525
      %vm1528 = vcmask 39936
      %v1530 = vsel %vm1528, %v968, 0
      %v1533 = vsel %vm1528, %v969, 0
      %v1536 = vsel %vm1528, %v970, 0
      %v1539 = vsel %vm1528, %v971, 0
      %v1542 = vsel %vm1528, %v972, 0
      %v1545 = vsel %vm1528, %v973, 0
      %v1548 = vsel %vm1528, %v974, 0
      %v1551 = vsel %vm1528, %v975, 0
      %v1554 = vsel %vm1528, %v976, 0
      %v1557 = vsel %vm1528, %v977, 0
      %v1560 = vsel %vm1528, %v978, 0
      %v1563 = vsel %vm1528, %v979, 0
      %v1566 = vsel %vm1528, %v980, 0
      %v1569 = vsel %vm1528, %v981, 0
      %v1572 = vsel %vm1528, %v982, 0
      %v1575 = vsel %vm1528, %v983, 0
      %v1578 = vsel %vm1528, %v984, 0
      %v1581 = vsel %vm1528, %v985, 0
      %v1584 = vsel %vm1528, %v986, 0
      %v1587 = vsel %vm1528, %v987, 0
      %v1590 = vsel %vm1528, %v988, 0
      %v1593 = vsel %vm1528, %v989, 0
      %v1596 = vsel %vm1528, %v990, 0
      %v1599 = vsel %vm1528, %v991, 0
      %v1602 = vsel %vm1528, %v992, 0
      %v1605 = vsel %vm1528, %v993, 0
      %v1608 = vsel %vm1528, %v994, 0
      %v1611 = vsel %vm1528, %v995, 0
      %v1614 = vsel %vm1528, %v996, 0
      %v1617 = vsel %vm1528, %v997, 0
      %v1620 = vsel %vm1528, %v998, 0
      %v1623 = vsel %vm1528, %v999, 0
      %v1626 = vsel %vm1528, %v1000, 0
      %v1629 = vsel %vm1528, %v1001, 0
      %v1632 = vsel %vm1528, %v1002, 0
      %v1635 = vsel %vm1528, %v1003, 0
      %v1638 = vsel %vm1528, %v1004, 0
      %v1641 = vsel %vm1528, %v1005, 0
      %v1644 = vsel %vm1528, %v1006, 0
      %v1647 = vsel %vm1528, %v1007, 0
      %v1650 = vsel %vm1528, %v1008, 0
      %v1653 = vsel %vm1528, %v1009, 0
      %v1656 = vsel %vm1528, %v1010, 0
      %v1659 = vsel %vm1528, %v1011, 0
      %v1662 = vsel %vm1528, %v1012, 0
      %v1665 = vsel %vm1528, %v1013, 0
      %v1668 = vsel %vm1528, %v1014, 0
      %v1671 = vsel %vm1528, %v1015, 0
      %v1674 = vsel %vm1528, %v1016, 0
      %v1677 = vsel %vm1528, %v1017, 0
      %v1680 = vsel %vm1528, %v1018, 0
      %v1683 = vsel %vm1528, %v1019, 0
      %v1686 = vsel %vm1528, %v1020, 0
      %v1689 = vsel %vm1528, %v1021, 0
      %v1692 = vsel %vm1528, %v1022, 0
      %v1695 = vsel %vm1528, %v1023, 0
      %v1698 = vsel %vm1528, %v1024, 0
      %v1701 = vsel %vm1528, %v1025, 0
      %v1704 = vsel %vm1528, %v1026, 0
      %v1707 = vsel %vm1528, %v1027, 0
      %v1710 = vsel %vm1528, %v1028, 0
      %v1713 = vsel %vm1528, %v1029, 0
      %v1716 = vsel %vm1528, %v1030, 0
      %v1719 = vsel %vm1528, %v1031, 0
      %v1722 = vsel %vm1528, %v1032, 0
      %v1725 = vsel %vm1528, %v1033, 0
      %v1728 = vsel %vm1528, %v1034, 0
      %v1731 = vsel %vm1528, %v1035, 0
      %v1734 = vsel %vm1528, %v1036, 0
      %v1737 = vsel %vm1528, %v1037, 0
      %v1740 = vsel %vm1528, %v1038, 0
      %v1743 = vsel %vm1528, %v1039, 0
      %v1746 = vsel %vm1528, %v1040, 0
      %v1749 = vsel %vm1528, %v1041, 0
      %v1752 = vsel %vm1528, %v1042, 0
      %v1755 = vsel %vm1528, %v1043, 0
      %v1758 = vsel %vm1528, %v1044, 0
      %v1761 = vsel %vm1528, %v1045, 0
      %v1764 = vsel %vm1528, %v1046, 0
      %v1767 = vsel %vm1528, %v1047, 0
      %vm1769 = vcmask 1044480
      %v1771 = vsel %vm1769, %v967, 0
      %1773 = vmatprep.subr.mxu0 0.0
      %1774 = vmatpush1.msra.mxu0 0.0
      %1775 = vmatprep.subr.mxu0 0.0
      %1776 = vmatpush1.msra.mxu0 0.0
      %1777 = vmatprep.subr.mxu0 0.0
      %1778 = vmatpush1.msra.mxu0 0.0
      %1779 = vmatprep.subr.mxu0 0.0
      %1780 = vmatpush1.msra.mxu0 0.0
      %1781 = vmatprep.subr.mxu0 0.0
      %1782 = vmatpush1.msra.mxu0 0.0
      %1783 = vmatprep.subr.mxu0 0.0
      %1784 = vmatpush1.msra.mxu0 0.0
      %1785 = vmatprep.subr.mxu0 0.0
      %1786 = vmatpush1.msra.mxu0 0.0
      %1787 = vmatprep.subr.mxu0 0.0
      %1788 = vmatpush1.msra.mxu0 0.0
      %1789 = vmatprep.subr.mxu0 0.0
      %1790 = vmatpush1.msra.mxu0 0.0
      %1791 = vmatprep.subr.mxu0 0.0
      %1792 = vmatpush1.msra.mxu0 0.0
      %1793 = vmatprep.subr.mxu0 0.0
      %1794 = vmatpush1.msra.mxu0 0.0
      %1795 = vmatprep.subr.mxu0 0.0
      %1796 = vmatpush1.msra.mxu0 0.0
      %1797 = vmatprep.subr.mxu0 0.0
      %1798 = vmatpush1.msra.mxu0 0.0
      %1799 = vmatprep.subr.mxu0 0.0
      %1800 = vmatpush1.msra.mxu0 0.0
      %1801 = vmatprep.subr.mxu0 0.0
      %1802 = vmatpush1.msra.mxu0 0.0
      %1803 = vmatprep.subr.mxu0 0.0
      %1804 = vmatpush1.msra.mxu0 %v1771
      %1805 = vmatprep.subr.mxu0 0.0
      %1806 = vmatpush2.msra.mxu0 0.0
      %1807 = vmatprep.subr.mxu0 0.0
      %1808 = vmatpush2.msra.mxu0 0.0
      %1809 = vmatprep.subr.mxu0 0.0
      %1810 = vmatpush2.msra.mxu0 0.0
      %1811 = vmatprep.subr.mxu0 0.0
      %1812 = vmatpush2.msra.mxu0 0.0
      %1813 = vmatprep.subr.mxu0 0.0
      %1814 = vmatpush2.msra.mxu0 0.0
      %1815 = vmatprep.subr.mxu0 0.0
      %1816 = vmatpush2.msra.mxu0 0.0
      %1817 = vmatprep.subr.mxu0 0.0
      %1818 = vmatpush2.msra.mxu0 0.0
      %1819 = vmatprep.subr.mxu0 0.0
      %1820 = vmatpush2.msra.mxu0 0.0
      %1821 = vmatprep.subr.mxu0 0.0
      %1822 = vmatpush2.msra.mxu0 0.0
      %1823 = vmatprep.subr.mxu0 0.0
      %1824 = vmatpush2.msra.mxu0 0.0
      %1825 = vmatprep.subr.mxu0 0.0
      %1826 = vmatpush2.msra.mxu0 0.0
      %1827 = vmatprep.subr.mxu0 0.0
      %1828 = vmatpush2.msra.mxu0 0.0
      %1829 = vmatprep.subr.mxu0 0.0
      %1830 = vmatpush2.msra.mxu0 0.0
      %1831 = vmatprep.subr.mxu0 0.0
      %1832 = vmatpush2.msra.mxu0 0.0
      %1833 = vmatprep.subr.mxu0 0.0
      %1834 = vmatpush2.msra.mxu0 0.0
      %1835 = vmatprep.subr.mxu0 0.0
      %1836 = vmatpush2.msra.mxu0 0.0
      %1837 = vmatprep.mubr.f32.mxu0 0.0
      %1838 = vmatmul.mubr.f32.gmra.mxu0 %v1530
      %v1839 = vpop.f32.mrf.mxu0
      %v1840 = vadd.f32 %v1131, %v1839
      %v1841 = vpop.f32.mrf.mxu0
      %1842 = vmatprep.mubr.f32.mxu0 0.0
      %1843 = vmatmul.mubr.f32.gmra.mxu0 %v1533
      %v1844 = vpop.f32.mrf.mxu0
      %v1845 = vadd.f32 %v1136, %v1844
      %v1846 = vpop.f32.mrf.mxu0
      %1847 = vmatprep.mubr.f32.mxu0 0.0
      %1848 = vmatmul.mubr.f32.gmra.mxu0 %v1536
      %v1849 = vpop.f32.mrf.mxu0
      %v1850 = vadd.f32 %v1141, %v1849
      %v1851 = vpop.f32.mrf.mxu0
      %1852 = vmatprep.mubr.f32.mxu0 0.0
      %1853 = vmatmul.mubr.f32.gmra.mxu0 %v1539
      %v1854 = vpop.f32.mrf.mxu0
      %v1855 = vadd.f32 %v1146, %v1854
      %v1856 = vpop.f32.mrf.mxu0
      %1857 = vmatprep.mubr.f32.mxu0 0.0
      %1858 = vmatmul.mubr.f32.gmra.mxu0 %v1542
      %v1859 = vpop.f32.mrf.mxu0
      %v1860 = vadd.f32 %v1151, %v1859
      %v1861 = vpop.f32.mrf.mxu0
      %1862 = vmatprep.mubr.f32.mxu0 0.0
      %1863 = vmatmul.mubr.f32.gmra.mxu0 %v1545
      %v1864 = vpop.f32.mrf.mxu0
      %v1865 = vadd.f32 %v1156, %v1864
      %v1866 = vpop.f32.mrf.mxu0
      %1867 = vmatprep.mubr.f32.mxu0 0.0
      %1868 = vmatmul.mubr.f32.gmra.mxu0 %v1548
      %v1869 = vpop.f32.mrf.mxu0
      %v1870 = vadd.f32 %v1161, %v1869
      %v1871 = vpop.f32.mrf.mxu0
      %1872 = vmatprep.mubr.f32.mxu0 0.0
      %1873 = vmatmul.mubr.f32.gmra.mxu0 %v1551
      %v1874 = vpop.f32.mrf.mxu0
      %v1875 = vadd.f32 %v1166, %v1874
      %v1876 = vpop.f32.mrf.mxu0
      %1877 = vmatprep.mubr.f32.mxu0 0.0
      %1878 = vmatmul.mubr.f32.gmra.mxu0 %v1554
      %v1879 = vpop.f32.mrf.mxu0
      %v1880 = vadd.f32 %v1171, %v1879
      %v1881 = vpop.f32.mrf.mxu0
      %1882 = vmatprep.mubr.f32.mxu0 0.0
      %1883 = vmatmul.mubr.f32.gmra.mxu0 %v1557
      %v1884 = vpop.f32.mrf.mxu0
      %v1885 = vadd.f32 %v1176, %v1884
      %v1886 = vpop.f32.mrf.mxu0
      %1887 = vmatprep.mubr.f32.mxu0 0.0
      %1888 = vmatmul.mubr.f32.gmra.mxu0 %v1560
      %v1889 = vpop.f32.mrf.mxu0
      %v1890 = vadd.f32 %v1181, %v1889
      %v1891 = vpop.f32.mrf.mxu0
      %1892 = vmatprep.mubr.f32.mxu0 0.0
      %1893 = vmatmul.mubr.f32.gmra.mxu0 %v1563
      %v1894 = vpop.f32.mrf.mxu0
      %v1895 = vadd.f32 %v1186, %v1894
      %v1896 = vpop.f32.mrf.mxu0
      %1897 = vmatprep.mubr.f32.mxu0 0.0
      %1898 = vmatmul.mubr.f32.gmra.mxu0 %v1566
      %v1899 = vpop.f32.mrf.mxu0
      %v1900 = vadd.f32 %v1191, %v1899
      %v1901 = vpop.f32.mrf.mxu0
      %1902 = vmatprep.mubr.f32.mxu0 0.0
      %1903 = vmatmul.mubr.f32.gmra.mxu0 %v1569
      %v1904 = vpop.f32.mrf.mxu0
      %v1905 = vadd.f32 %v1196, %v1904
      %v1906 = vpop.f32.mrf.mxu0
      %1907 = vmatprep.mubr.f32.mxu0 0.0
      %1908 = vmatmul.mubr.f32.gmra.mxu0 %v1572
      %v1909 = vpop.f32.mrf.mxu0
      %v1910 = vadd.f32 %v1201, %v1909
      %v1911 = vpop.f32.mrf.mxu0
      %1912 = vmatprep.mubr.f32.mxu0 0.0
      %1913 = vmatmul.mubr.f32.gmra.mxu0 %v1575
      %v1914 = vpop.f32.mrf.mxu0
      %v1915 = vadd.f32 %v1206, %v1914
      %v1916 = vpop.f32.mrf.mxu0
      %1917 = vmatprep.mubr.f32.mxu0 0.0
      %1918 = vmatmul.mubr.f32.gmra.mxu0 %v1578
      %v1919 = vpop.f32.mrf.mxu0
      %v1920 = vadd.f32 %v1211, %v1919
      %v1921 = vpop.f32.mrf.mxu0
      %1922 = vmatprep.mubr.f32.mxu0 0.0
      %1923 = vmatmul.mubr.f32.gmra.mxu0 %v1581
      %v1924 = vpop.f32.mrf.mxu0
      %v1925 = vadd.f32 %v1216, %v1924
      %v1926 = vpop.f32.mrf.mxu0
      %1927 = vmatprep.mubr.f32.mxu0 0.0
      %1928 = vmatmul.mubr.f32.gmra.mxu0 %v1584
      %v1929 = vpop.f32.mrf.mxu0
      %v1930 = vadd.f32 %v1221, %v1929
      %v1931 = vpop.f32.mrf.mxu0
      %1932 = vmatprep.mubr.f32.mxu0 0.0
      %1933 = vmatmul.mubr.f32.gmra.mxu0 %v1587
      %v1934 = vpop.f32.mrf.mxu0
      %v1935 = vadd.f32 %v1226, %v1934
      %v1936 = vpop.f32.mrf.mxu0
      %1937 = vmatprep.mubr.f32.mxu0 0.0
      %1938 = vmatmul.mubr.f32.gmra.mxu0 %v1590
      %v1939 = vpop.f32.mrf.mxu0
      %v1940 = vadd.f32 %v1231, %v1939
      %v1941 = vpop.f32.mrf.mxu0
      %1942 = vmatprep.mubr.f32.mxu0 0.0
      %1943 = vmatmul.mubr.f32.gmra.mxu0 %v1593
      %v1944 = vpop.f32.mrf.mxu0
      %v1945 = vadd.f32 %v1236, %v1944
      %v1946 = vpop.f32.mrf.mxu0
      %1947 = vmatprep.mubr.f32.mxu0 0.0
      %1948 = vmatmul.mubr.f32.gmra.mxu0 %v1596
      %v1949 = vpop.f32.mrf.mxu0
      %v1950 = vadd.f32 %v1241, %v1949
      %v1951 = vpop.f32.mrf.mxu0
      %1952 = vmatprep.mubr.f32.mxu0 0.0
      %1953 = vmatmul.mubr.f32.gmra.mxu0 %v1599
      %v1954 = vpop.f32.mrf.mxu0
      %v1955 = vadd.f32 %v1246, %v1954
      %v1956 = vpop.f32.mrf.mxu0
      %1957 = vmatprep.mubr.f32.mxu0 0.0
      %1958 = vmatmul.mubr.f32.gmra.mxu0 %v1602
      %v1959 = vpop.f32.mrf.mxu0
      %v1960 = vadd.f32 %v1251, %v1959
      %v1961 = vpop.f32.mrf.mxu0
      %1962 = vmatprep.mubr.f32.mxu0 0.0
      %1963 = vmatmul.mubr.f32.gmra.mxu0 %v1605
      %v1964 = vpop.f32.mrf.mxu0
      %v1965 = vadd.f32 %v1256, %v1964
      %v1966 = vpop.f32.mrf.mxu0
      %1967 = vmatprep.mubr.f32.mxu0 0.0
      %1968 = vmatmul.mubr.f32.gmra.mxu0 %v1608
      %v1969 = vpop.f32.mrf.mxu0
      %v1970 = vadd.f32 %v1261, %v1969
      %v1971 = vpop.f32.mrf.mxu0
      %1972 = vmatprep.mubr.f32.mxu0 0.0
      %1973 = vmatmul.mubr.f32.gmra.mxu0 %v1611
      %v1974 = vpop.f32.mrf.mxu0
      %v1975 = vadd.f32 %v1266, %v1974
      %v1976 = vpop.f32.mrf.mxu0
      %1977 = vmatprep.mubr.f32.mxu0 0.0
      %1978 = vmatmul.mubr.f32.gmra.mxu0 %v1614
      %v1979 = vpop.f32.mrf.mxu0
      %v1980 = vadd.f32 %v1271, %v1979
      %v1981 = vpop.f32.mrf.mxu0
      %1982 = vmatprep.mubr.f32.mxu0 0.0
      %1983 = vmatmul.mubr.f32.gmra.mxu0 %v1617
      %v1984 = vpop.f32.mrf.mxu0
      %v1985 = vadd.f32 %v1276, %v1984
      %v1986 = vpop.f32.mrf.mxu0
      %1987 = vmatprep.mubr.f32.mxu0 0.0
      %1988 = vmatmul.mubr.f32.gmra.mxu0 %v1620
      %v1989 = vpop.f32.mrf.mxu0
      %v1990 = vadd.f32 %v1281, %v1989
      %v1991 = vpop.f32.mrf.mxu0
      %1992 = vmatprep.mubr.f32.mxu0 0.0
      %1993 = vmatmul.mubr.f32.gmra.mxu0 %v1623
      %v1994 = vpop.f32.mrf.mxu0
      %v1995 = vadd.f32 %v1286, %v1994
      %v1996 = vpop.f32.mrf.mxu0
      %1997 = vmatprep.mubr.f32.mxu0 0.0
      %1998 = vmatmul.mubr.f32.gmra.mxu0 %v1626
      %v1999 = vpop.f32.mrf.mxu0
      %v2000 = vadd.f32 %v1291, %v1999
      %v2001 = vpop.f32.mrf.mxu0
      %2002 = vmatprep.mubr.f32.mxu0 0.0
      %2003 = vmatmul.mubr.f32.gmra.mxu0 %v1629
      %v2004 = vpop.f32.mrf.mxu0
      %v2005 = vadd.f32 %v1296, %v2004
      %v2006 = vpop.f32.mrf.mxu0
      %2007 = vmatprep.mubr.f32.mxu0 0.0
      %2008 = vmatmul.mubr.f32.gmra.mxu0 %v1632
      %v2009 = vpop.f32.mrf.mxu0
      %v2010 = vadd.f32 %v1301, %v2009
      %v2011 = vpop.f32.mrf.mxu0
      %2012 = vmatprep.mubr.f32.mxu0 0.0
      %2013 = vmatmul.mubr.f32.gmra.mxu0 %v1635
      %v2014 = vpop.f32.mrf.mxu0
      %v2015 = vadd.f32 %v1306, %v2014
      %v2016 = vpop.f32.mrf.mxu0
      %2017 = vmatprep.mubr.f32.mxu0 0.0
      %2018 = vmatmul.mubr.f32.gmra.mxu0 %v1638
      %v2019 = vpop.f32.mrf.mxu0
      %v2020 = vadd.f32 %v1311, %v2019
      %v2021 = vpop.f32.mrf.mxu0
      %2022 = vmatprep.mubr.f32.mxu0 0.0
      %2023 = vmatmul.mubr.f32.gmra.mxu0 %v1641
      %v2024 = vpop.f32.mrf.mxu0
      %v2025 = vadd.f32 %v1316, %v2024
      %v2026 = vpop.f32.mrf.mxu0
      %2027 = vmatprep.mubr.f32.mxu0 0.0
      %2028 = vmatmul.mubr.f32.gmra.mxu0 %v1644
      %v2029 = vpop.f32.mrf.mxu0
      %v2030 = vadd.f32 %v1321, %v2029
      %v2031 = vpop.f32.mrf.mxu0
      %2032 = vmatprep.mubr.f32.mxu0 0.0
      %2033 = vmatmul.mubr.f32.gmra.mxu0 %v1647
      %v2034 = vpop.f32.mrf.mxu0
      %v2035 = vadd.f32 %v1326, %v2034
      %v2036 = vpop.f32.mrf.mxu0
      %2037 = vmatprep.mubr.f32.mxu0 0.0
      %2038 = vmatmul.mubr.f32.gmra.mxu0 %v1650
      %v2039 = vpop.f32.mrf.mxu0
      %v2040 = vadd.f32 %v1331, %v2039
      %v2041 = vpop.f32.mrf.mxu0
      %2042 = vmatprep.mubr.f32.mxu0 0.0
      %2043 = vmatmul.mubr.f32.gmra.mxu0 %v1653
      %v2044 = vpop.f32.mrf.mxu0
      %v2045 = vadd.f32 %v1336, %v2044
      %v2046 = vpop.f32.mrf.mxu0
      %2047 = vmatprep.mubr.f32.mxu0 0.0
      %2048 = vmatmul.mubr.f32.gmra.mxu0 %v1656
      %v2049 = vpop.f32.mrf.mxu0
      %v2050 = vadd.f32 %v1341, %v2049
      %v2051 = vpop.f32.mrf.mxu0
      %2052 = vmatprep.mubr.f32.mxu0 0.0
      %2053 = vmatmul.mubr.f32.gmra.mxu0 %v1659
      %v2054 = vpop.f32.mrf.mxu0
      %v2055 = vadd.f32 %v1346, %v2054
      %v2056 = vpop.f32.mrf.mxu0
      %2057 = vmatprep.mubr.f32.mxu0 0.0
      %2058 = vmatmul.mubr.f32.gmra.mxu0 %v1662
      %v2059 = vpop.f32.mrf.mxu0
      %v2060 = vadd.f32 %v1351, %v2059
      %v2061 = vpop.f32.mrf.mxu0
      %2062 = vmatprep.mubr.f32.mxu0 0.0
      %2063 = vmatmul.mubr.f32.gmra.mxu0 %v1665
      %v2064 = vpop.f32.mrf.mxu0
      %v2065 = vadd.f32 %v1356, %v2064
      %v2066 = vpop.f32.mrf.mxu0
      %2067 = vmatprep.mubr.f32.mxu0 0.0
      %2068 = vmatmul.mubr.f32.gmra.mxu0 %v1668
      %v2069 = vpop.f32.mrf.mxu0
      %v2070 = vadd.f32 %v1361, %v2069
      %v2071 = vpop.f32.mrf.mxu0
      %2072 = vmatprep.mubr.f32.mxu0 0.0
      %2073 = vmatmul.mubr.f32.gmra.mxu0 %v1671
      %v2074 = vpop.f32.mrf.mxu0
      %v2075 = vadd.f32 %v1366, %v2074
      %v2076 = vpop.f32.mrf.mxu0
      %2077 = vmatprep.mubr.f32.mxu0 0.0
      %2078 = vmatmul.mubr.f32.gmra.mxu0 %v1674
      %v2079 = vpop.f32.mrf.mxu0
      %v2080 = vadd.f32 %v1371, %v2079
      %v2081 = vpop.f32.mrf.mxu0
      %2082 = vmatprep.mubr.f32.mxu0 0.0
      %2083 = vmatmul.mubr.f32.gmra.mxu0 %v1677
      %v2084 = vpop.f32.mrf.mxu0
      %v2085 = vadd.f32 %v1376, %v2084
      %v2086 = vpop.f32.mrf.mxu0
      %2087 = vmatprep.mubr.f32.mxu0 0.0
      %2088 = vmatmul.mubr.f32.gmra.mxu0 %v1680
      %v2089 = vpop.f32.mrf.mxu0
      %v2090 = vadd.f32 %v1381, %v2089
      %v2091 = vpop.f32.mrf.mxu0
      %2092 = vmatprep.mubr.f32.mxu0 0.0
      %2093 = vmatmul.mubr.f32.gmra.mxu0 %v1683
      %v2094 = vpop.f32.mrf.mxu0
      %v2095 = vadd.f32 %v1386, %v2094
      %v2096 = vpop.f32.mrf.mxu0
      %2097 = vmatprep.mubr.f32.mxu0 0.0
      %2098 = vmatmul.mubr.f32.gmra.mxu0 %v1686
      %v2099 = vpop.f32.mrf.mxu0
      %v2100 = vadd.f32 %v1391, %v2099
      %v2101 = vpop.f32.mrf.mxu0
      %2102 = vmatprep.mubr.f32.mxu0 0.0
      %2103 = vmatmul.mubr.f32.gmra.mxu0 %v1689
      %v2104 = vpop.f32.mrf.mxu0
      %v2105 = vadd.f32 %v1396, %v2104
      %v2106 = vpop.f32.mrf.mxu0
      %2107 = vmatprep.mubr.f32.mxu0 0.0
      %2108 = vmatmul.mubr.f32.gmra.mxu0 %v1692
      %v2109 = vpop.f32.mrf.mxu0
      %v2110 = vadd.f32 %v1401, %v2109
      %v2111 = vpop.f32.mrf.mxu0
      %2112 = vmatprep.mubr.f32.mxu0 0.0
      %2113 = vmatmul.mubr.f32.gmra.mxu0 %v1695
      %v2114 = vpop.f32.mrf.mxu0
      %v2115 = vadd.f32 %v1406, %v2114
      %v2116 = vpop.f32.mrf.mxu0
      %2117 = vmatprep.mubr.f32.mxu0 0.0
      %2118 = vmatmul.mubr.f32.gmra.mxu0 %v1698
      %v2119 = vpop.f32.mrf.mxu0
      %v2120 = vadd.f32 %v1411, %v2119
      %v2121 = vpop.f32.mrf.mxu0
      %2122 = vmatprep.mubr.f32.mxu0 0.0
      %2123 = vmatmul.mubr.f32.gmra.mxu0 %v1701
      %v2124 = vpop.f32.mrf.mxu0
      %v2125 = vadd.f32 %v1416, %v2124
      %v2126 = vpop.f32.mrf.mxu0
      %2127 = vmatprep.mubr.f32.mxu0 0.0
      %2128 = vmatmul.mubr.f32.gmra.mxu0 %v1704
      %v2129 = vpop.f32.mrf.mxu0
      %v2130 = vadd.f32 %v1421, %v2129
      %v2131 = vpop.f32.mrf.mxu0
      %2132 = vmatprep.mubr.f32.mxu0 0.0
      %2133 = vmatmul.mubr.f32.gmra.mxu0 %v1707
      %v2134 = vpop.f32.mrf.mxu0
      %v2135 = vadd.f32 %v1426, %v2134
      %v2136 = vpop.f32.mrf.mxu0
      %2137 = vmatprep.mubr.f32.mxu0 0.0
      %2138 = vmatmul.mubr.f32.gmra.mxu0 %v1710
      %v2139 = vpop.f32.mrf.mxu0
      %v2140 = vadd.f32 %v1431, %v2139
      %v2141 = vpop.f32.mrf.mxu0
      %2142 = vmatprep.mubr.f32.mxu0 0.0
      %2143 = vmatmul.mubr.f32.gmra.mxu0 %v1713
      %v2144 = vpop.f32.mrf.mxu0
      %v2145 = vadd.f32 %v1436, %v2144
      %v2146 = vpop.f32.mrf.mxu0
      %2147 = vmatprep.mubr.f32.mxu0 0.0
      %2148 = vmatmul.mubr.f32.gmra.mxu0 %v1716
      %v2149 = vpop.f32.mrf.mxu0
      %v2150 = vadd.f32 %v1441, %v2149
      %v2151 = vpop.f32.mrf.mxu0
      %2152 = vmatprep.mubr.f32.mxu0 0.0
      %2153 = vmatmul.mubr.f32.gmra.mxu0 %v1719
      %v2154 = vpop.f32.mrf.mxu0
      %v2155 = vadd.f32 %v1446, %v2154
      %v2156 = vpop.f32.mrf.mxu0
      %2157 = vmatprep.mubr.f32.mxu0 0.0
      %2158 = vmatmul.mubr.f32.gmra.mxu0 %v1722
      %v2159 = vpop.f32.mrf.mxu0
      %v2160 = vadd.f32 %v1451, %v2159
      %v2161 = vpop.f32.mrf.mxu0
      %2162 = vmatprep.mubr.f32.mxu0 0.0
      %2163 = vmatmul.mubr.f32.gmra.mxu0 %v1725
      %v2164 = vpop.f32.mrf.mxu0
      %v2165 = vadd.f32 %v1456, %v2164
      %v2166 = vpop.f32.mrf.mxu0
      %2167 = vmatprep.mubr.f32.mxu0 0.0
      %2168 = vmatmul.mubr.f32.gmra.mxu0 %v1728
      %v2169 = vpop.f32.mrf.mxu0
      %v2170 = vadd.f32 %v1461, %v2169
      %v2171 = vpop.f32.mrf.mxu0
      %2172 = vmatprep.mubr.f32.mxu0 0.0
      %2173 = vmatmul.mubr.f32.gmra.mxu0 %v1731
      %v2174 = vpop.f32.mrf.mxu0
      %v2175 = vadd.f32 %v1466, %v2174
      %v2176 = vpop.f32.mrf.mxu0
      %2177 = vmatprep.mubr.f32.mxu0 0.0
      %2178 = vmatmul.mubr.f32.gmra.mxu0 %v1734
      %v2179 = vpop.f32.mrf.mxu0
      %v2180 = vadd.f32 %v1471, %v2179
      %v2181 = vpop.f32.mrf.mxu0
      %2182 = vmatprep.mubr.f32.mxu0 0.0
      %2183 = vmatmul.mubr.f32.gmra.mxu0 %v1737
      %v2184 = vpop.f32.mrf.mxu0
      %v2185 = vadd.f32 %v1476, %v2184
      %v2186 = vpop.f32.mrf.mxu0
      %2187 = vmatprep.mubr.f32.mxu0 0.0
      %2188 = vmatmul.mubr.f32.gmra.mxu0 %v1740
      %v2189 = vpop.f32.mrf.mxu0
      %v2190 = vadd.f32 %v1481, %v2189
      %v2191 = vpop.f32.mrf.mxu0
      %2192 = vmatprep.mubr.f32.mxu0 0.0
      %2193 = vmatmul.mubr.f32.gmra.mxu0 %v1743
      %v2194 = vpop.f32.mrf.mxu0
      %v2195 = vadd.f32 %v1486, %v2194
      %v2196 = vpop.f32.mrf.mxu0
      %2197 = vmatprep.mubr.f32.mxu0 0.0
      %2198 = vmatmul.mubr.f32.gmra.mxu0 %v1746
      %v2199 = vpop.f32.mrf.mxu0
      %v2200 = vadd.f32 %v1491, %v2199
      %v2201 = vpop.f32.mrf.mxu0
      %2202 = vmatprep.mubr.f32.mxu0 0.0
      %2203 = vmatmul.mubr.f32.gmra.mxu0 %v1749
      %v2204 = vpop.f32.mrf.mxu0
      %v2205 = vadd.f32 %v1496, %v2204
      %v2206 = vpop.f32.mrf.mxu0
      %2207 = vmatprep.mubr.f32.mxu0 0.0
      %2208 = vmatmul.mubr.f32.gmra.mxu0 %v1752
      %v2209 = vpop.f32.mrf.mxu0
      %v2210 = vadd.f32 %v1501, %v2209
      %v2211 = vpop.f32.mrf.mxu0
      %2212 = vmatprep.mubr.f32.mxu0 0.0
      %2213 = vmatmul.mubr.f32.gmra.mxu0 %v1755
      %v2214 = vpop.f32.mrf.mxu0
      %v2215 = vadd.f32 %v1506, %v2214
      %v2216 = vpop.f32.mrf.mxu0
      %2217 = vmatprep.mubr.f32.mxu0 0.0
      %2218 = vmatmul.mubr.f32.gmra.mxu0 %v1758
      %v2219 = vpop.f32.mrf.mxu0
      %v2220 = vadd.f32 %v1511, %v2219
      %v2221 = vpop.f32.mrf.mxu0
      %2222 = vmatprep.mubr.f32.mxu0 0.0
      %2223 = vmatmul.mubr.f32.gmra.mxu0 %v1761
      %v2224 = vpop.f32.mrf.mxu0
      %v2225 = vadd.f32 %v1516, %v2224
      %v2226 = vpop.f32.mrf.mxu0
      %2227 = vmatprep.mubr.f32.mxu0 0.0
      %2228 = vmatmul.mubr.f32.gmra.mxu0 %v1764
      %v2229 = vpop.f32.mrf.mxu0
      %v2230 = vadd.f32 %v1521, %v2229
      %v2231 = vpop.f32.mrf.mxu0
      %2232 = vmatprep.mubr.f32.mxu0 0.0
      %2233 = vmatmul.mubr.f32.gmra.mxu0 %v1767
      %v2234 = vpop.f32.mrf.mxu0
      %v2235 = vadd.f32 %v1526, %v2234
      %v2236 = vpop.f32.mrf.mxu0
      %2237 = vdwg.mxu0
      %vm2238 = vcmp.gt.f32.partialorder %v1840, 0.0
      %vm2239 = vcmp.gt.f32.partialorder %v1845, 0.0
      %vm2240 = vcmp.gt.f32.partialorder %v1850, 0.0
      %vm2241 = vcmp.gt.f32.partialorder %v1855, 0.0
      %vm2242 = vcmp.gt.f32.partialorder %v1860, 0.0
      %vm2243 = vcmp.gt.f32.partialorder %v1865, 0.0
      %vm2244 = vcmp.gt.f32.partialorder %v1870, 0.0
      %vm2245 = vcmp.gt.f32.partialorder %v1875, 0.0
      %vm2246 = vcmp.gt.f32.partialorder %v1880, 0.0
      %vm2247 = vcmp.gt.f32.partialorder %v1885, 0.0
      %vm2248 = vcmp.gt.f32.partialorder %v1890, 0.0
      %vm2249 = vcmp.gt.f32.partialorder %v1895, 0.0
      %vm2250 = vcmp.gt.f32.partialorder %v1900, 0.0
      %vm2251 = vcmp.gt.f32.partialorder %v1905, 0.0
      %vm2252 = vcmp.gt.f32.partialorder %v1910, 0.0
      %vm2253 = vcmp.gt.f32.partialorder %v1915, 0.0
      %vm2254 = vcmp.gt.f32.partialorder %v1920, 0.0
      %vm2255 = vcmp.gt.f32.partialorder %v1925, 0.0
      %vm2256 = vcmp.gt.f32.partialorder %v1930, 0.0
      %vm2257 = vcmp.gt.f32.partialorder %v1935, 0.0
      %vm2258 = vcmp.gt.f32.partialorder %v1940, 0.0
      %vm2259 = vcmp.gt.f32.partialorder %v1945, 0.0
      %vm2260 = vcmp.gt.f32.partialorder %v1950, 0.0
      %vm2261 = vcmp.gt.f32.partialorder %v1955, 0.0
      %vm2262 = vcmp.gt.f32.partialorder %v1960, 0.0
      %vm2263 = vcmp.gt.f32.partialorder %v1965, 0.0
      %vm2264 = vcmp.gt.f32.partialorder %v1970, 0.0
      %vm2265 = vcmp.gt.f32.partialorder %v1975, 0.0
      %vm2266 = vcmp.gt.f32.partialorder %v1980, 0.0
      %vm2267 = vcmp.gt.f32.partialorder %v1985, 0.0
      %vm2268 = vcmp.gt.f32.partialorder %v1990, 0.0
      %vm2269 = vcmp.gt.f32.partialorder %v1995, 0.0
      %vm2270 = vcmp.gt.f32.partialorder %v2000, 0.0
      %vm2271 = vcmp.gt.f32.partialorder %v2005, 0.0
      %vm2272 = vcmp.gt.f32.partialorder %v2010, 0.0
      %vm2273 = vcmp.gt.f32.partialorder %v2015, 0.0
      %vm2274 = vcmp.gt.f32.partialorder %v2020, 0.0
      %vm2275 = vcmp.gt.f32.partialorder %v2025, 0.0
      %vm2276 = vcmp.gt.f32.partialorder %v2030, 0.0
      %vm2277 = vcmp.gt.f32.partialorder %v2035, 0.0
      %vm2278 = vcmp.gt.f32.partialorder %v2040, 0.0
      %vm2279 = vcmp.gt.f32.partialorder %v2045, 0.0
      %vm2280 = vcmp.gt.f32.partialorder %v2050, 0.0
      %vm2281 = vcmp.gt.f32.partialorder %v2055, 0.0
      %vm2282 = vcmp.gt.f32.partialorder %v2060, 0.0
      %vm2283 = vcmp.gt.f32.partialorder %v2065, 0.0
      %vm2284 = vcmp.gt.f32.partialorder %v2070, 0.0
      %vm2285 = vcmp.gt.f32.partialorder %v2075, 0.0
      %vm2286 = vcmp.gt.f32.partialorder %v2080, 0.0
      %vm2287 = vcmp.gt.f32.partialorder %v2085, 0.0
      %vm2288 = vcmp.gt.f32.partialorder %v2090, 0.0
      %vm2289 = vcmp.gt.f32.partialorder %v2095, 0.0
      %vm2290 = vcmp.gt.f32.partialorder %v2100, 0.0
      %vm2291 = vcmp.gt.f32.partialorder %v2105, 0.0
      %vm2292 = vcmp.gt.f32.partialorder %v2110, 0.0
      %vm2293 = vcmp.gt.f32.partialorder %v2115, 0.0
      %vm2294 = vcmp.gt.f32.partialorder %v2120, 0.0
      %vm2295 = vcmp.gt.f32.partialorder %v2125, 0.0
      %vm2296 = vcmp.gt.f32.partialorder %v2130, 0.0
      %vm2297 = vcmp.gt.f32.partialorder %v2135, 0.0
      %vm2298 = vcmp.gt.f32.partialorder %v2140, 0.0
      %vm2299 = vcmp.gt.f32.partialorder %v2145, 0.0
      %vm2300 = vcmp.gt.f32.partialorder %v2150, 0.0
      %vm2301 = vcmp.gt.f32.partialorder %v2155, 0.0
      %vm2302 = vcmp.gt.f32.partialorder %v2160, 0.0
      %vm2303 = vcmp.gt.f32.partialorder %v2165, 0.0
      %vm2304 = vcmp.gt.f32.partialorder %v2170, 0.0
      %vm2305 = vcmp.gt.f32.partialorder %v2175, 0.0
      %vm2306 = vcmp.gt.f32.partialorder %v2180, 0.0
      %vm2307 = vcmp.gt.f32.partialorder %v2185, 0.0
      %vm2308 = vcmp.gt.f32.partialorder %v2190, 0.0
      %vm2309 = vcmp.gt.f32.partialorder %v2195, 0.0
      %vm2310 = vcmp.gt.f32.partialorder %v2200, 0.0
      %vm2311 = vcmp.gt.f32.partialorder %v2205, 0.0
      %vm2312 = vcmp.gt.f32.partialorder %v2210, 0.0
      %vm2313 = vcmp.gt.f32.partialorder %v2215, 0.0
      %vm2314 = vcmp.gt.f32.partialorder %v2220, 0.0
      %vm2315 = vcmp.gt.f32.partialorder %v2225, 0.0
      %vm2316 = vcmp.gt.f32.partialorder %v2230, 0.0
      %vm2317 = vcmp.gt.f32.partialorder %v2235, 0.0
      %v2318 = vmul.f32 %v1840, 0.01
      %v2319 = vmul.f32 %v1845, 0.01
      %v2320 = vmul.f32 %v1850, 0.01
      %v2321 = vmul.f32 %v1855, 0.01
      %v2322 = vmul.f32 %v1860, 0.01
      %v2323 = vmul.f32 %v1865, 0.01
      %v2324 = vmul.f32 %v1870, 0.01
      %v2325 = vmul.f32 %v1875, 0.01
      %v2326 = vmul.f32 %v1880, 0.01
      %v2327 = vmul.f32 %v1885, 0.01
      %v2328 = vmul.f32 %v1890, 0.01
      %v2329 = vmul.f32 %v1895, 0.01
      %v2330 = vmul.f32 %v1900, 0.01
      %v2331 = vmul.f32 %v1905, 0.01
      %v2332 = vmul.f32 %v1910, 0.01
      %v2333 = vmul.f32 %v1915, 0.01
      %v2334 = vmul.f32 %v1920, 0.01
      %v2335 = vmul.f32 %v1925, 0.01
      %v2336 = vmul.f32 %v1930, 0.01
      %v2337 = vmul.f32 %v1935, 0.01
      %v2338 = vmul.f32 %v1940, 0.01
      %v2339 = vmul.f32 %v1945, 0.01
      %v2340 = vmul.f32 %v1950, 0.01
      %v2341 = vmul.f32 %v1955, 0.01
      %v2342 = vmul.f32 %v1960, 0.01
      %v2343 = vmul.f32 %v1965, 0.01
      %v2344 = vmul.f32 %v1970, 0.01
      %v2345 = vmul.f32 %v1975, 0.01
      %v2346 = vmul.f32 %v1980, 0.01
      %v2347 = vmul.f32 %v1985, 0.01
      %v2348 = vmul.f32 %v1990, 0.01
      %v2349 = vmul.f32 %v1995, 0.01
      %v2350 = vmul.f32 %v2000, 0.01
      %v2351 = vmul.f32 %v2005, 0.01
      %v2352 = vmul.f32 %v2010, 0.01
      %v2353 = vmul.f32 %v2015, 0.01
      %v2354 = vmul.f32 %v2020, 0.01
      %v2355 = vmul.f32 %v2025, 0.01
      %v2356 = vmul.f32 %v2030, 0.01
      %v2357 = vmul.f32 %v2035, 0.01
      %v2358 = vmul.f32 %v2040, 0.01
      %v2359 = vmul.f32 %v2045, 0.01
      %v2360 = vmul.f32 %v2050, 0.01
      %v2361 = vmul.f32 %v2055, 0.01
      %v2362 = vmul.f32 %v2060, 0.01
      %v2363 = vmul.f32 %v2065, 0.01
      %v2364 = vmul.f32 %v2070, 0.01
      %v2365 = vmul.f32 %v2075, 0.01
      %v2366 = vmul.f32 %v2080, 0.01
      %v2367 = vmul.f32 %v2085, 0.01
      %v2368 = vmul.f32 %v2090, 0.01
      %v2369 = vmul.f32 %v2095, 0.01
      %v2370 = vmul.f32 %v2100, 0.01
      %v2371 = vmul.f32 %v2105, 0.01
      %v2372 = vmul.f32 %v2110, 0.01
      %v2373 = vmul.f32 %v2115, 0.01
      %v2374 = vmul.f32 %v2120, 0.01
      %v2375 = vmul.f32 %v2125, 0.01
      %v2376 = vmul.f32 %v2130, 0.01
      %v2377 = vmul.f32 %v2135, 0.01
      %v2378 = vmul.f32 %v2140, 0.01
      %v2379 = vmul.f32 %v2145, 0.01
      %v2380 = vmul.f32 %v2150, 0.01
      %v2381 = vmul.f32 %v2155, 0.01
      %v2382 = vmul.f32 %v2160, 0.01
      %v2383 = vmul.f32 %v2165, 0.01
      %v2384 = vmul.f32 %v2170, 0.01
      %v2385 = vmul.f32 %v2175, 0.01
      %v2386 = vmul.f32 %v2180, 0.01
      %v2387 = vmul.f32 %v2185, 0.01
      %v2388 = vmul.f32 %v2190, 0.01
      %v2389 = vmul.f32 %v2195, 0.01
      %v2390 = vmul.f32 %v2200, 0.01
      %v2391 = vmul.f32 %v2205, 0.01
      %v2392 = vmul.f32 %v2210, 0.01
      %v2393 = vmul.f32 %v2215, 0.01
      %v2394 = vmul.f32 %v2220, 0.01
      %v2395 = vmul.f32 %v2225, 0.01
      %v2396 = vmul.f32 %v2230, 0.01
      %v2397 = vmul.f32 %v2235, 0.01
      %v2398 = vsel %vm2238, %v1840, %v2318
      %v2399 = vsel %vm2239, %v1845, %v2319
      %v2400 = vsel %vm2240, %v1850, %v2320
      %v2401 = vsel %vm2241, %v1855, %v2321
      %v2402 = vsel %vm2242, %v1860, %v2322
      %v2403 = vsel %vm2243, %v1865, %v2323
      %v2404 = vsel %vm2244, %v1870, %v2324
      %v2405 = vsel %vm2245, %v1875, %v2325
      %v2406 = vsel %vm2246, %v1880, %v2326
      %v2407 = vsel %vm2247, %v1885, %v2327
      %v2408 = vsel %vm2248, %v1890, %v2328
      %v2409 = vsel %vm2249, %v1895, %v2329
      %v2410 = vsel %vm2250, %v1900, %v2330
      %v2411 = vsel %vm2251, %v1905, %v2331
      %v2412 = vsel %vm2252, %v1910, %v2332
      %v2413 = vsel %vm2253, %v1915, %v2333
      %v2414 = vsel %vm2254, %v1920, %v2334
      %v2415 = vsel %vm2255, %v1925, %v2335
      %v2416 = vsel %vm2256, %v1930, %v2336
      %v2417 = vsel %vm2257, %v1935, %v2337
      %v2418 = vsel %vm2258, %v1940, %v2338
      %v2419 = vsel %vm2259, %v1945, %v2339
      %v2420 = vsel %vm2260, %v1950, %v2340
      %v2421 = vsel %vm2261, %v1955, %v2341
      %v2422 = vsel %vm2262, %v1960, %v2342
      %v2423 = vsel %vm2263, %v1965, %v2343
      %v2424 = vsel %vm2264, %v1970, %v2344
      %v2425 = vsel %vm2265, %v1975, %v2345
      %v2426 = vsel %vm2266, %v1980, %v2346
      %v2427 = vsel %vm2267, %v1985, %v2347
      %v2428 = vsel %vm2268, %v1990, %v2348
      %v2429 = vsel %vm2269, %v1995, %v2349
      %v2430 = vsel %vm2270, %v2000, %v2350
      %v2431 = vsel %vm2271, %v2005, %v2351
      %v2432 = vsel %vm2272, %v2010, %v2352
      %v2433 = vsel %vm2273, %v2015, %v2353
      %v2434 = vsel %vm2274, %v2020, %v2354
      %v2435 = vsel %vm2275, %v2025, %v2355
      %v2436 = vsel %vm2276, %v2030, %v2356
      %v2437 = vsel %vm2277, %v2035, %v2357
      %v2438 = vsel %vm2278, %v2040, %v2358
      %v2439 = vsel %vm2279, %v2045, %v2359
      %v2440 = vsel %vm2280, %v2050, %v2360
      %v2441 = vsel %vm2281, %v2055, %v2361
      %v2442 = vsel %vm2282, %v2060, %v2362
      %v2443 = vsel %vm2283, %v2065, %v2363
      %v2444 = vsel %vm2284, %v2070, %v2364
      %v2445 = vsel %vm2285, %v2075, %v2365
      %v2446 = vsel %vm2286, %v2080, %v2366
      %v2447 = vsel %vm2287, %v2085, %v2367
      %v2448 = vsel %vm2288, %v2090, %v2368
      %v2449 = vsel %vm2289, %v2095, %v2369
      %v2450 = vsel %vm2290, %v2100, %v2370
      %v2451 = vsel %vm2291, %v2105, %v2371
      %v2452 = vsel %vm2292, %v2110, %v2372
      %v2453 = vsel %vm2293, %v2115, %v2373
      %v2454 = vsel %vm2294, %v2120, %v2374
      %v2455 = vsel %vm2295, %v2125, %v2375
      %v2456 = vsel %vm2296, %v2130, %v2376
      %v2457 = vsel %vm2297, %v2135, %v2377
      %v2458 = vsel %vm2298, %v2140, %v2378
      %v2459 = vsel %vm2299, %v2145, %v2379
      %v2460 = vsel %vm2300, %v2150, %v2380
      %v2461 = vsel %vm2301, %v2155, %v2381
      %v2462 = vsel %vm2302, %v2160, %v2382
      %v2463 = vsel %vm2303, %v2165, %v2383
      %v2464 = vsel %vm2304, %v2170, %v2384
      %v2465 = vsel %vm2305, %v2175, %v2385
      %v2466 = vsel %vm2306, %v2180, %v2386
      %v2467 = vsel %vm2307, %v2185, %v2387
      %v2468 = vsel %vm2308, %v2190, %v2388
      %v2469 = vsel %vm2309, %v2195, %v2389
      %v2470 = vsel %vm2310, %v2200, %v2390
      %v2471 = vsel %vm2311, %v2205, %v2391
      %v2472 = vsel %vm2312, %v2210, %v2392
      %v2473 = vsel %vm2313, %v2215, %v2393
      %v2474 = vsel %vm2314, %v2220, %v2394
      %v2475 = vsel %vm2315, %v2225, %v2395
      %v2476 = vsel %vm2316, %v2230, %v2396
      %v2477 = vsel %vm2317, %v2235, %v2397
      %vm2478 = vcmask 523264
      %v2479 = vsel %vm2478, %v2398, 0.0
      %2480 = vadd.xlane.f32.xlu0 %v2479
      %v2481 = vpop.xlane.xlu0 %2480
      %v2482 = vsel %vm2478, %v2399, 0.0
      %2483 = vadd.xlane.f32.xlu0 %v2482
      %v2484 = vpop.xlane.xlu0 %2483
      %v2485 = vsel %vm2478, %v2400, 0.0
      %2486 = vadd.xlane.f32.xlu0 %v2485
      %v2487 = vpop.xlane.xlu0 %2486
      %v2488 = vsel %vm2478, %v2401, 0.0
      %2489 = vadd.xlane.f32.xlu0 %v2488
      %v2490 = vpop.xlane.xlu0 %2489
      %v2491 = vsel %vm2478, %v2402, 0.0
      %2492 = vadd.xlane.f32.xlu0 %v2491
      %v2493 = vpop.xlane.xlu0 %2492
      %v2494 = vsel %vm2478, %v2403, 0.0
      %2495 = vadd.xlane.f32.xlu0 %v2494
      %v2496 = vpop.xlane.xlu0 %2495
      %v2497 = vsel %vm2478, %v2404, 0.0
      %2498 = vadd.xlane.f32.xlu0 %v2497
      %v2499 = vpop.xlane.xlu0 %2498
      %v2500 = vsel %vm2478, %v2405, 0.0
      %2501 = vadd.xlane.f32.xlu0 %v2500
      %v2502 = vpop.xlane.xlu0 %2501
      %v2503 = vsel %vm2478, %v2406, 0.0
      %2504 = vadd.xlane.f32.xlu0 %v2503
      %v2505 = vpop.xlane.xlu0 %2504
      %v2506 = vsel %vm2478, %v2407, 0.0
      %2507 = vadd.xlane.f32.xlu0 %v2506
      %v2508 = vpop.xlane.xlu0 %2507
      %v2509 = vsel %vm2478, %v2408, 0.0
      %2510 = vadd.xlane.f32.xlu0 %v2509
      %v2511 = vpop.xlane.xlu0 %2510
      %v2512 = vsel %vm2478, %v2409, 0.0
      %2513 = vadd.xlane.f32.xlu0 %v2512
      %v2514 = vpop.xlane.xlu0 %2513
      %v2515 = vsel %vm2478, %v2410, 0.0
      %2516 = vadd.xlane.f32.xlu0 %v2515
      %v2517 = vpop.xlane.xlu0 %2516
      %v2518 = vsel %vm2478, %v2411, 0.0
      %2519 = vadd.xlane.f32.xlu0 %v2518
      %v2520 = vpop.xlane.xlu0 %2519
      %v2521 = vsel %vm2478, %v2412, 0.0
      %2522 = vadd.xlane.f32.xlu0 %v2521
      %v2523 = vpop.xlane.xlu0 %2522
      %v2524 = vsel %vm2478, %v2413, 0.0
      %2525 = vadd.xlane.f32.xlu0 %v2524
      %v2526 = vpop.xlane.xlu0 %2525
      %v2527 = vsel %vm2478, %v2414, 0.0
      %2528 = vadd.xlane.f32.xlu0 %v2527
      %v2529 = vpop.xlane.xlu0 %2528
      %v2530 = vsel %vm2478, %v2415, 0.0
      %2531 = vadd.xlane.f32.xlu0 %v2530
      %v2532 = vpop.xlane.xlu0 %2531
      %v2533 = vsel %vm2478, %v2416, 0.0
      %2534 = vadd.xlane.f32.xlu0 %v2533
      %v2535 = vpop.xlane.xlu0 %2534
      %v2536 = vsel %vm2478, %v2417, 0.0
      %2537 = vadd.xlane.f32.xlu0 %v2536
      %v2538 = vpop.xlane.xlu0 %2537
      %v2539 = vsel %vm2478, %v2418, 0.0
      %2540 = vadd.xlane.f32.xlu0 %v2539
      %v2541 = vpop.xlane.xlu0 %2540
      %v2542 = vsel %vm2478, %v2419, 0.0
      %2543 = vadd.xlane.f32.xlu0 %v2542
      %v2544 = vpop.xlane.xlu0 %2543
      %v2545 = vsel %vm2478, %v2420, 0.0
      %2546 = vadd.xlane.f32.xlu0 %v2545
      %v2547 = vpop.xlane.xlu0 %2546
      %v2548 = vsel %vm2478, %v2421, 0.0
      %2549 = vadd.xlane.f32.xlu0 %v2548
      %v2550 = vpop.xlane.xlu0 %2549
      %v2551 = vsel %vm2478, %v2422, 0.0
      %2552 = vadd.xlane.f32.xlu0 %v2551
      %v2553 = vpop.xlane.xlu0 %2552
      %v2554 = vsel %vm2478, %v2423, 0.0
      %2555 = vadd.xlane.f32.xlu0 %v2554
      %v2556 = vpop.xlane.xlu0 %2555
      %v2557 = vsel %vm2478, %v2424, 0.0
      %2558 = vadd.xlane.f32.xlu0 %v2557
      %v2559 = vpop.xlane.xlu0 %2558
      %v2560 = vsel %vm2478, %v2425, 0.0
      %2561 = vadd.xlane.f32.xlu0 %v2560
      %v2562 = vpop.xlane.xlu0 %2561
      %v2563 = vsel %vm2478, %v2426, 0.0
      %2564 = vadd.xlane.f32.xlu0 %v2563
      %v2565 = vpop.xlane.xlu0 %2564
      %v2566 = vsel %vm2478, %v2427, 0.0
      %2567 = vadd.xlane.f32.xlu0 %v2566
      %v2568 = vpop.xlane.xlu0 %2567
      %v2569 = vsel %vm2478, %v2428, 0.0
      %2570 = vadd.xlane.f32.xlu0 %v2569
      %v2571 = vpop.xlane.xlu0 %2570
      %v2572 = vsel %vm2478, %v2429, 0.0
      %2573 = vadd.xlane.f32.xlu0 %v2572
      %v2574 = vpop.xlane.xlu0 %2573
      %v2575 = vsel %vm2478, %v2430, 0.0
      %2576 = vadd.xlane.f32.xlu0 %v2575
      %v2577 = vpop.xlane.xlu0 %2576
      %v2578 = vsel %vm2478, %v2431, 0.0
      %2579 = vadd.xlane.f32.xlu0 %v2578
      %v2580 = vpop.xlane.xlu0 %2579
      %v2581 = vsel %vm2478, %v2432, 0.0
      %2582 = vadd.xlane.f32.xlu0 %v2581
      %v2583 = vpop.xlane.xlu0 %2582
      %v2584 = vsel %vm2478, %v2433, 0.0
      %2585 = vadd.xlane.f32.xlu0 %v2584
      %v2586 = vpop.xlane.xlu0 %2585
      %v2587 = vsel %vm2478, %v2434, 0.0
      %2588 = vadd.xlane.f32.xlu0 %v2587
      %v2589 = vpop.xlane.xlu0 %2588
      %v2590 = vsel %vm2478, %v2435, 0.0
      %2591 = vadd.xlane.f32.xlu0 %v2590
      %v2592 = vpop.xlane.xlu0 %2591
      %v2593 = vsel %vm2478, %v2436, 0.0
      %2594 = vadd.xlane.f32.xlu0 %v2593
      %v2595 = vpop.xlane.xlu0 %2594
      %v2596 = vsel %vm2478, %v2437, 0.0
      %2597 = vadd.xlane.f32.xlu0 %v2596
      %v2598 = vpop.xlane.xlu0 %2597
      %v2599 = vsel %vm2478, %v2438, 0.0
      %2600 = vadd.xlane.f32.xlu0 %v2599
      %v2601 = vpop.xlane.xlu0 %2600
      %v2602 = vsel %vm2478, %v2439, 0.0
      %2603 = vadd.xlane.f32.xlu0 %v2602
      %v2604 = vpop.xlane.xlu0 %2603
      %v2605 = vsel %vm2478, %v2440, 0.0
      %2606 = vadd.xlane.f32.xlu0 %v2605
      %v2607 = vpop.xlane.xlu0 %2606
      %v2608 = vsel %vm2478, %v2441, 0.0
      %2609 = vadd.xlane.f32.xlu0 %v2608
      %v2610 = vpop.xlane.xlu0 %2609
      %v2611 = vsel %vm2478, %v2442, 0.0
      %2612 = vadd.xlane.f32.xlu0 %v2611
      %v2613 = vpop.xlane.xlu0 %2612
      %v2614 = vsel %vm2478, %v2443, 0.0
      %2615 = vadd.xlane.f32.xlu0 %v2614
      %v2616 = vpop.xlane.xlu0 %2615
      %v2617 = vsel %vm2478, %v2444, 0.0
      %2618 = vadd.xlane.f32.xlu0 %v2617
      %v2619 = vpop.xlane.xlu0 %2618
      %v2620 = vsel %vm2478, %v2445, 0.0
      %2621 = vadd.xlane.f32.xlu0 %v2620
      %v2622 = vpop.xlane.xlu0 %2621
      %v2623 = vsel %vm2478, %v2446, 0.0
      %2624 = vadd.xlane.f32.xlu0 %v2623
      %v2625 = vpop.xlane.xlu0 %2624
      %v2626 = vsel %vm2478, %v2447, 0.0
      %2627 = vadd.xlane.f32.xlu0 %v2626
      %v2628 = vpop.xlane.xlu0 %2627
      %v2629 = vsel %vm2478, %v2448, 0.0
      %2630 = vadd.xlane.f32.xlu0 %v2629
      %v2631 = vpop.xlane.xlu0 %2630
      %v2632 = vsel %vm2478, %v2449, 0.0
      %2633 = vadd.xlane.f32.xlu0 %v2632
      %v2634 = vpop.xlane.xlu0 %2633
      %v2635 = vsel %vm2478, %v2450, 0.0
      %2636 = vadd.xlane.f32.xlu0 %v2635
      %v2637 = vpop.xlane.xlu0 %2636
      %v2638 = vsel %vm2478, %v2451, 0.0
      %2639 = vadd.xlane.f32.xlu0 %v2638
      %v2640 = vpop.xlane.xlu0 %2639
      %v2641 = vsel %vm2478, %v2452, 0.0
      %2642 = vadd.xlane.f32.xlu0 %v2641
      %v2643 = vpop.xlane.xlu0 %2642
      %v2644 = vsel %vm2478, %v2453, 0.0
      %2645 = vadd.xlane.f32.xlu0 %v2644
      %v2646 = vpop.xlane.xlu0 %2645
      %v2647 = vsel %vm2478, %v2454, 0.0
      %2648 = vadd.xlane.f32.xlu0 %v2647
      %v2649 = vpop.xlane.xlu0 %2648
      %v2650 = vsel %vm2478, %v2455, 0.0
      %2651 = vadd.xlane.f32.xlu0 %v2650
      %v2652 = vpop.xlane.xlu0 %2651
      %v2653 = vsel %vm2478, %v2456, 0.0
      %2654 = vadd.xlane.f32.xlu0 %v2653
      %v2655 = vpop.xlane.xlu0 %2654
      %v2656 = vsel %vm2478, %v2457, 0.0
      %2657 = vadd.xlane.f32.xlu0 %v2656
      %v2658 = vpop.xlane.xlu0 %2657
      %v2659 = vsel %vm2478, %v2458, 0.0
      %2660 = vadd.xlane.f32.xlu0 %v2659
      %v2661 = vpop.xlane.xlu0 %2660
      %v2662 = vsel %vm2478, %v2459, 0.0
      %2663 = vadd.xlane.f32.xlu0 %v2662
      %v2664 = vpop.xlane.xlu0 %2663
      %v2665 = vsel %vm2478, %v2460, 0.0
      %2666 = vadd.xlane.f32.xlu0 %v2665
      %v2667 = vpop.xlane.xlu0 %2666
      %v2668 = vsel %vm2478, %v2461, 0.0
      %2669 = vadd.xlane.f32.xlu0 %v2668
      %v2670 = vpop.xlane.xlu0 %2669
      %v2671 = vsel %vm2478, %v2462, 0.0
      %2672 = vadd.xlane.f32.xlu0 %v2671
      %v2673 = vpop.xlane.xlu0 %2672
      %v2674 = vsel %vm2478, %v2463, 0.0
      %2675 = vadd.xlane.f32.xlu0 %v2674
      %v2676 = vpop.xlane.xlu0 %2675
      %v2677 = vsel %vm2478, %v2464, 0.0
      %2678 = vadd.xlane.f32.xlu0 %v2677
      %v2679 = vpop.xlane.xlu0 %2678
      %v2680 = vsel %vm2478, %v2465, 0.0
      %2681 = vadd.xlane.f32.xlu0 %v2680
      %v2682 = vpop.xlane.xlu0 %2681
      %v2683 = vsel %vm2478, %v2466, 0.0
      %2684 = vadd.xlane.f32.xlu0 %v2683
      %v2685 = vpop.xlane.xlu0 %2684
      %v2686 = vsel %vm2478, %v2467, 0.0
      %2687 = vadd.xlane.f32.xlu0 %v2686
      %v2688 = vpop.xlane.xlu0 %2687
      %v2689 = vsel %vm2478, %v2468, 0.0
      %2690 = vadd.xlane.f32.xlu0 %v2689
      %v2691 = vpop.xlane.xlu0 %2690
      %v2692 = vsel %vm2478, %v2469, 0.0
      %2693 = vadd.xlane.f32.xlu0 %v2692
      %v2694 = vpop.xlane.xlu0 %2693
      %v2695 = vsel %vm2478, %v2470, 0.0
      %2696 = vadd.xlane.f32.xlu0 %v2695
      %v2697 = vpop.xlane.xlu0 %2696
      %v2698 = vsel %vm2478, %v2471, 0.0
      %2699 = vadd.xlane.f32.xlu0 %v2698
      %v2700 = vpop.xlane.xlu0 %2699
      %v2701 = vsel %vm2478, %v2472, 0.0
      %2702 = vadd.xlane.f32.xlu0 %v2701
      %v2703 = vpop.xlane.xlu0 %2702
      %v2704 = vsel %vm2478, %v2473, 0.0
      %2705 = vadd.xlane.f32.xlu0 %v2704
      %v2706 = vpop.xlane.xlu0 %2705
      %v2707 = vsel %vm2478, %v2474, 0.0
      %2708 = vadd.xlane.f32.xlu0 %v2707
      %v2709 = vpop.xlane.xlu0 %2708
      %v2710 = vsel %vm2478, %v2475, 0.0
      %2711 = vadd.xlane.f32.xlu0 %v2710
      %v2712 = vpop.xlane.xlu0 %2711
      %v2713 = vsel %vm2478, %v2476, 0.0
      %2714 = vadd.xlane.f32.xlu0 %v2713
      %v2715 = vpop.xlane.xlu0 %2714
      %v2716 = vsel %vm2478, %v2477, 0.0
      %2717 = vadd.xlane.f32.xlu0 %v2716
      %v2718 = vpop.xlane.xlu0 %2717
      %v2719 = vlaneseq
      %v2720 = vand.u32 %v2719, 127
      %vm2721 = vcmp.eq.s32.totalorder %v2720, 0
      %v2722 = vsel %vm2721, %v2481, 0.0
      %v2723 = vsel %vm2721, %v2484, 0.0
      %v2724 = vsel %vm2721, %v2487, 0.0
      %v2725 = vsel %vm2721, %v2490, 0.0
      %v2726 = vsel %vm2721, %v2493, 0.0
      %v2727 = vsel %vm2721, %v2496, 0.0
      %v2728 = vsel %vm2721, %v2499, 0.0
      %v2729 = vsel %vm2721, %v2502, 0.0
      %v2730 = vsel %vm2721, %v2505, 0.0
      %v2731 = vsel %vm2721, %v2508, 0.0
      %v2732 = vsel %vm2721, %v2511, 0.0
      %v2733 = vsel %vm2721, %v2514, 0.0
      %v2734 = vsel %vm2721, %v2517, 0.0
      %v2735 = vsel %vm2721, %v2520, 0.0
      %v2736 = vsel %vm2721, %v2523, 0.0
      %v2737 = vsel %vm2721, %v2526, 0.0
      %v2738 = vsel %vm2721, %v2529, 0.0
      %v2739 = vsel %vm2721, %v2532, 0.0
      %v2740 = vsel %vm2721, %v2535, 0.0
      %v2741 = vsel %vm2721, %v2538, 0.0
      %v2742 = vsel %vm2721, %v2541, 0.0
      %v2743 = vsel %vm2721, %v2544, 0.0
      %v2744 = vsel %vm2721, %v2547, 0.0
      %v2745 = vsel %vm2721, %v2550, 0.0
      %v2746 = vsel %vm2721, %v2553, 0.0
      %v2747 = vsel %vm2721, %v2556, 0.0
      %v2748 = vsel %vm2721, %v2559, 0.0
      %v2749 = vsel %vm2721, %v2562, 0.0
      %v2750 = vsel %vm2721, %v2565, 0.0
      %v2751 = vsel %vm2721, %v2568, 0.0
      %v2752 = vsel %vm2721, %v2571, 0.0
      %v2753 = vsel %vm2721, %v2574, 0.0
      %v2754 = vsel %vm2721, %v2577, 0.0
      %v2755 = vsel %vm2721, %v2580, 0.0
      %v2756 = vsel %vm2721, %v2583, 0.0
      %v2757 = vsel %vm2721, %v2586, 0.0
      %v2758 = vsel %vm2721, %v2589, 0.0
      %v2759 = vsel %vm2721, %v2592, 0.0
      %v2760 = vsel %vm2721, %v2595, 0.0
      %v2761 = vsel %vm2721, %v2598, 0.0
      %v2762 = vsel %vm2721, %v2601, 0.0
      %v2763 = vsel %vm2721, %v2604, 0.0
      %v2764 = vsel %vm2721, %v2607, 0.0
      %v2765 = vsel %vm2721, %v2610, 0.0
      %v2766 = vsel %vm2721, %v2613, 0.0
      %v2767 = vsel %vm2721, %v2616, 0.0
      %v2768 = vsel %vm2721, %v2619, 0.0
      %v2769 = vsel %vm2721, %v2622, 0.0
      %v2770 = vsel %vm2721, %v2625, 0.0
      %v2771 = vsel %vm2721, %v2628, 0.0
      %v2772 = vsel %vm2721, %v2631, 0.0
      %v2773 = vsel %vm2721, %v2634, 0.0
      %v2774 = vsel %vm2721, %v2637, 0.0
      %v2775 = vsel %vm2721, %v2640, 0.0
      %v2776 = vsel %vm2721, %v2643, 0.0
      %v2777 = vsel %vm2721, %v2646, 0.0
      %v2778 = vsel %vm2721, %v2649, 0.0
      %v2779 = vsel %vm2721, %v2652, 0.0
      %v2780 = vsel %vm2721, %v2655, 0.0
      %v2781 = vsel %vm2721, %v2658, 0.0
      %v2782 = vsel %vm2721, %v2661, 0.0
      %v2783 = vsel %vm2721, %v2664, 0.0
      %v2784 = vsel %vm2721, %v2667, 0.0
      %v2785 = vsel %vm2721, %v2670, 0.0
      %v2786 = vsel %vm2721, %v2673, 0.0
      %v2787 = vsel %vm2721, %v2676, 0.0
      %v2788 = vsel %vm2721, %v2679, 0.0
      %v2789 = vsel %vm2721, %v2682, 0.0
      %v2790 = vsel %vm2721, %v2685, 0.0
      %v2791 = vsel %vm2721, %v2688, 0.0
      %v2792 = vsel %vm2721, %v2691, 0.0
      %v2793 = vsel %vm2721, %v2694, 0.0
      %v2794 = vsel %vm2721, %v2697, 0.0
      %v2795 = vsel %vm2721, %v2700, 0.0
      %v2796 = vsel %vm2721, %v2703, 0.0
      %v2797 = vsel %vm2721, %v2706, 0.0
      %v2798 = vsel %vm2721, %v2709, 0.0
      %v2799 = vsel %vm2721, %v2712, 0.0
      %v2800 = vsel %vm2721, %v2715, 0.0
      %v2801 = vsel %vm2721, %v2718, 0.0
      %v2802 = vadd.f32 %v2722, 0.0
      %v2803 = vadd.f32 %v2723, 0.0
      %v2804 = vadd.f32 %v2724, 0.0
      %v2805 = vadd.f32 %v2725, 0.0
      %v2806 = vadd.f32 %v2726, 0.0
      %v2807 = vadd.f32 %v2727, 0.0
      %v2808 = vadd.f32 %v2728, 0.0
      %v2809 = vadd.f32 %v2729, 0.0
      %v2810 = vadd.f32 %v2730, 0.0
      %v2811 = vadd.f32 %v2731, 0.0
      %v2812 = vadd.f32 %v2732, 0.0
      %v2813 = vadd.f32 %v2733, 0.0
      %v2814 = vadd.f32 %v2734, 0.0
      %v2815 = vadd.f32 %v2735, 0.0
      %v2816 = vadd.f32 %v2736, 0.0
      %v2817 = vadd.f32 %v2737, 0.0
      %v2818 = vadd.f32 %v2738, 0.0
      %v2819 = vadd.f32 %v2739, 0.0
      %v2820 = vadd.f32 %v2740, 0.0
      %v2821 = vadd.f32 %v2741, 0.0
      %v2822 = vadd.f32 %v2742, 0.0
      %v2823 = vadd.f32 %v2743, 0.0
      %v2824 = vadd.f32 %v2744, 0.0
      %v2825 = vadd.f32 %v2745, 0.0
      %v2826 = vadd.f32 %v2746, 0.0
      %v2827 = vadd.f32 %v2747, 0.0
      %v2828 = vadd.f32 %v2748, 0.0
      %v2829 = vadd.f32 %v2749, 0.0
      %v2830 = vadd.f32 %v2750, 0.0
      %v2831 = vadd.f32 %v2751, 0.0
      %v2832 = vadd.f32 %v2752, 0.0
      %v2833 = vadd.f32 %v2753, 0.0
      %v2834 = vadd.f32 %v2754, 0.0
      %v2835 = vadd.f32 %v2755, 0.0
      %v2836 = vadd.f32 %v2756, 0.0
      %v2837 = vadd.f32 %v2757, 0.0
      %v2838 = vadd.f32 %v2758, 0.0
      %v2839 = vadd.f32 %v2759, 0.0
      %v2840 = vadd.f32 %v2760, 0.0
      %v2841 = vadd.f32 %v2761, 0.0
      %v2842 = vadd.f32 %v2762, 0.0
      %v2843 = vadd.f32 %v2763, 0.0
      %v2844 = vadd.f32 %v2764, 0.0
      %v2845 = vadd.f32 %v2765, 0.0
      %v2846 = vadd.f32 %v2766, 0.0
      %v2847 = vadd.f32 %v2767, 0.0
      %v2848 = vadd.f32 %v2768, 0.0
      %v2849 = vadd.f32 %v2769, 0.0
      %v2850 = vadd.f32 %v2770, 0.0
      %v2851 = vadd.f32 %v2771, 0.0
      %v2852 = vadd.f32 %v2772, 0.0
      %v2853 = vadd.f32 %v2773, 0.0
      %v2854 = vadd.f32 %v2774, 0.0
      %v2855 = vadd.f32 %v2775, 0.0
      %v2856 = vadd.f32 %v2776, 0.0
      %v2857 = vadd.f32 %v2777, 0.0
      %v2858 = vadd.f32 %v2778, 0.0
      %v2859 = vadd.f32 %v2779, 0.0
      %v2860 = vadd.f32 %v2780, 0.0
      %v2861 = vadd.f32 %v2781, 0.0
      %v2862 = vadd.f32 %v2782, 0.0
      %v2863 = vadd.f32 %v2783, 0.0
      %v2864 = vadd.f32 %v2784, 0.0
      %v2865 = vadd.f32 %v2785, 0.0
      %v2866 = vadd.f32 %v2786, 0.0
      %v2867 = vadd.f32 %v2787, 0.0
      %v2868 = vadd.f32 %v2788, 0.0
      %v2869 = vadd.f32 %v2789, 0.0
      %v2870 = vadd.f32 %v2790, 0.0
      %v2871 = vadd.f32 %v2791, 0.0
      %v2872 = vadd.f32 %v2792, 0.0
      %v2873 = vadd.f32 %v2793, 0.0
      %v2874 = vadd.f32 %v2794, 0.0
      %v2875 = vadd.f32 %v2795, 0.0
      %v2876 = vadd.f32 %v2796, 0.0
      %v2877 = vadd.f32 %v2797, 0.0
      %v2878 = vadd.f32 %v2798, 0.0
      %v2879 = vadd.f32 %v2799, 0.0
      %v2880 = vadd.f32 %v2800, 0.0
      %v2881 = vadd.f32 %v2801, 0.0
      %v2882 = vadd.f32 %v887, %v2802
      %v2883 = vadd.f32 %v888, %v2803
      %v2884 = vadd.f32 %v889, %v2804
      %v2885 = vadd.f32 %v890, %v2805
      %v2886 = vadd.f32 %v891, %v2806
      %v2887 = vadd.f32 %v892, %v2807
      %v2888 = vadd.f32 %v893, %v2808
      %v2889 = vadd.f32 %v894, %v2809
      %v2890 = vadd.f32 %v895, %v2810
      %v2891 = vadd.f32 %v896, %v2811
      %v2892 = vadd.f32 %v897, %v2812
      %v2893 = vadd.f32 %v898, %v2813
      %v2894 = vadd.f32 %v899, %v2814
      %v2895 = vadd.f32 %v900, %v2815
      %v2896 = vadd.f32 %v901, %v2816
      %v2897 = vadd.f32 %v902, %v2817
      %v2898 = vadd.f32 %v903, %v2818
      %v2899 = vadd.f32 %v904, %v2819
      %v2900 = vadd.f32 %v905, %v2820
      %v2901 = vadd.f32 %v906, %v2821
      %v2902 = vadd.f32 %v907, %v2822
      %v2903 = vadd.f32 %v908, %v2823
      %v2904 = vadd.f32 %v909, %v2824
      %v2905 = vadd.f32 %v910, %v2825
      %v2906 = vadd.f32 %v911, %v2826
      %v2907 = vadd.f32 %v912, %v2827
      %v2908 = vadd.f32 %v913, %v2828
      %v2909 = vadd.f32 %v914, %v2829
      %v2910 = vadd.f32 %v915, %v2830
      %v2911 = vadd.f32 %v916, %v2831
      %v2912 = vadd.f32 %v917, %v2832
      %v2913 = vadd.f32 %v918, %v2833
      %v2914 = vadd.f32 %v919, %v2834
      %v2915 = vadd.f32 %v920, %v2835
      %v2916 = vadd.f32 %v921, %v2836
      %v2917 = vadd.f32 %v922, %v2837
      %v2918 = vadd.f32 %v923, %v2838
      %v2919 = vadd.f32 %v924, %v2839
      %v2920 = vadd.f32 %v925, %v2840
      %v2921 = vadd.f32 %v926, %v2841
      %v2922 = vadd.f32 %v927, %v2842
      %v2923 = vadd.f32 %v928, %v2843
      %v2924 = vadd.f32 %v929, %v2844
      %v2925 = vadd.f32 %v930, %v2845
      %v2926 = vadd.f32 %v931, %v2846
      %v2927 = vadd.f32 %v932, %v2847
      %v2928 = vadd.f32 %v933, %v2848
      %v2929 = vadd.f32 %v934, %v2849
      %v2930 = vadd.f32 %v935, %v2850
      %v2931 = vadd.f32 %v936, %v2851
      %v2932 = vadd.f32 %v937, %v2852
      %v2933 = vadd.f32 %v938, %v2853
      %v2934 = vadd.f32 %v939, %v2854
      %v2935 = vadd.f32 %v940, %v2855
      %v2936 = vadd.f32 %v941, %v2856
      %v2937 = vadd.f32 %v942, %v2857
      %v2938 = vadd.f32 %v943, %v2858
      %v2939 = vadd.f32 %v944, %v2859
      %v2940 = vadd.f32 %v945, %v2860
      %v2941 = vadd.f32 %v946, %v2861
      %v2942 = vadd.f32 %v947, %v2862
      %v2943 = vadd.f32 %v948, %v2863
      %v2944 = vadd.f32 %v949, %v2864
      %v2945 = vadd.f32 %v950, %v2865
      %v2946 = vadd.f32 %v951, %v2866
      %v2947 = vadd.f32 %v952, %v2867
      %v2948 = vadd.f32 %v953, %v2868
      %v2949 = vadd.f32 %v954, %v2869
      %v2950 = vadd.f32 %v955, %v2870
      %v2951 = vadd.f32 %v956, %v2871
      %v2952 = vadd.f32 %v957, %v2872
      %v2953 = vadd.f32 %v958, %v2873
      %v2954 = vadd.f32 %v959, %v2874
      %v2955 = vadd.f32 %v960, %v2875
      %v2956 = vadd.f32 %v961, %v2876
      %v2957 = vadd.f32 %v962, %v2877
      %v2958 = vadd.f32 %v963, %v2878
      %v2959 = vadd.f32 %v964, %v2879
      %v2960 = vadd.f32 %v965, %v2880
      %v2961 = vadd.f32 %v966, %v2881
      %2962 = vst [vmem:[#allocation2] sm:$0xff] %v2882
      %2963 = vst [vmem:[#allocation2 + $0x8] sm:$0xff] %v2883
      %2964 = vst [vmem:[#allocation2 + $0x10] sm:$0xff] %v2884
      %2965 = vst [vmem:[#allocation2 + $0x18] sm:$0xff] %v2885
      %2966 = vst [vmem:[#allocation2 + $0x20] sm:$0xff] %v2886
      %2967 = vst [vmem:[#allocation2 + $0x28] sm:$0xff] %v2887
      %2968 = vst [vmem:[#allocation2 + $0x30] sm:$0xff] %v2888
      %2969 = vst [vmem:[#allocation2 + $0x38] sm:$0xff] %v2889
      %2970 = vst [vmem:[#allocation2 + $0x40] sm:$0xff] %v2890
      %2971 = vst [vmem:[#allocation2 + $0x48] sm:$0xff] %v2891
      %2972 = vst [vmem:[#allocation2 + $0x50] sm:$0xff] %v2892
      %2973 = vst [vmem:[#allocation2 + $0x58] sm:$0xff] %v2893
      %2974 = vst [vmem:[#allocation2 + $0x60] sm:$0xff] %v2894
      %2975 = vst [vmem:[#allocation2 + $0x68] sm:$0xff] %v2895
      %2976 = vst [vmem:[#allocation2 + $0x70] sm:$0xff] %v2896
      %2977 = vst [vmem:[#allocation2 + $0x78] sm:$0xff] %v2897
      %2978 = vst [vmem:[#allocation2 + $0x80] sm:$0xff] %v2898
      %2979 = vst [vmem:[#allocation2 + $0x88] sm:$0xff] %v2899
      %2980 = vst [vmem:[#allocation2 + $0x90] sm:$0xff] %v2900
      %2981 = vst [vmem:[#allocation2 + $0x98] sm:$0xff] %v2901
      %2982 = vst [vmem:[#allocation2 + $0xa0] sm:$0xff] %v2902
      %2983 = vst [vmem:[#allocation2 + $0xa8] sm:$0xff] %v2903
      %2984 = vst [vmem:[#allocation2 + $0xb0] sm:$0xff] %v2904
      %2985 = vst [vmem:[#allocation2 + $0xb8] sm:$0xff] %v2905
      %2986 = vst [vmem:[#allocation2 + $0xc0] sm:$0xff] %v2906
      %2987 = vst [vmem:[#allocation2 + $0xc8] sm:$0xff] %v2907
      %2988 = vst [vmem:[#allocation2 + $0xd0] sm:$0xff] %v2908
      %2989 = vst [vmem:[#allocation2 + $0xd8] sm:$0xff] %v2909
      %2990 = vst [vmem:[#allocation2 + $0xe0] sm:$0xff] %v2910
      %2991 = vst [vmem:[#allocation2 + $0xe8] sm:$0xff] %v2911
      %2992 = vst [vmem:[#allocation2 + $0xf0] sm:$0xff] %v2912
      %2993 = vst [vmem:[#allocation2 + $0xf8] sm:$0xff] %v2913
      %2994 = vst [vmem:[#allocation2 + $0x100] sm:$0xff] %v2914
      %2995 = vst [vmem:[#allocation2 + $0x108] sm:$0xff] %v2915
      %2996 = vst [vmem:[#allocation2 + $0x110] sm:$0xff] %v2916
      %2997 = vst [vmem:[#allocation2 + $0x118] sm:$0xff] %v2917
      %2998 = vst [vmem:[#allocation2 + $0x120] sm:$0xff] %v2918
      %2999 = vst [vmem:[#allocation2 + $0x128] sm:$0xff] %v2919
      %3000 = vst [vmem:[#allocation2 + $0x130] sm:$0xff] %v2920
      %3001 = vst [vmem:[#allocation2 + $0x138] sm:$0xff] %v2921
      %3002 = vst [vmem:[#allocation2 + $0x140] sm:$0xff] %v2922
      %3003 = vst [vmem:[#allocation2 + $0x148] sm:$0xff] %v2923
      %3004 = vst [vmem:[#allocation2 + $0x150] sm:$0xff] %v2924
      %3005 = vst [vmem:[#allocation2 + $0x158] sm:$0xff] %v2925
      %3006 = vst [vmem:[#allocation2 + $0x160] sm:$0xff] %v2926
      %3007 = vst [vmem:[#allocation2 + $0x168] sm:$0xff] %v2927
      %3008 = vst [vmem:[#allocation2 + $0x170] sm:$0xff] %v2928
      %3009 = vst [vmem:[#allocation2 + $0x178] sm:$0xff] %v2929
      %3010 = vst [vmem:[#allocation2 + $0x180] sm:$0xff] %v2930
      %3011 = vst [vmem:[#allocation2 + $0x188] sm:$0xff] %v2931
      %3012 = vst [vmem:[#allocation2 + $0x190] sm:$0xff] %v2932
      %3013 = vst [vmem:[#allocation2 + $0x198] sm:$0xff] %v2933
      %3014 = vst [vmem:[#allocation2 + $0x1a0] sm:$0xff] %v2934
      %3015 = vst [vmem:[#allocation2 + $0x1a8] sm:$0xff] %v2935
      %3016 = vst [vmem:[#allocation2 + $0x1b0] sm:$0xff] %v2936
      %3017 = vst [vmem:[#allocation2 + $0x1b8] sm:$0xff] %v2937
      %3018 = vst [vmem:[#allocation2 + $0x1c0] sm:$0xff] %v2938
      %3019 = vst [vmem:[#allocation2 + $0x1c8] sm:$0xff] %v2939
      %3020 = vst [vmem:[#allocation2 + $0x1d0] sm:$0xff] %v2940
      %3021 = vst [vmem:[#allocation2 + $0x1d8] sm:$0xff] %v2941
      %3022 = vst [vmem:[#allocation2 + $0x1e0] sm:$0xff] %v2942
      %3023 = vst [vmem:[#allocation2 + $0x1e8] sm:$0xff] %v2943
      %3024 = vst [vmem:[#allocation2 + $0x1f0] sm:$0xff] %v2944
      %3025 = vst [vmem:[#allocation2 + $0x1f8] sm:$0xff] %v2945
      %3026 = vst [vmem:[#allocation2 + $0x200] sm:$0xff] %v2946
      %3027 = vst [vmem:[#allocation2 + $0x208] sm:$0xff] %v2947
      %3028 = vst [vmem:[#allocation2 + $0x210] sm:$0xff] %v2948
      %3029 = vst [vmem:[#allocation2 + $0x218] sm:$0xff] %v2949
      %3030 = vst [vmem:[#allocation2 + $0x220] sm:$0xff] %v2950
      %3031 = vst [vmem:[#allocation2 + $0x228] sm:$0xff] %v2951
      %3032 = vst [vmem:[#allocation2 + $0x230] sm:$0xff] %v2952
      %3033 = vst [vmem:[#allocation2 + $0x238] sm:$0xff] %v2953
      %3034 = vst [vmem:[#allocation2 + $0x240] sm:$0xff] %v2954
      %3035 = vst [vmem:[#allocation2 + $0x248] sm:$0xff] %v2955
      %3036 = vst [vmem:[#allocation2 + $0x250] sm:$0xff] %v2956
      %3037 = vst [vmem:[#allocation2 + $0x258] sm:$0xff] %v2957
      %3038 = vst [vmem:[#allocation2 + $0x260] sm:$0xff] %v2958
      %3039 = vst [vmem:[#allocation2 + $0x268] sm:$0xff] %v2959
      %3040 = vst [vmem:[#allocation2 + $0x270] sm:$0xff] %v2960
      %3041 = vst [vmem:[#allocation2 + $0x278] sm:$0xff] %v2961
      %v3042 = vld [vmem:[#allocation3] sm:$0xff]
      %v3043 = vld [vmem:[#allocation3 + $0x8] sm:$0xff]
      %v3044 = vld [vmem:[#allocation3 + $0x10] sm:$0xff]
      %v3045 = vld [vmem:[#allocation3 + $0x18] sm:$0xff]
      %v3046 = vld [vmem:[#allocation3 + $0x20] sm:$0xff]
      %v3047 = vld [vmem:[#allocation3 + $0x28] sm:$0xff]
      %v3048 = vld [vmem:[#allocation3 + $0x30] sm:$0xff]
      %v3049 = vld [vmem:[#allocation3 + $0x38] sm:$0xff]
      %v3050 = vld [vmem:[#allocation3 + $0x40] sm:$0xff]
      %v3051 = vld [vmem:[#allocation3 + $0x48] sm:$0xff]
      %v3052 = vld [vmem:[#allocation3 + $0x50] sm:$0xff]
      %v3053 = vld [vmem:[#allocation3 + $0x58] sm:$0xff]
      %v3054 = vld [vmem:[#allocation3 + $0x60] sm:$0xff]
      %v3055 = vld [vmem:[#allocation3 + $0x68] sm:$0xff]
      %v3056 = vld [vmem:[#allocation3 + $0x70] sm:$0xff]
      %v3057 = vld [vmem:[#allocation3 + $0x78] sm:$0xff]
      %v3058 = vld [vmem:[#allocation3 + $0x80] sm:$0xff]
      %v3059 = vld [vmem:[#allocation3 + $0x88] sm:$0xff]
      %v3060 = vld [vmem:[#allocation3 + $0x90] sm:$0xff]
      %v3061 = vld [vmem:[#allocation3 + $0x98] sm:$0xff]
      %v3062 = vld [vmem:[#allocation3 + $0xa0] sm:$0xff]
      %v3063 = vld [vmem:[#allocation3 + $0xa8] sm:$0xff]
      %v3064 = vld [vmem:[#allocation3 + $0xb0] sm:$0xff]
      %v3065 = vld [vmem:[#allocation3 + $0xb8] sm:$0xff]
      %v3066 = vld [vmem:[#allocation3 + $0xc0] sm:$0xff]
      %v3067 = vld [vmem:[#allocation3 + $0xc8] sm:$0xff]
      %v3068 = vld [vmem:[#allocation3 + $0xd0] sm:$0xff]
      %v3069 = vld [vmem:[#allocation3 + $0xd8] sm:$0xff]
      %v3070 = vld [vmem:[#allocation3 + $0xe0] sm:$0xff]
      %v3071 = vld [vmem:[#allocation3 + $0xe8] sm:$0xff]
      %v3072 = vld [vmem:[#allocation3 + $0xf0] sm:$0xff]
      %v3073 = vld [vmem:[#allocation3 + $0xf8] sm:$0xff]
      %v3074 = vld [vmem:[%s763] sm:$0xff]
      %v3075 = vld [vmem:[%s5] sm:$0xff]
      %v3076 = vld [vmem:[%s5 + $0x8] sm:$0xff]
      %v3077 = vld [vmem:[%s5 + $0x10] sm:$0xff]
      %v3078 = vld [vmem:[%s5 + $0x18] sm:$0xff]
      %v3079 = vld [vmem:[%s5 + $0x20] sm:$0xff]
      %v3080 = vld [vmem:[%s5 + $0x28] sm:$0xff]
      %v3081 = vld [vmem:[%s5 + $0x30] sm:$0xff]
      %v3082 = vld [vmem:[%s5 + $0x38] sm:$0xff]
      %v3083 = vld [vmem:[%s5 + $0x40] sm:$0xff]
      %v3084 = vld [vmem:[%s5 + $0x48] sm:$0xff]
      %v3085 = vld [vmem:[%s5 + $0x50] sm:$0xff]
      %v3086 = vld [vmem:[%s5 + $0x58] sm:$0xff]
      %v3087 = vld [vmem:[%s5 + $0x60] sm:$0xff]
      %v3088 = vld [vmem:[%s5 + $0x68] sm:$0xff]
      %v3089 = vld [vmem:[%s5 + $0x70] sm:$0xff]
      %v3090 = vld [vmem:[%s5 + $0x78] sm:$0xff]
      %v3091 = vld [vmem:[%s5 + $0x80] sm:$0xff]
      %v3092 = vld [vmem:[%s5 + $0x88] sm:$0xff]
      %v3093 = vld [vmem:[%s5 + $0x90] sm:$0xff]
      %v3094 = vld [vmem:[%s5 + $0x98] sm:$0xff]
      %v3095 = vld [vmem:[%s5 + $0xa0] sm:$0xff]
      %v3096 = vld [vmem:[%s5 + $0xa8] sm:$0xff]
      %v3097 = vld [vmem:[%s5 + $0xb0] sm:$0xff]
      %v3098 = vld [vmem:[%s5 + $0xb8] sm:$0xff]
      %v3099 = vld [vmem:[%s5 + $0xc0] sm:$0xff]
      %v3100 = vld [vmem:[%s5 + $0xc8] sm:$0xff]
      %v3101 = vld [vmem:[%s5 + $0xd0] sm:$0xff]
      %v3102 = vld [vmem:[%s5 + $0xd8] sm:$0xff]
      %v3103 = vld [vmem:[%s5 + $0xe0] sm:$0xff]
      %v3104 = vld [vmem:[%s5 + $0xe8] sm:$0xff]
      %v3105 = vld [vmem:[%s5 + $0xf0] sm:$0xff]
      %v3106 = vld [vmem:[%s5 + $0xf8] sm:$0xff]
      %v3107 = vld [vmem:[%s6] sm:$0xff]
      %v3108 = vld [vmem:[%s6 + $0x8] sm:$0xff]
      %v3109 = vld [vmem:[%s6 + $0x10] sm:$0xff]
      %v3110 = vld [vmem:[%s6 + $0x18] sm:$0xff]
      %v3111 = vld [vmem:[%s6 + $0x20] sm:$0xff]
      %v3112 = vld [vmem:[%s6 + $0x28] sm:$0xff]
      %v3113 = vld [vmem:[%s6 + $0x30] sm:$0xff]
      %v3114 = vld [vmem:[%s6 + $0x38] sm:$0xff]
      %v3115 = vld [vmem:[%s6 + $0x40] sm:$0xff]
      %v3116 = vld [vmem:[%s6 + $0x48] sm:$0xff]
      %v3117 = vld [vmem:[%s6 + $0x50] sm:$0xff]
      %v3118 = vld [vmem:[%s6 + $0x58] sm:$0xff]
      %v3119 = vld [vmem:[%s6 + $0x60] sm:$0xff]
      %v3120 = vld [vmem:[%s6 + $0x68] sm:$0xff]
      %v3121 = vld [vmem:[%s6 + $0x70] sm:$0xff]
      %v3122 = vld [vmem:[%s6 + $0x78] sm:$0xff]
      %v3123 = vld [vmem:[%s6 + $0x80] sm:$0xff]
      %v3124 = vld [vmem:[%s6 + $0x88] sm:$0xff]
      %v3125 = vld [vmem:[%s6 + $0x90] sm:$0xff]
      %v3126 = vld [vmem:[%s6 + $0x98] sm:$0xff]
      %v3127 = vld [vmem:[%s6 + $0xa0] sm:$0xff]
      %v3128 = vld [vmem:[%s6 + $0xa8] sm:$0xff]
      %v3129 = vld [vmem:[%s6 + $0xb0] sm:$0xff]
      %v3130 = vld [vmem:[%s6 + $0xb8] sm:$0xff]
      %v3131 = vld [vmem:[%s6 + $0xc0] sm:$0xff]
      %v3132 = vld [vmem:[%s6 + $0xc8] sm:$0xff]
      %v3133 = vld [vmem:[%s6 + $0xd0] sm:$0xff]
      %v3134 = vld [vmem:[%s6 + $0xd8] sm:$0xff]
      %v3135 = vld [vmem:[%s6 + $0xe0] sm:$0xff]
      %v3136 = vld [vmem:[%s6 + $0xe8] sm:$0xff]
      %v3137 = vld [vmem:[%s6 + $0xf0] sm:$0xff]
      %v3138 = vld [vmem:[%s6 + $0xf8] sm:$0xff]
      %3140 = vset.pattern.permute.xlu0 0
      %3141 = vperm.xlu0 %3140, %v3107
      %v3142 = vpop.permute.xlu0 %3141
      %3145 = vset.pattern.permute.xlu0 0
      %3146 = vperm.xlu0 %3145, %v3108
      %v3147 = vpop.permute.xlu0 %3146
      %3150 = vset.pattern.permute.xlu0 0
      %3151 = vperm.xlu0 %3150, %v3109
      %v3152 = vpop.permute.xlu0 %3151
      %3155 = vset.pattern.permute.xlu0 0
      %3156 = vperm.xlu0 %3155, %v3110
      %v3157 = vpop.permute.xlu0 %3156
      %3160 = vset.pattern.permute.xlu0 0
      %3161 = vperm.xlu0 %3160, %v3111
      %v3162 = vpop.permute.xlu0 %3161
      %3165 = vset.pattern.permute.xlu0 0
      %3166 = vperm.xlu0 %3165, %v3112
      %v3167 = vpop.permute.xlu0 %3166
      %3170 = vset.pattern.permute.xlu0 0
      %3171 = vperm.xlu0 %3170, %v3113
      %v3172 = vpop.permute.xlu0 %3171
      %3175 = vset.pattern.permute.xlu0 0
      %3176 = vperm.xlu0 %3175, %v3114
      %v3177 = vpop.permute.xlu0 %3176
      %3180 = vset.pattern.permute.xlu0 0
      %3181 = vperm.xlu0 %3180, %v3115
      %v3182 = vpop.permute.xlu0 %3181
      %3185 = vset.pattern.permute.xlu0 0
      %3186 = vperm.xlu0 %3185, %v3116
      %v3187 = vpop.permute.xlu0 %3186
      %3190 = vset.pattern.permute.xlu0 0
      %3191 = vperm.xlu0 %3190, %v3117
      %v3192 = vpop.permute.xlu0 %3191
      %3195 = vset.pattern.permute.xlu0 0
      %3196 = vperm.xlu0 %3195, %v3118
      %v3197 = vpop.permute.xlu0 %3196
      %3200 = vset.pattern.permute.xlu0 0
      %3201 = vperm.xlu0 %3200, %v3119
      %v3202 = vpop.permute.xlu0 %3201
      %3205 = vset.pattern.permute.xlu0 0
      %3206 = vperm.xlu0 %3205, %v3120
      %v3207 = vpop.permute.xlu0 %3206
      %3210 = vset.pattern.permute.xlu0 0
      %3211 = vperm.xlu0 %3210, %v3121
      %v3212 = vpop.permute.xlu0 %3211
      %3215 = vset.pattern.permute.xlu0 0
      %3216 = vperm.xlu0 %3215, %v3122
      %v3217 = vpop.permute.xlu0 %3216
      %3220 = vset.pattern.permute.xlu0 0
      %3221 = vperm.xlu0 %3220, %v3123
      %v3222 = vpop.permute.xlu0 %3221
      %3225 = vset.pattern.permute.xlu0 0
      %3226 = vperm.xlu0 %3225, %v3124
      %v3227 = vpop.permute.xlu0 %3226
      %3230 = vset.pattern.permute.xlu0 0
      %3231 = vperm.xlu0 %3230, %v3125
      %v3232 = vpop.permute.xlu0 %3231
      %3235 = vset.pattern.permute.xlu0 0
      %3236 = vperm.xlu0 %3235, %v3126
      %v3237 = vpop.permute.xlu0 %3236
      %3240 = vset.pattern.permute.xlu0 0
      %3241 = vperm.xlu0 %3240, %v3127
      %v3242 = vpop.permute.xlu0 %3241
      %3245 = vset.pattern.permute.xlu0 0
      %3246 = vperm.xlu0 %3245, %v3128
      %v3247 = vpop.permute.xlu0 %3246
      %3250 = vset.pattern.permute.xlu0 0
      %3251 = vperm.xlu0 %3250, %v3129
      %v3252 = vpop.permute.xlu0 %3251
      %3255 = vset.pattern.permute.xlu0 0
      %3256 = vperm.xlu0 %3255, %v3130
      %v3257 = vpop.permute.xlu0 %3256
      %3260 = vset.pattern.permute.xlu0 0
      %3261 = vperm.xlu0 %3260, %v3131
      %v3262 = vpop.permute.xlu0 %3261
      %3265 = vset.pattern.permute.xlu0 0
      %3266 = vperm.xlu0 %3265, %v3132
      %v3267 = vpop.permute.xlu0 %3266
      %3270 = vset.pattern.permute.xlu0 0
      %3271 = vperm.xlu0 %3270, %v3133
      %v3272 = vpop.permute.xlu0 %3271
      %3275 = vset.pattern.permute.xlu0 0
      %3276 = vperm.xlu0 %3275, %v3134
      %v3277 = vpop.permute.xlu0 %3276
      %3280 = vset.pattern.permute.xlu0 0
      %3281 = vperm.xlu0 %3280, %v3135
      %v3282 = vpop.permute.xlu0 %3281
      %3285 = vset.pattern.permute.xlu0 0
      %3286 = vperm.xlu0 %3285, %v3136
      %v3287 = vpop.permute.xlu0 %3286
      %3290 = vset.pattern.permute.xlu0 0
      %3291 = vperm.xlu0 %3290, %v3137
      %v3292 = vpop.permute.xlu0 %3291
      %3295 = vset.pattern.permute.xlu0 0
      %3296 = vperm.xlu0 %3295, %v3138
      %v3297 = vpop.permute.xlu0 %3296
      %vm3299 = vcmask 64512
      %v3301 = vsel %vm3299, %v3075, 0
      %v3304 = vsel %vm3299, %v3076, 0
      %v3307 = vsel %vm3299, %v3077, 0
      %v3310 = vsel %vm3299, %v3078, 0
      %v3313 = vsel %vm3299, %v3079, 0
      %v3316 = vsel %vm3299, %v3080, 0
      %v3319 = vsel %vm3299, %v3081, 0
      %v3322 = vsel %vm3299, %v3082, 0
      %v3325 = vsel %vm3299, %v3083, 0
      %v3328 = vsel %vm3299, %v3084, 0
      %v3331 = vsel %vm3299, %v3085, 0
      %v3334 = vsel %vm3299, %v3086, 0
      %v3337 = vsel %vm3299, %v3087, 0
      %v3340 = vsel %vm3299, %v3088, 0
      %v3343 = vsel %vm3299, %v3089, 0
      %v3346 = vsel %vm3299, %v3090, 0
      %v3349 = vsel %vm3299, %v3091, 0
      %v3352 = vsel %vm3299, %v3092, 0
      %v3355 = vsel %vm3299, %v3093, 0
      %v3358 = vsel %vm3299, %v3094, 0
      %v3361 = vsel %vm3299, %v3095, 0
      %v3364 = vsel %vm3299, %v3096, 0
      %v3367 = vsel %vm3299, %v3097, 0
      %v3370 = vsel %vm3299, %v3098, 0
      %v3373 = vsel %vm3299, %v3099, 0
      %v3376 = vsel %vm3299, %v3100, 0
      %v3379 = vsel %vm3299, %v3101, 0
      %v3382 = vsel %vm3299, %v3102, 0
      %v3385 = vsel %vm3299, %v3103, 0
      %v3388 = vsel %vm3299, %v3104, 0
      %v3391 = vsel %vm3299, %v3105, 0
      %v3394 = vsel %vm3299, %v3106, 0
      %3396 = vmatprep.subr.mxu0 0.0
      %3397 = vmatpush1.msra.mxu0 0.0
      %3398 = vmatprep.subr.mxu0 0.0
      %3399 = vmatpush1.msra.mxu0 0.0
      %3400 = vmatprep.subr.mxu0 0.0
      %3401 = vmatpush1.msra.mxu0 0.0
      %3402 = vmatprep.subr.mxu0 0.0
      %3403 = vmatpush1.msra.mxu0 0.0
      %3404 = vmatprep.subr.mxu0 0.0
      %3405 = vmatpush1.msra.mxu0 0.0
      %3406 = vmatprep.subr.mxu0 0.0
      %3407 = vmatpush1.msra.mxu0 0.0
      %3408 = vmatprep.subr.mxu0 0.0
      %3409 = vmatpush1.msra.mxu0 0.0
      %3410 = vmatprep.subr.mxu0 0.0
      %3411 = vmatpush1.msra.mxu0 0.0
      %3412 = vmatprep.subr.mxu0 0.0
      %3413 = vmatpush1.msra.mxu0 0.0
      %3414 = vmatprep.subr.mxu0 0.0
      %3415 = vmatpush1.msra.mxu0 0.0
      %3416 = vmatprep.subr.mxu0 0.0
      %3417 = vmatpush1.msra.mxu0 0.0
      %3418 = vmatprep.subr.mxu0 0.0
      %3419 = vmatpush1.msra.mxu0 0.0
      %3420 = vmatprep.subr.mxu0 0.0
      %3421 = vmatpush1.msra.mxu0 0.0
      %3422 = vmatprep.subr.mxu0 0.0
      %3423 = vmatpush1.msra.mxu0 0.0
      %3424 = vmatprep.subr.mxu0 0.0
      %3425 = vmatpush1.msra.mxu0 0.0
      %3426 = vmatprep.subr.mxu0 0.0
      %3427 = vmatpush1.msra.mxu0 %v3074
      %3428 = vmatprep.subr.mxu0 0.0
      %3429 = vmatpush2.msra.mxu0 0.0
      %3430 = vmatprep.subr.mxu0 0.0
      %3431 = vmatpush2.msra.mxu0 0.0
      %3432 = vmatprep.subr.mxu0 0.0
      %3433 = vmatpush2.msra.mxu0 0.0
      %3434 = vmatprep.subr.mxu0 0.0
      %3435 = vmatpush2.msra.mxu0 0.0
      %3436 = vmatprep.subr.mxu0 0.0
      %3437 = vmatpush2.msra.mxu0 0.0
      %3438 = vmatprep.subr.mxu0 0.0
      %3439 = vmatpush2.msra.mxu0 0.0
      %3440 = vmatprep.subr.mxu0 0.0
      %3441 = vmatpush2.msra.mxu0 0.0
      %3442 = vmatprep.subr.mxu0 0.0
      %3443 = vmatpush2.msra.mxu0 0.0
      %3444 = vmatprep.subr.mxu0 0.0
      %3445 = vmatpush2.msra.mxu0 0.0
      %3446 = vmatprep.subr.mxu0 0.0
      %3447 = vmatpush2.msra.mxu0 0.0
      %3448 = vmatprep.subr.mxu0 0.0
      %3449 = vmatpush2.msra.mxu0 0.0
      %3450 = vmatprep.subr.mxu0 0.0
      %3451 = vmatpush2.msra.mxu0 0.0
      %3452 = vmatprep.subr.mxu0 0.0
      %3453 = vmatpush2.msra.mxu0 0.0
      %3454 = vmatprep.subr.mxu0 0.0
      %3455 = vmatpush2.msra.mxu0 0.0
      %3456 = vmatprep.subr.mxu0 0.0
      %3457 = vmatpush2.msra.mxu0 0.0
      %3458 = vmatprep.subr.mxu0 0.0
      %3459 = vmatpush2.msra.mxu0 0.0
      %3460 = vmatprep.mubr.f32.mxu0 0.0
      %3461 = vmatmul.mubr.f32.gmra.mxu0 %v3301
      %v3462 = vpop.f32.mrf.mxu0
      %v3463 = vadd.f32 %v3142, %v3462
      %v3464 = vpop.f32.mrf.mxu0
      %3465 = vmatprep.mubr.f32.mxu0 0.0
      %3466 = vmatmul.mubr.f32.gmra.mxu0 %v3304
      %v3467 = vpop.f32.mrf.mxu0
      %v3468 = vadd.f32 %v3147, %v3467
      %v3469 = vpop.f32.mrf.mxu0
      %3470 = vmatprep.mubr.f32.mxu0 0.0
      %3471 = vmatmul.mubr.f32.gmra.mxu0 %v3307
      %v3472 = vpop.f32.mrf.mxu0
      %v3473 = vadd.f32 %v3152, %v3472
      %v3474 = vpop.f32.mrf.mxu0
      %3475 = vmatprep.mubr.f32.mxu0 0.0
      %3476 = vmatmul.mubr.f32.gmra.mxu0 %v3310
      %v3477 = vpop.f32.mrf.mxu0
      %v3478 = vadd.f32 %v3157, %v3477
      %v3479 = vpop.f32.mrf.mxu0
      %3480 = vmatprep.mubr.f32.mxu0 0.0
      %3481 = vmatmul.mubr.f32.gmra.mxu0 %v3313
      %v3482 = vpop.f32.mrf.mxu0
      %v3483 = vadd.f32 %v3162, %v3482
      %v3484 = vpop.f32.mrf.mxu0
      %3485 = vmatprep.mubr.f32.mxu0 0.0
      %3486 = vmatmul.mubr.f32.gmra.mxu0 %v3316
      %v3487 = vpop.f32.mrf.mxu0
      %v3488 = vadd.f32 %v3167, %v3487
      %v3489 = vpop.f32.mrf.mxu0
      %3490 = vmatprep.mubr.f32.mxu0 0.0
      %3491 = vmatmul.mubr.f32.gmra.mxu0 %v3319
      %v3492 = vpop.f32.mrf.mxu0
      %v3493 = vadd.f32 %v3172, %v3492
      %v3494 = vpop.f32.mrf.mxu0
      %3495 = vmatprep.mubr.f32.mxu0 0.0
      %3496 = vmatmul.mubr.f32.gmra.mxu0 %v3322
      %v3497 = vpop.f32.mrf.mxu0
      %v3498 = vadd.f32 %v3177, %v3497
      %v3499 = vpop.f32.mrf.mxu0
      %3500 = vmatprep.mubr.f32.mxu0 0.0
      %3501 = vmatmul.mubr.f32.gmra.mxu0 %v3325
      %v3502 = vpop.f32.mrf.mxu0
      %v3503 = vadd.f32 %v3182, %v3502
      %v3504 = vpop.f32.mrf.mxu0
      %3505 = vmatprep.mubr.f32.mxu0 0.0
      %3506 = vmatmul.mubr.f32.gmra.mxu0 %v3328
      %v3507 = vpop.f32.mrf.mxu0
      %v3508 = vadd.f32 %v3187, %v3507
      %v3509 = vpop.f32.mrf.mxu0
      %3510 = vmatprep.mubr.f32.mxu0 0.0
      %3511 = vmatmul.mubr.f32.gmra.mxu0 %v3331
      %v3512 = vpop.f32.mrf.mxu0
      %v3513 = vadd.f32 %v3192, %v3512
      %v3514 = vpop.f32.mrf.mxu0
      %3515 = vmatprep.mubr.f32.mxu0 0.0
      %3516 = vmatmul.mubr.f32.gmra.mxu0 %v3334
      %v3517 = vpop.f32.mrf.mxu0
      %v3518 = vadd.f32 %v3197, %v3517
      %v3519 = vpop.f32.mrf.mxu0
      %3520 = vmatprep.mubr.f32.mxu0 0.0
      %3521 = vmatmul.mubr.f32.gmra.mxu0 %v3337
      %v3522 = vpop.f32.mrf.mxu0
      %v3523 = vadd.f32 %v3202, %v3522
      %v3524 = vpop.f32.mrf.mxu0
      %3525 = vmatprep.mubr.f32.mxu0 0.0
      %3526 = vmatmul.mubr.f32.gmra.mxu0 %v3340
      %v3527 = vpop.f32.mrf.mxu0
      %v3528 = vadd.f32 %v3207, %v3527
      %v3529 = vpop.f32.mrf.mxu0
      %3530 = vmatprep.mubr.f32.mxu0 0.0
      %3531 = vmatmul.mubr.f32.gmra.mxu0 %v3343
      %v3532 = vpop.f32.mrf.mxu0
      %v3533 = vadd.f32 %v3212, %v3532
      %v3534 = vpop.f32.mrf.mxu0
      %3535 = vmatprep.mubr.f32.mxu0 0.0
      %3536 = vmatmul.mubr.f32.gmra.mxu0 %v3346
      %v3537 = vpop.f32.mrf.mxu0
      %v3538 = vadd.f32 %v3217, %v3537
      %v3539 = vpop.f32.mrf.mxu0
      %3540 = vmatprep.mubr.f32.mxu0 0.0
      %3541 = vmatmul.mubr.f32.gmra.mxu0 %v3349
      %v3542 = vpop.f32.mrf.mxu0
      %v3543 = vadd.f32 %v3222, %v3542
      %v3544 = vpop.f32.mrf.mxu0
      %3545 = vmatprep.mubr.f32.mxu0 0.0
      %3546 = vmatmul.mubr.f32.gmra.mxu0 %v3352
      %v3547 = vpop.f32.mrf.mxu0
      %v3548 = vadd.f32 %v3227, %v3547
      %v3549 = vpop.f32.mrf.mxu0
      %3550 = vmatprep.mubr.f32.mxu0 0.0
      %3551 = vmatmul.mubr.f32.gmra.mxu0 %v3355
      %v3552 = vpop.f32.mrf.mxu0
      %v3553 = vadd.f32 %v3232, %v3552
      %v3554 = vpop.f32.mrf.mxu0
      %3555 = vmatprep.mubr.f32.mxu0 0.0
      %3556 = vmatmul.mubr.f32.gmra.mxu0 %v3358
      %v3557 = vpop.f32.mrf.mxu0
      %v3558 = vadd.f32 %v3237, %v3557
      %v3559 = vpop.f32.mrf.mxu0
      %3560 = vmatprep.mubr.f32.mxu0 0.0
      %3561 = vmatmul.mubr.f32.gmra.mxu0 %v3361
      %v3562 = vpop.f32.mrf.mxu0
      %v3563 = vadd.f32 %v3242, %v3562
      %v3564 = vpop.f32.mrf.mxu0
      %3565 = vmatprep.mubr.f32.mxu0 0.0
      %3566 = vmatmul.mubr.f32.gmra.mxu0 %v3364
      %v3567 = vpop.f32.mrf.mxu0
      %v3568 = vadd.f32 %v3247, %v3567
      %v3569 = vpop.f32.mrf.mxu0
      %3570 = vmatprep.mubr.f32.mxu0 0.0
      %3571 = vmatmul.mubr.f32.gmra.mxu0 %v3367
      %v3572 = vpop.f32.mrf.mxu0
      %v3573 = vadd.f32 %v3252, %v3572
      %v3574 = vpop.f32.mrf.mxu0
      %3575 = vmatprep.mubr.f32.mxu0 0.0
      %3576 = vmatmul.mubr.f32.gmra.mxu0 %v3370
      %v3577 = vpop.f32.mrf.mxu0
      %v3578 = vadd.f32 %v3257, %v3577
      %v3579 = vpop.f32.mrf.mxu0
      %3580 = vmatprep.mubr.f32.mxu0 0.0
      %3581 = vmatmul.mubr.f32.gmra.mxu0 %v3373
      %v3582 = vpop.f32.mrf.mxu0
      %v3583 = vadd.f32 %v3262, %v3582
      %v3584 = vpop.f32.mrf.mxu0
      %3585 = vmatprep.mubr.f32.mxu0 0.0
      %3586 = vmatmul.mubr.f32.gmra.mxu0 %v3376
      %v3587 = vpop.f32.mrf.mxu0
      %v3588 = vadd.f32 %v3267, %v3587
      %v3589 = vpop.f32.mrf.mxu0
      %3590 = vmatprep.mubr.f32.mxu0 0.0
      %3591 = vmatmul.mubr.f32.gmra.mxu0 %v3379
      %v3592 = vpop.f32.mrf.mxu0
      %v3593 = vadd.f32 %v3272, %v3592
      %v3594 = vpop.f32.mrf.mxu0
      %3595 = vmatprep.mubr.f32.mxu0 0.0
      %3596 = vmatmul.mubr.f32.gmra.mxu0 %v3382
      %v3597 = vpop.f32.mrf.mxu0
      %v3598 = vadd.f32 %v3277, %v3597
      %v3599 = vpop.f32.mrf.mxu0
      %3600 = vmatprep.mubr.f32.mxu0 0.0
      %3601 = vmatmul.mubr.f32.gmra.mxu0 %v3385
      %v3602 = vpop.f32.mrf.mxu0
      %v3603 = vadd.f32 %v3282, %v3602
      %v3604 = vpop.f32.mrf.mxu0
      %3605 = vmatprep.mubr.f32.mxu0 0.0
      %3606 = vmatmul.mubr.f32.gmra.mxu0 %v3388
      %v3607 = vpop.f32.mrf.mxu0
      %v3608 = vadd.f32 %v3287, %v3607
      %v3609 = vpop.f32.mrf.mxu0
      %3610 = vmatprep.mubr.f32.mxu0 0.0
      %3611 = vmatmul.mubr.f32.gmra.mxu0 %v3391
      %v3612 = vpop.f32.mrf.mxu0
      %v3613 = vadd.f32 %v3292, %v3612
      %v3614 = vpop.f32.mrf.mxu0
      %3615 = vmatprep.mubr.f32.mxu0 0.0
      %3616 = vmatmul.mubr.f32.gmra.mxu0 %v3394
      %v3617 = vpop.f32.mrf.mxu0
      %v3618 = vadd.f32 %v3297, %v3617
      %v3619 = vpop.f32.mrf.mxu0
      %3620 = vdwg.mxu0
      %vm3621 = vcmp.gt.f32.partialorder %v3463, 0.0
      %vm3622 = vcmp.gt.f32.partialorder %v3468, 0.0
      %vm3623 = vcmp.gt.f32.partialorder %v3473, 0.0
      %vm3624 = vcmp.gt.f32.partialorder %v3478, 0.0
      %vm3625 = vcmp.gt.f32.partialorder %v3483, 0.0
      %vm3626 = vcmp.gt.f32.partialorder %v3488, 0.0
      %vm3627 = vcmp.gt.f32.partialorder %v3493, 0.0
      %vm3628 = vcmp.gt.f32.partialorder %v3498, 0.0
      %vm3629 = vcmp.gt.f32.partialorder %v3503, 0.0
      %vm3630 = vcmp.gt.f32.partialorder %v3508, 0.0
      %vm3631 = vcmp.gt.f32.partialorder %v3513, 0.0
      %vm3632 = vcmp.gt.f32.partialorder %v3518, 0.0
      %vm3633 = vcmp.gt.f32.partialorder %v3523, 0.0
      %vm3634 = vcmp.gt.f32.partialorder %v3528, 0.0
      %vm3635 = vcmp.gt.f32.partialorder %v3533, 0.0
      %vm3636 = vcmp.gt.f32.partialorder %v3538, 0.0
      %vm3637 = vcmp.gt.f32.partialorder %v3543, 0.0
      %vm3638 = vcmp.gt.f32.partialorder %v3548, 0.0
      %vm3639 = vcmp.gt.f32.partialorder %v3553, 0.0
      %vm3640 = vcmp.gt.f32.partialorder %v3558, 0.0
      %vm3641 = vcmp.gt.f32.partialorder %v3563, 0.0
      %vm3642 = vcmp.gt.f32.partialorder %v3568, 0.0
      %vm3643 = vcmp.gt.f32.partialorder %v3573, 0.0
      %vm3644 = vcmp.gt.f32.partialorder %v3578, 0.0
      %vm3645 = vcmp.gt.f32.partialorder %v3583, 0.0
      %vm3646 = vcmp.gt.f32.partialorder %v3588, 0.0
      %vm3647 = vcmp.gt.f32.partialorder %v3593, 0.0
      %vm3648 = vcmp.gt.f32.partialorder %v3598, 0.0
      %vm3649 = vcmp.gt.f32.partialorder %v3603, 0.0
      %vm3650 = vcmp.gt.f32.partialorder %v3608, 0.0
      %vm3651 = vcmp.gt.f32.partialorder %v3613, 0.0
      %vm3652 = vcmp.gt.f32.partialorder %v3618, 0.0
      %v3653 = vmul.f32 %v3463, 0.01
      %v3654 = vmul.f32 %v3468, 0.01
      %v3655 = vmul.f32 %v3473, 0.01
      %v3656 = vmul.f32 %v3478, 0.01
      %v3657 = vmul.f32 %v3483, 0.01
      %v3658 = vmul.f32 %v3488, 0.01
      %v3659 = vmul.f32 %v3493, 0.01
      %v3660 = vmul.f32 %v3498, 0.01
      %v3661 = vmul.f32 %v3503, 0.01
      %v3662 = vmul.f32 %v3508, 0.01
      %v3663 = vmul.f32 %v3513, 0.01
      %v3664 = vmul.f32 %v3518, 0.01
      %v3665 = vmul.f32 %v3523, 0.01
      %v3666 = vmul.f32 %v3528, 0.01
      %v3667 = vmul.f32 %v3533, 0.01
      %v3668 = vmul.f32 %v3538, 0.01
      %v3669 = vmul.f32 %v3543, 0.01
      %v3670 = vmul.f32 %v3548, 0.01
      %v3671 = vmul.f32 %v3553, 0.01
      %v3672 = vmul.f32 %v3558, 0.01
      %v3673 = vmul.f32 %v3563, 0.01
      %v3674 = vmul.f32 %v3568, 0.01
      %v3675 = vmul.f32 %v3573, 0.01
      %v3676 = vmul.f32 %v3578, 0.01
      %v3677 = vmul.f32 %v3583, 0.01
      %v3678 = vmul.f32 %v3588, 0.01
      %v3679 = vmul.f32 %v3593, 0.01
      %v3680 = vmul.f32 %v3598, 0.01
      %v3681 = vmul.f32 %v3603, 0.01
      %v3682 = vmul.f32 %v3608, 0.01
      %v3683 = vmul.f32 %v3613, 0.01
      %v3684 = vmul.f32 %v3618, 0.01
      %v3685 = vsel %vm3621, %v3463, %v3653
      %v3686 = vsel %vm3622, %v3468, %v3654
      %v3687 = vsel %vm3623, %v3473, %v3655
      %v3688 = vsel %vm3624, %v3478, %v3656
      %v3689 = vsel %vm3625, %v3483, %v3657
      %v3690 = vsel %vm3626, %v3488, %v3658
      %v3691 = vsel %vm3627, %v3493, %v3659
      %v3692 = vsel %vm3628, %v3498, %v3660
      %v3693 = vsel %vm3629, %v3503, %v3661
      %v3694 = vsel %vm3630, %v3508, %v3662
      %v3695 = vsel %vm3631, %v3513, %v3663
      %v3696 = vsel %vm3632, %v3518, %v3664
      %v3697 = vsel %vm3633, %v3523, %v3665
      %v3698 = vsel %vm3634, %v3528, %v3666
      %v3699 = vsel %vm3635, %v3533, %v3667
      %v3700 = vsel %vm3636, %v3538, %v3668
      %v3701 = vsel %vm3637, %v3543, %v3669
      %v3702 = vsel %vm3638, %v3548, %v3670
      %v3703 = vsel %vm3639, %v3553, %v3671
      %v3704 = vsel %vm3640, %v3558, %v3672
      %v3705 = vsel %vm3641, %v3563, %v3673
      %v3706 = vsel %vm3642, %v3568, %v3674
      %v3707 = vsel %vm3643, %v3573, %v3675
      %v3708 = vsel %vm3644, %v3578, %v3676
      %v3709 = vsel %vm3645, %v3583, %v3677
      %v3710 = vsel %vm3646, %v3588, %v3678
      %v3711 = vsel %vm3647, %v3593, %v3679
      %v3712 = vsel %vm3648, %v3598, %v3680
      %v3713 = vsel %vm3649, %v3603, %v3681
      %v3714 = vsel %vm3650, %v3608, %v3682
      %v3715 = vsel %vm3651, %v3613, %v3683
      %v3716 = vsel %vm3652, %v3618, %v3684
      %vm3717 = vcmask 261120
      %v3718 = vsel %vm3717, %v3685, 0.0
      %3719 = vadd.xlane.f32.xlu0 %v3718
      %v3720 = vpop.xlane.xlu0 %3719
      %v3721 = vsel %vm3717, %v3686, 0.0
      %3722 = vadd.xlane.f32.xlu0 %v3721
      %v3723 = vpop.xlane.xlu0 %3722
      %v3724 = vsel %vm3717, %v3687, 0.0
      %3725 = vadd.xlane.f32.xlu0 %v3724
      %v3726 = vpop.xlane.xlu0 %3725
      %v3727 = vsel %vm3717, %v3688, 0.0
      %3728 = vadd.xlane.f32.xlu0 %v3727
      %v3729 = vpop.xlane.xlu0 %3728
      %v3730 = vsel %vm3717, %v3689, 0.0
      %3731 = vadd.xlane.f32.xlu0 %v3730
      %v3732 = vpop.xlane.xlu0 %3731
      %v3733 = vsel %vm3717, %v3690, 0.0
      %3734 = vadd.xlane.f32.xlu0 %v3733
      %v3735 = vpop.xlane.xlu0 %3734
      %v3736 = vsel %vm3717, %v3691, 0.0
      %3737 = vadd.xlane.f32.xlu0 %v3736
      %v3738 = vpop.xlane.xlu0 %3737
      %v3739 = vsel %vm3717, %v3692, 0.0
      %3740 = vadd.xlane.f32.xlu0 %v3739
      %v3741 = vpop.xlane.xlu0 %3740
      %v3742 = vsel %vm3717, %v3693, 0.0
      %3743 = vadd.xlane.f32.xlu0 %v3742
      %v3744 = vpop.xlane.xlu0 %3743
      %v3745 = vsel %vm3717, %v3694, 0.0
      %3746 = vadd.xlane.f32.xlu0 %v3745
      %v3747 = vpop.xlane.xlu0 %3746
      %v3748 = vsel %vm3717, %v3695, 0.0
      %3749 = vadd.xlane.f32.xlu0 %v3748
      %v3750 = vpop.xlane.xlu0 %3749
      %v3751 = vsel %vm3717, %v3696, 0.0
      %3752 = vadd.xlane.f32.xlu0 %v3751
      %v3753 = vpop.xlane.xlu0 %3752
      %v3754 = vsel %vm3717, %v3697, 0.0
      %3755 = vadd.xlane.f32.xlu0 %v3754
      %v3756 = vpop.xlane.xlu0 %3755
      %v3757 = vsel %vm3717, %v3698, 0.0
      %3758 = vadd.xlane.f32.xlu0 %v3757
      %v3759 = vpop.xlane.xlu0 %3758
      %v3760 = vsel %vm3717, %v3699, 0.0
      %3761 = vadd.xlane.f32.xlu0 %v3760
      %v3762 = vpop.xlane.xlu0 %3761
      %v3763 = vsel %vm3717, %v3700, 0.0
      %3764 = vadd.xlane.f32.xlu0 %v3763
      %v3765 = vpop.xlane.xlu0 %3764
      %v3766 = vsel %vm3717, %v3701, 0.0
      %3767 = vadd.xlane.f32.xlu0 %v3766
      %v3768 = vpop.xlane.xlu0 %3767
      %v3769 = vsel %vm3717, %v3702, 0.0
      %3770 = vadd.xlane.f32.xlu0 %v3769
      %v3771 = vpop.xlane.xlu0 %3770
      %v3772 = vsel %vm3717, %v3703, 0.0
      %3773 = vadd.xlane.f32.xlu0 %v3772
      %v3774 = vpop.xlane.xlu0 %3773
      %v3775 = vsel %vm3717, %v3704, 0.0
      %3776 = vadd.xlane.f32.xlu0 %v3775
      %v3777 = vpop.xlane.xlu0 %3776
      %v3778 = vsel %vm3717, %v3705, 0.0
      %3779 = vadd.xlane.f32.xlu0 %v3778
      %v3780 = vpop.xlane.xlu0 %3779
      %v3781 = vsel %vm3717, %v3706, 0.0
      %3782 = vadd.xlane.f32.xlu0 %v3781
      %v3783 = vpop.xlane.xlu0 %3782
      %v3784 = vsel %vm3717, %v3707, 0.0
      %3785 = vadd.xlane.f32.xlu0 %v3784
      %v3786 = vpop.xlane.xlu0 %3785
      %v3787 = vsel %vm3717, %v3708, 0.0
      %3788 = vadd.xlane.f32.xlu0 %v3787
      %v3789 = vpop.xlane.xlu0 %3788
      %v3790 = vsel %vm3717, %v3709, 0.0
      %3791 = vadd.xlane.f32.xlu0 %v3790
      %v3792 = vpop.xlane.xlu0 %3791
      %v3793 = vsel %vm3717, %v3710, 0.0
      %3794 = vadd.xlane.f32.xlu0 %v3793
      %v3795 = vpop.xlane.xlu0 %3794
      %v3796 = vsel %vm3717, %v3711, 0.0
      %3797 = vadd.xlane.f32.xlu0 %v3796
      %v3798 = vpop.xlane.xlu0 %3797
      %v3799 = vsel %vm3717, %v3712, 0.0
      %3800 = vadd.xlane.f32.xlu0 %v3799
      %v3801 = vpop.xlane.xlu0 %3800
      %v3802 = vsel %vm3717, %v3713, 0.0
      %3803 = vadd.xlane.f32.xlu0 %v3802
      %v3804 = vpop.xlane.xlu0 %3803
      %v3805 = vsel %vm3717, %v3714, 0.0
      %3806 = vadd.xlane.f32.xlu0 %v3805
      %v3807 = vpop.xlane.xlu0 %3806
      %v3808 = vsel %vm3717, %v3715, 0.0
      %3809 = vadd.xlane.f32.xlu0 %v3808
      %v3810 = vpop.xlane.xlu0 %3809
      %v3811 = vsel %vm3717, %v3716, 0.0
      %3812 = vadd.xlane.f32.xlu0 %v3811
      %v3813 = vpop.xlane.xlu0 %3812
      %v3814 = vsel %vm2721, %v3720, 0.0
      %v3815 = vsel %vm2721, %v3723, 0.0
      %v3816 = vsel %vm2721, %v3726, 0.0
      %v3817 = vsel %vm2721, %v3729, 0.0
      %v3818 = vsel %vm2721, %v3732, 0.0
      %v3819 = vsel %vm2721, %v3735, 0.0
      %v3820 = vsel %vm2721, %v3738, 0.0
      %v3821 = vsel %vm2721, %v3741, 0.0
      %v3822 = vsel %vm2721, %v3744, 0.0
      %v3823 = vsel %vm2721, %v3747, 0.0
      %v3824 = vsel %vm2721, %v3750, 0.0
      %v3825 = vsel %vm2721, %v3753, 0.0
      %v3826 = vsel %vm2721, %v3756, 0.0
      %v3827 = vsel %vm2721, %v3759, 0.0
      %v3828 = vsel %vm2721, %v3762, 0.0
      %v3829 = vsel %vm2721, %v3765, 0.0
      %v3830 = vsel %vm2721, %v3768, 0.0
      %v3831 = vsel %vm2721, %v3771, 0.0
      %v3832 = vsel %vm2721, %v3774, 0.0
      %v3833 = vsel %vm2721, %v3777, 0.0
      %v3834 = vsel %vm2721, %v3780, 0.0
      %v3835 = vsel %vm2721, %v3783, 0.0
      %v3836 = vsel %vm2721, %v3786, 0.0
      %v3837 = vsel %vm2721, %v3789, 0.0
      %v3838 = vsel %vm2721, %v3792, 0.0
      %v3839 = vsel %vm2721, %v3795, 0.0
      %v3840 = vsel %vm2721, %v3798, 0.0
      %v3841 = vsel %vm2721, %v3801, 0.0
      %v3842 = vsel %vm2721, %v3804, 0.0
      %v3843 = vsel %vm2721, %v3807, 0.0
      %v3844 = vsel %vm2721, %v3810, 0.0
      %v3845 = vsel %vm2721, %v3813, 0.0
      %v3846 = vadd.f32 %v3814, 0.0
      %v3847 = vadd.f32 %v3815, 0.0
      %v3848 = vadd.f32 %v3816, 0.0
      %v3849 = vadd.f32 %v3817, 0.0
      %v3850 = vadd.f32 %v3818, 0.0
      %v3851 = vadd.f32 %v3819, 0.0
      %v3852 = vadd.f32 %v3820, 0.0
      %v3853 = vadd.f32 %v3821, 0.0
      %v3854 = vadd.f32 %v3822, 0.0
      %v3855 = vadd.f32 %v3823, 0.0
      %v3856 = vadd.f32 %v3824, 0.0
      %v3857 = vadd.f32 %v3825, 0.0
      %v3858 = vadd.f32 %v3826, 0.0
      %v3859 = vadd.f32 %v3827, 0.0
      %v3860 = vadd.f32 %v3828, 0.0
      %v3861 = vadd.f32 %v3829, 0.0
      %v3862 = vadd.f32 %v3830, 0.0
      %v3863 = vadd.f32 %v3831, 0.0
      %v3864 = vadd.f32 %v3832, 0.0
      %v3865 = vadd.f32 %v3833, 0.0
      %v3866 = vadd.f32 %v3834, 0.0
      %v3867 = vadd.f32 %v3835, 0.0
      %v3868 = vadd.f32 %v3836, 0.0
      %v3869 = vadd.f32 %v3837, 0.0
      %v3870 = vadd.f32 %v3838, 0.0
      %v3871 = vadd.f32 %v3839, 0.0
      %v3872 = vadd.f32 %v3840, 0.0
      %v3873 = vadd.f32 %v3841, 0.0
      %v3874 = vadd.f32 %v3842, 0.0
      %v3875 = vadd.f32 %v3843, 0.0
      %v3876 = vadd.f32 %v3844, 0.0
      %v3877 = vadd.f32 %v3845, 0.0
      %v3878 = vadd.f32 %v3042, %v3846
      %v3879 = vadd.f32 %v3043, %v3847
      %v3880 = vadd.f32 %v3044, %v3848
      %v3881 = vadd.f32 %v3045, %v3849
      %v3882 = vadd.f32 %v3046, %v3850
      %v3883 = vadd.f32 %v3047, %v3851
      %v3884 = vadd.f32 %v3048, %v3852
      %v3885 = vadd.f32 %v3049, %v3853
      %v3886 = vadd.f32 %v3050, %v3854
      %v3887 = vadd.f32 %v3051, %v3855
      %v3888 = vadd.f32 %v3052, %v3856
      %v3889 = vadd.f32 %v3053, %v3857
      %v3890 = vadd.f32 %v3054, %v3858
      %v3891 = vadd.f32 %v3055, %v3859
      %v3892 = vadd.f32 %v3056, %v3860
      %v3893 = vadd.f32 %v3057, %v3861
      %v3894 = vadd.f32 %v3058, %v3862
      %v3895 = vadd.f32 %v3059, %v3863
      %v3896 = vadd.f32 %v3060, %v3864
      %v3897 = vadd.f32 %v3061, %v3865
      %v3898 = vadd.f32 %v3062, %v3866
      %v3899 = vadd.f32 %v3063, %v3867
      %v3900 = vadd.f32 %v3064, %v3868
      %v3901 = vadd.f32 %v3065, %v3869
      %v3902 = vadd.f32 %v3066, %v3870
      %v3903 = vadd.f32 %v3067, %v3871
      %v3904 = vadd.f32 %v3068, %v3872
      %v3905 = vadd.f32 %v3069, %v3873
      %v3906 = vadd.f32 %v3070, %v3874
      %v3907 = vadd.f32 %v3071, %v3875
      %v3908 = vadd.f32 %v3072, %v3876
      %v3909 = vadd.f32 %v3073, %v3877
      %3910 = vst [vmem:[#allocation3] sm:$0xff] %v3878
      %3911 = vst [vmem:[#allocation3 + $0x8] sm:$0xff] %v3879
      %3912 = vst [vmem:[#allocation3 + $0x10] sm:$0xff] %v3880
      %3913 = vst [vmem:[#allocation3 + $0x18] sm:$0xff] %v3881
      %3914 = vst [vmem:[#allocation3 + $0x20] sm:$0xff] %v3882
      %3915 = vst [vmem:[#allocation3 + $0x28] sm:$0xff] %v3883
      %3916 = vst [vmem:[#allocation3 + $0x30] sm:$0xff] %v3884
      %3917 = vst [vmem:[#allocation3 + $0x38] sm:$0xff] %v3885
      %3918 = vst [vmem:[#allocation3 + $0x40] sm:$0xff] %v3886
      %3919 = vst [vmem:[#allocation3 + $0x48] sm:$0xff] %v3887
      %3920 = vst [vmem:[#allocation3 + $0x50] sm:$0xff] %v3888
      %3921 = vst [vmem:[#allocation3 + $0x58] sm:$0xff] %v3889
      %3922 = vst [vmem:[#allocation3 + $0x60] sm:$0xff] %v3890
      %3923 = vst [vmem:[#allocation3 + $0x68] sm:$0xff] %v3891
      %3924 = vst [vmem:[#allocation3 + $0x70] sm:$0xff] %v3892
      %3925 = vst [vmem:[#allocation3 + $0x78] sm:$0xff] %v3893
      %3926 = vst [vmem:[#allocation3 + $0x80] sm:$0xff] %v3894
      %3927 = vst [vmem:[#allocation3 + $0x88] sm:$0xff] %v3895
      %3928 = vst [vmem:[#allocation3 + $0x90] sm:$0xff] %v3896
      %3929 = vst [vmem:[#allocation3 + $0x98] sm:$0xff] %v3897
      %3930 = vst [vmem:[#allocation3 + $0xa0] sm:$0xff] %v3898
      %3931 = vst [vmem:[#allocation3 + $0xa8] sm:$0xff] %v3899
      %3932 = vst [vmem:[#allocation3 + $0xb0] sm:$0xff] %v3900
      %3933 = vst [vmem:[#allocation3 + $0xb8] sm:$0xff] %v3901
      %3934 = vst [vmem:[#allocation3 + $0xc0] sm:$0xff] %v3902
      %3935 = vst [vmem:[#allocation3 + $0xc8] sm:$0xff] %v3903
      %3936 = vst [vmem:[#allocation3 + $0xd0] sm:$0xff] %v3904
      %3937 = vst [vmem:[#allocation3 + $0xd8] sm:$0xff] %v3905
      %3938 = vst [vmem:[#allocation3 + $0xe0] sm:$0xff] %v3906
      %3939 = vst [vmem:[#allocation3 + $0xe8] sm:$0xff] %v3907
      %3940 = vst [vmem:[#allocation3 + $0xf0] sm:$0xff] %v3908
      %3941 = vst [vmem:[#allocation3 + $0xf8] sm:$0xff] %v3909
      // Predicated region
      $region117: #{posenet_forward.1} parent=111 // pred_check
        %p3942 = pneg %p771
      $region118: #{posenet_forward.1} parent=111 // pred_check_branch
        %3944 = sbr.rel (%p3942) target = $region120
      $region119: #{posenet_forward.1} parent=111 // pred_region
        %v3945 = vld [vmem:[%s7] sm:$0xff]
        %v3946 = vld [vmem:[%s7 + $0x8] sm:$0xff]
        %v3947 = vld [vmem:[%s7 + $0x10] sm:$0xff]
        %v3948 = vld [vmem:[%s7 + $0x18] sm:$0xff]
        %v3949 = vld [vmem:[%s7 + $0x20] sm:$0xff]
        %v3950 = vld [vmem:[%s7 + $0x28] sm:$0xff]
        %v3951 = vld [vmem:[%s7 + $0x30] sm:$0xff]
        %v3952 = vld [vmem:[%s7 + $0x38] sm:$0xff]
        %v3953 = vld [vmem:[%s7 + $0x40] sm:$0xff]
        %v3954 = vld [vmem:[%s7 + $0x48] sm:$0xff]
        %v3955 = vld [vmem:[%s7 + $0x50] sm:$0xff]
        %v3956 = vld [vmem:[%s7 + $0x58] sm:$0xff]
        %v3957 = vld [vmem:[%s7 + $0x60] sm:$0xff]
        %v3958 = vld [vmem:[%s7 + $0x68] sm:$0xff]
        %v3959 = vld [vmem:[%s7 + $0x70] sm:$0xff]
        %v3960 = vld [vmem:[%s7 + $0x78] sm:$0xff]
        %v3961 = vld [vmem:[%s7 + $0x80] sm:$0xff]
        %v3962 = vld [vmem:[%s7 + $0x88] sm:$0xff]
        %v3963 = vld [vmem:[%s7 + $0x90] sm:$0xff]
        %v3964 = vld [vmem:[%s7 + $0x98] sm:$0xff]
        %v3965 = vld [vmem:[%s7 + $0xa0] sm:$0xff]
        %v3966 = vld [vmem:[%s7 + $0xa8] sm:$0xff]
        %v3967 = vld [vmem:[%s7 + $0xb0] sm:$0xff]
        %v3968 = vld [vmem:[%s7 + $0xb8] sm:$0xff]
        %v3969 = vld [vmem:[%s7 + $0xc0] sm:$0xff]
        %v3970 = vld [vmem:[%s7 + $0xc8] sm:$0xff]
        %v3971 = vld [vmem:[%s7 + $0xd0] sm:$0xff]
        %v3972 = vld [vmem:[%s7 + $0xd8] sm:$0xff]
        %v3973 = vld [vmem:[%s7 + $0xe0] sm:$0xff]
        %v3974 = vld [vmem:[%s7 + $0xe8] sm:$0xff]
        %v3975 = vld [vmem:[%s7 + $0xf0] sm:$0xff]
        %v3976 = vld [vmem:[%s7 + $0xf8] sm:$0xff]
        %v3977 = vld [vmem:[%s7 + $0x100] sm:$0xff]
        %v3978 = vld [vmem:[%s7 + $0x108] sm:$0xff]
        %v3979 = vld [vmem:[%s7 + $0x110] sm:$0xff]
        %v3980 = vld [vmem:[%s7 + $0x118] sm:$0xff]
        %v3981 = vld [vmem:[%s7 + $0x120] sm:$0xff]
        %v3982 = vld [vmem:[%s7 + $0x128] sm:$0xff]
        %v3983 = vld [vmem:[%s7 + $0x130] sm:$0xff]
        %v3984 = vld [vmem:[%s7 + $0x138] sm:$0xff]
        %v3985 = vld [vmem:[#allocation2] sm:$0xff]
        %v3986 = vld [vmem:[#allocation2 + $0x8] sm:$0xff]
        %v3987 = vld [vmem:[#allocation2 + $0x10] sm:$0xff]
        %v3988 = vld [vmem:[#allocation2 + $0x18] sm:$0xff]
        %v3989 = vld [vmem:[#allocation2 + $0x20] sm:$0xff]
        %v3990 = vld [vmem:[#allocation2 + $0x28] sm:$0xff]
        %v3991 = vld [vmem:[#allocation2 + $0x30] sm:$0xff]
        %v3992 = vld [vmem:[#allocation2 + $0x38] sm:$0xff]
        %v3993 = vld [vmem:[#allocation2 + $0x40] sm:$0xff]
        %v3994 = vld [vmem:[#allocation2 + $0x48] sm:$0xff]
        %v3995 = vld [vmem:[#allocation2 + $0x50] sm:$0xff]
        %v3996 = vld [vmem:[#allocation2 + $0x58] sm:$0xff]
        %v3997 = vld [vmem:[#allocation2 + $0x60] sm:$0xff]
        %v3998 = vld [vmem:[#allocation2 + $0x68] sm:$0xff]
        %v3999 = vld [vmem:[#allocation2 + $0x70] sm:$0xff]
        %v4000 = vld [vmem:[#allocation2 + $0x78] sm:$0xff]
        %v4001 = vld [vmem:[#allocation2 + $0x80] sm:$0xff]
        %v4002 = vld [vmem:[#allocation2 + $0x88] sm:$0xff]
        %v4003 = vld [vmem:[#allocation2 + $0x90] sm:$0xff]
        %v4004 = vld [vmem:[#allocation2 + $0x98] sm:$0xff]
        %v4005 = vld [vmem:[#allocation2 + $0xa0] sm:$0xff]
        %v4006 = vld [vmem:[#allocation2 + $0xa8] sm:$0xff]
        %v4007 = vld [vmem:[#allocation2 + $0xb0] sm:$0xff]
        %v4008 = vld [vmem:[#allocation2 + $0xb8] sm:$0xff]
        %v4009 = vld [vmem:[#allocation2 + $0xc0] sm:$0xff]
        %v4010 = vld [vmem:[#allocation2 + $0xc8] sm:$0xff]
        %v4011 = vld [vmem:[#allocation2 + $0xd0] sm:$0xff]
        %v4012 = vld [vmem:[#allocation2 + $0xd8] sm:$0xff]
        %v4013 = vld [vmem:[#allocation2 + $0xe0] sm:$0xff]
        %v4014 = vld [vmem:[#allocation2 + $0xe8] sm:$0xff]
        %v4015 = vld [vmem:[#allocation2 + $0xf0] sm:$0xff]
        %v4016 = vld [vmem:[#allocation2 + $0xf8] sm:$0xff]
        %v4017 = vld [vmem:[#allocation2 + $0x100] sm:$0xff]
        %v4018 = vld [vmem:[#allocation2 + $0x108] sm:$0xff]
        %v4019 = vld [vmem:[#allocation2 + $0x110] sm:$0xff]
        %v4020 = vld [vmem:[#allocation2 + $0x118] sm:$0xff]
        %v4021 = vld [vmem:[#allocation2 + $0x120] sm:$0xff]
        %v4022 = vld [vmem:[#allocation2 + $0x128] sm:$0xff]
        %v4023 = vld [vmem:[#allocation2 + $0x130] sm:$0xff]
        %v4024 = vld [vmem:[#allocation2 + $0x138] sm:$0xff]
        %v4025 = vld [vmem:[#allocation2 + $0x140] sm:$0xff]
        %v4026 = vld [vmem:[#allocation2 + $0x148] sm:$0xff]
        %v4027 = vld [vmem:[#allocation2 + $0x150] sm:$0xff]
        %v4028 = vld [vmem:[#allocation2 + $0x158] sm:$0xff]
        %v4029 = vld [vmem:[#allocation2 + $0x160] sm:$0xff]
        %v4030 = vld [vmem:[#allocation2 + $0x168] sm:$0xff]
        %v4031 = vld [vmem:[#allocation2 + $0x170] sm:$0xff]
        %v4032 = vld [vmem:[#allocation2 + $0x178] sm:$0xff]
        %v4033 = vld [vmem:[#allocation2 + $0x180] sm:$0xff]
        %v4034 = vld [vmem:[#allocation2 + $0x188] sm:$0xff]
        %v4035 = vld [vmem:[#allocation2 + $0x190] sm:$0xff]
        %v4036 = vld [vmem:[#allocation2 + $0x198] sm:$0xff]
        %v4037 = vld [vmem:[#allocation2 + $0x1a0] sm:$0xff]
        %v4038 = vld [vmem:[#allocation2 + $0x1a8] sm:$0xff]
        %v4039 = vld [vmem:[#allocation2 + $0x1b0] sm:$0xff]
        %v4040 = vld [vmem:[#allocation2 + $0x1b8] sm:$0xff]
        %v4041 = vld [vmem:[#allocation2 + $0x1c0] sm:$0xff]
        %v4042 = vld [vmem:[#allocation2 + $0x1c8] sm:$0xff]
        %v4043 = vld [vmem:[#allocation2 + $0x1d0] sm:$0xff]
        %v4044 = vld [vmem:[#allocation2 + $0x1d8] sm:$0xff]
        %v4045 = vld [vmem:[#allocation2 + $0x1e0] sm:$0xff]
        %v4046 = vld [vmem:[#allocation2 + $0x1e8] sm:$0xff]
        %v4047 = vld [vmem:[#allocation2 + $0x1f0] sm:$0xff]
        %v4048 = vld [vmem:[#allocation2 + $0x1f8] sm:$0xff]
        %v4049 = vld [vmem:[#allocation2 + $0x200] sm:$0xff]
        %v4050 = vld [vmem:[#allocation2 + $0x208] sm:$0xff]
        %v4051 = vld [vmem:[#allocation2 + $0x210] sm:$0xff]
        %v4052 = vld [vmem:[#allocation2 + $0x218] sm:$0xff]
        %v4053 = vld [vmem:[#allocation2 + $0x220] sm:$0xff]
        %v4054 = vld [vmem:[#allocation2 + $0x228] sm:$0xff]
        %v4055 = vld [vmem:[#allocation2 + $0x230] sm:$0xff]
        %v4056 = vld [vmem:[#allocation2 + $0x238] sm:$0xff]
        %v4057 = vld [vmem:[#allocation2 + $0x240] sm:$0xff]
        %v4058 = vld [vmem:[#allocation2 + $0x248] sm:$0xff]
        %v4059 = vld [vmem:[#allocation2 + $0x250] sm:$0xff]
        %v4060 = vld [vmem:[#allocation2 + $0x258] sm:$0xff]
        %v4061 = vld [vmem:[#allocation2 + $0x260] sm:$0xff]
        %v4062 = vld [vmem:[#allocation2 + $0x268] sm:$0xff]
        %v4063 = vld [vmem:[#allocation2 + $0x270] sm:$0xff]
        %v4064 = vld [vmem:[#allocation2 + $0x278] sm:$0xff]
        %4065 = vmatprep.subr.mxu0 0.0
        %4066 = vmatpush1.msra.mxu0 %v4000
        %4067 = vmatprep.subr.mxu0 0.0
        %4068 = vmatpush1.msra.mxu0 %v3999
        %4069 = vmatprep.subr.mxu0 0.0
        %4070 = vmatpush1.msra.mxu0 %v3998
        %4071 = vmatprep.subr.mxu0 0.0
        %4072 = vmatpush1.msra.mxu0 %v3997
        %4073 = vmatprep.subr.mxu0 0.0
        %4074 = vmatpush1.msra.mxu0 %v3996
        %4075 = vmatprep.subr.mxu0 0.0
        %4076 = vmatpush1.msra.mxu0 %v3995
        %4077 = vmatprep.subr.mxu0 0.0
        %4078 = vmatpush1.msra.mxu0 %v3994
        %4079 = vmatprep.subr.mxu0 0.0
        %4080 = vmatpush1.msra.mxu0 %v3993
        %4081 = vmatprep.subr.mxu0 0.0
        %4082 = vmatpush1.msra.mxu0 %v3992
        %4083 = vmatprep.subr.mxu0 0.0
        %4084 = vmatpush1.msra.mxu0 %v3991
        %4085 = vmatprep.subr.mxu0 0.0
        %4086 = vmatpush1.msra.mxu0 %v3990
        %4087 = vmatprep.subr.mxu0 0.0
        %4088 = vmatpush1.msra.mxu0 %v3989
        %4089 = vmatprep.subr.mxu0 0.0
        %4090 = vmatpush1.msra.mxu0 %v3988
        %4091 = vmatprep.subr.mxu0 0.0
        %4092 = vmatpush1.msra.mxu0 %v3987
        %4093 = vmatprep.subr.mxu0 0.0
        %4094 = vmatpush1.msra.mxu0 %v3986
        %4095 = vmatprep.subr.mxu0 0.0
        %4096 = vmatpush1.msra.mxu0 %v3985
        %4097 = vmatprep.subr.mxu0 0.0
        %4098 = vmatpush2.msra.mxu0 %v4016
        %4099 = vmatprep.subr.mxu0 0.0
        %4100 = vmatpush2.msra.mxu0 %v4015
        %4101 = vmatprep.subr.mxu0 0.0
        %4102 = vmatpush2.msra.mxu0 %v4014
        %4103 = vmatprep.subr.mxu0 0.0
        %4104 = vmatpush2.msra.mxu0 %v4013
        %4105 = vmatprep.subr.mxu0 0.0
        %4106 = vmatpush2.msra.mxu0 %v4012
        %4107 = vmatprep.subr.mxu0 0.0
        %4108 = vmatpush2.msra.mxu0 %v4011
        %4109 = vmatprep.subr.mxu0 0.0
        %4110 = vmatpush2.msra.mxu0 %v4010
        %4111 = vmatprep.subr.mxu0 0.0
        %4112 = vmatpush2.msra.mxu0 %v4009
        %4113 = vmatprep.subr.mxu0 0.0
        %4114 = vmatpush2.msra.mxu0 %v4008
        %4115 = vmatprep.subr.mxu0 0.0
        %4116 = vmatpush2.msra.mxu0 %v4007
        %4117 = vmatprep.subr.mxu0 0.0
        %4118 = vmatpush2.msra.mxu0 %v4006
        %4119 = vmatprep.subr.mxu0 0.0
        %4120 = vmatpush2.msra.mxu0 %v4005
        %4121 = vmatprep.subr.mxu0 0.0
        %4122 = vmatpush2.msra.mxu0 %v4004
        %4123 = vmatprep.subr.mxu0 0.0
        %4124 = vmatpush2.msra.mxu0 %v4003
        %4125 = vmatprep.subr.mxu0 0.0
        %4126 = vmatpush2.msra.mxu0 %v4002
        %4127 = vmatprep.subr.mxu0 0.0
        %4128 = vmatpush2.msra.mxu0 %v4001
        %4129 = vmatprep.mubr.f32.mxu0 %v3946
        %4130 = vmatmul.mubr.f32.gmra.mxu0 %v3945
        %v4131 = vpop.f32.mrf.mxu0
        %v4132 = vadd.f32 0.0, %v4131
        %v4133 = vpop.f32.mrf.mxu0
        %4134 = vmatprep.mubr.f32.mxu0 %v3951
        %4135 = vmatmul.mubr.f32.gmra.mxu0 %v3950
        %v4136 = vpop.f32.mrf.mxu0
        %v4137 = vadd.f32 0.0, %v4136
        %v4138 = vpop.f32.mrf.mxu0
        %4139 = vmatprep.mubr.f32.mxu0 %v3956
        %4140 = vmatmul.mubr.f32.gmra.mxu0 %v3955
        %v4141 = vpop.f32.mrf.mxu0
        %v4142 = vadd.f32 0.0, %v4141
        %v4143 = vpop.f32.mrf.mxu0
        %4144 = vmatprep.mubr.f32.mxu0 %v3961
        %4145 = vmatmul.mubr.f32.gmra.mxu0 %v3960
        %v4146 = vpop.f32.mrf.mxu0
        %v4147 = vadd.f32 0.0, %v4146
        %v4148 = vpop.f32.mrf.mxu0
        %4149 = vmatprep.mubr.f32.mxu0 %v3966
        %4150 = vmatmul.mubr.f32.gmra.mxu0 %v3965
        %v4151 = vpop.f32.mrf.mxu0
        %v4152 = vadd.f32 0.0, %v4151
        %v4153 = vpop.f32.mrf.mxu0
        %4154 = vmatprep.mubr.f32.mxu0 %v3971
        %4155 = vmatmul.mubr.f32.gmra.mxu0 %v3970
        %v4156 = vpop.f32.mrf.mxu0
        %v4157 = vadd.f32 0.0, %v4156
        %v4158 = vpop.f32.mrf.mxu0
        %4159 = vmatprep.mubr.f32.mxu0 %v3976
        %4160 = vmatmul.mubr.f32.gmra.mxu0 %v3975
        %v4161 = vpop.f32.mrf.mxu0
        %v4162 = vadd.f32 0.0, %v4161
        %v4163 = vpop.f32.mrf.mxu0
        %4164 = vmatprep.mubr.f32.mxu0 %v3981
        %4165 = vmatmul.mubr.f32.gmra.mxu0 %v3980
        %v4166 = vpop.f32.mrf.mxu0
        %v4167 = vadd.f32 0.0, %v4166
        %v4168 = vpop.f32.mrf.mxu0
        %4169 = vdwg.mxu0
        %4170 = vmatprep.subr.mxu0 0.0
        %4171 = vmatpush1.msra.mxu0 %v4032
        %4172 = vmatprep.subr.mxu0 0.0
        %4173 = vmatpush1.msra.mxu0 %v4031
        %4174 = vmatprep.subr.mxu0 0.0
        %4175 = vmatpush1.msra.mxu0 %v4030
        %4176 = vmatprep.subr.mxu0 0.0
        %4177 = vmatpush1.msra.mxu0 %v4029
        %4178 = vmatprep.subr.mxu0 0.0
        %4179 = vmatpush1.msra.mxu0 %v4028
        %4180 = vmatprep.subr.mxu0 0.0
        %4181 = vmatpush1.msra.mxu0 %v4027
        %4182 = vmatprep.subr.mxu0 0.0
        %4183 = vmatpush1.msra.mxu0 %v4026
        %4184 = vmatprep.subr.mxu0 0.0
        %4185 = vmatpush1.msra.mxu0 %v4025
        %4186 = vmatprep.subr.mxu0 0.0
        %4187 = vmatpush1.msra.mxu0 %v4024
        %4188 = vmatprep.subr.mxu0 0.0
        %4189 = vmatpush1.msra.mxu0 %v4023
        %4190 = vmatprep.subr.mxu0 0.0
        %4191 = vmatpush1.msra.mxu0 %v4022
        %4192 = vmatprep.subr.mxu0 0.0
        %4193 = vmatpush1.msra.mxu0 %v4021
        %4194 = vmatprep.subr.mxu0 0.0
        %4195 = vmatpush1.msra.mxu0 %v4020
        %4196 = vmatprep.subr.mxu0 0.0
        %4197 = vmatpush1.msra.mxu0 %v4019
        %4198 = vmatprep.subr.mxu0 0.0
        %4199 = vmatpush1.msra.mxu0 %v4018
        %4200 = vmatprep.subr.mxu0 0.0
        %4201 = vmatpush1.msra.mxu0 %v4017
        %4202 = vmatprep.subr.mxu0 0.0
        %4203 = vmatpush2.msra.mxu0 %v4048
        %4204 = vmatprep.subr.mxu0 0.0
        %4205 = vmatpush2.msra.mxu0 %v4047
        %4206 = vmatprep.subr.mxu0 0.0
        %4207 = vmatpush2.msra.mxu0 %v4046
        %4208 = vmatprep.subr.mxu0 0.0
        %4209 = vmatpush2.msra.mxu0 %v4045
        %4210 = vmatprep.subr.mxu0 0.0
        %4211 = vmatpush2.msra.mxu0 %v4044
        %4212 = vmatprep.subr.mxu0 0.0
        %4213 = vmatpush2.msra.mxu0 %v4043
        %4214 = vmatprep.subr.mxu0 0.0
        %4215 = vmatpush2.msra.mxu0 %v4042
        %4216 = vmatprep.subr.mxu0 0.0
        %4217 = vmatpush2.msra.mxu0 %v4041
        %4218 = vmatprep.subr.mxu0 0.0
        %4219 = vmatpush2.msra.mxu0 %v4040
        %4220 = vmatprep.subr.mxu0 0.0
        %4221 = vmatpush2.msra.mxu0 %v4039
        %4222 = vmatprep.subr.mxu0 0.0
        %4223 = vmatpush2.msra.mxu0 %v4038
        %4224 = vmatprep.subr.mxu0 0.0
        %4225 = vmatpush2.msra.mxu0 %v4037
        %4226 = vmatprep.subr.mxu0 0.0
        %4227 = vmatpush2.msra.mxu0 %v4036
        %4228 = vmatprep.subr.mxu0 0.0
        %4229 = vmatpush2.msra.mxu0 %v4035
        %4230 = vmatprep.subr.mxu0 0.0
        %4231 = vmatpush2.msra.mxu0 %v4034
        %4232 = vmatprep.subr.mxu0 0.0
        %4233 = vmatpush2.msra.mxu0 %v4033
        %4234 = vmatprep.mubr.f32.mxu0 %v3948
        %4235 = vmatmul.mubr.f32.gmra.mxu0 %v3947
        %v4236 = vpop.f32.mrf.mxu0
        %v4237 = vadd.f32 %v4132, %v4236
        %v4238 = vpop.f32.mrf.mxu0
        %4239 = vmatprep.mubr.f32.mxu0 %v3953
        %4240 = vmatmul.mubr.f32.gmra.mxu0 %v3952
        %v4241 = vpop.f32.mrf.mxu0
        %v4242 = vadd.f32 %v4137, %v4241
        %v4243 = vpop.f32.mrf.mxu0
        %4244 = vmatprep.mubr.f32.mxu0 %v3958
        %4245 = vmatmul.mubr.f32.gmra.mxu0 %v3957
        %v4246 = vpop.f32.mrf.mxu0
        %v4247 = vadd.f32 %v4142, %v4246
        %v4248 = vpop.f32.mrf.mxu0
        %4249 = vmatprep.mubr.f32.mxu0 %v3963
        %4250 = vmatmul.mubr.f32.gmra.mxu0 %v3962
        %v4251 = vpop.f32.mrf.mxu0
        %v4252 = vadd.f32 %v4147, %v4251
        %v4253 = vpop.f32.mrf.mxu0
        %4254 = vmatprep.mubr.f32.mxu0 %v3968
        %4255 = vmatmul.mubr.f32.gmra.mxu0 %v3967
        %v4256 = vpop.f32.mrf.mxu0
        %v4257 = vadd.f32 %v4152, %v4256
        %v4258 = vpop.f32.mrf.mxu0
        %4259 = vmatprep.mubr.f32.mxu0 %v3973
        %4260 = vmatmul.mubr.f32.gmra.mxu0 %v3972
        %v4261 = vpop.f32.mrf.mxu0
        %v4262 = vadd.f32 %v4157, %v4261
        %v4263 = vpop.f32.mrf.mxu0
        %4264 = vmatprep.mubr.f32.mxu0 %v3978
        %4265 = vmatmul.mubr.f32.gmra.mxu0 %v3977
        %v4266 = vpop.f32.mrf.mxu0
        %v4267 = vadd.f32 %v4162, %v4266
        %v4268 = vpop.f32.mrf.mxu0
        %4269 = vmatprep.mubr.f32.mxu0 %v3983
        %4270 = vmatmul.mubr.f32.gmra.mxu0 %v3982
        %v4271 = vpop.f32.mrf.mxu0
        %v4272 = vadd.f32 %v4167, %v4271
        %v4273 = vpop.f32.mrf.mxu0
        %4274 = vdwg.mxu0
        %4275 = vmatprep.subr.mxu0 0.0
        %4276 = vmatpush1.msra.mxu0 %v4064
        %4277 = vmatprep.subr.mxu0 0.0
        %4278 = vmatpush1.msra.mxu0 %v4063
        %4279 = vmatprep.subr.mxu0 0.0
        %4280 = vmatpush1.msra.mxu0 %v4062
        %4281 = vmatprep.subr.mxu0 0.0
        %4282 = vmatpush1.msra.mxu0 %v4061
        %4283 = vmatprep.subr.mxu0 0.0
        %4284 = vmatpush1.msra.mxu0 %v4060
        %4285 = vmatprep.subr.mxu0 0.0
        %4286 = vmatpush1.msra.mxu0 %v4059
        %4287 = vmatprep.subr.mxu0 0.0
        %4288 = vmatpush1.msra.mxu0 %v4058
        %4289 = vmatprep.subr.mxu0 0.0
        %4290 = vmatpush1.msra.mxu0 %v4057
        %4291 = vmatprep.subr.mxu0 0.0
        %4292 = vmatpush1.msra.mxu0 %v4056
        %4293 = vmatprep.subr.mxu0 0.0
        %4294 = vmatpush1.msra.mxu0 %v4055
        %4295 = vmatprep.subr.mxu0 0.0
        %4296 = vmatpush1.msra.mxu0 %v4054
        %4297 = vmatprep.subr.mxu0 0.0
        %4298 = vmatpush1.msra.mxu0 %v4053
        %4299 = vmatprep.subr.mxu0 0.0
        %4300 = vmatpush1.msra.mxu0 %v4052
        %4301 = vmatprep.subr.mxu0 0.0
        %4302 = vmatpush1.msra.mxu0 %v4051
        %4303 = vmatprep.subr.mxu0 0.0
        %4304 = vmatpush1.msra.mxu0 %v4050
        %4305 = vmatprep.subr.mxu0 0.0
        %4306 = vmatpush1.msra.mxu0 %v4049
        %4307 = vmatprep.subr.mxu0 0.0
        %4308 = vmatpush2.msra.mxu0 0.0
        %4309 = vmatprep.subr.mxu0 0.0
        %4310 = vmatpush2.msra.mxu0 0.0
        %4311 = vmatprep.subr.mxu0 0.0
        %4312 = vmatpush2.msra.mxu0 0.0
        %4313 = vmatprep.subr.mxu0 0.0
        %4314 = vmatpush2.msra.mxu0 0.0
        %4315 = vmatprep.subr.mxu0 0.0
        %4316 = vmatpush2.msra.mxu0 0.0
        %4317 = vmatprep.subr.mxu0 0.0
        %4318 = vmatpush2.msra.mxu0 0.0
        %4319 = vmatprep.subr.mxu0 0.0
        %4320 = vmatpush2.msra.mxu0 0.0
        %4321 = vmatprep.subr.mxu0 0.0
        %4322 = vmatpush2.msra.mxu0 0.0
        %4323 = vmatprep.subr.mxu0 0.0
        %4324 = vmatpush2.msra.mxu0 0.0
        %4325 = vmatprep.subr.mxu0 0.0
        %4326 = vmatpush2.msra.mxu0 0.0
        %4327 = vmatprep.subr.mxu0 0.0
        %4328 = vmatpush2.msra.mxu0 0.0
        %4329 = vmatprep.subr.mxu0 0.0
        %4330 = vmatpush2.msra.mxu0 0.0
        %4331 = vmatprep.subr.mxu0 0.0
        %4332 = vmatpush2.msra.mxu0 0.0
        %4333 = vmatprep.subr.mxu0 0.0
        %4334 = vmatpush2.msra.mxu0 0.0
        %4335 = vmatprep.subr.mxu0 0.0
        %4336 = vmatpush2.msra.mxu0 0.0
        %4337 = vmatprep.subr.mxu0 0.0
        %4338 = vmatpush2.msra.mxu0 0.0
        %4339 = vmatprep.mubr.f32.mxu0 0.0
        %4340 = vmatmul.mubr.f32.gmra.mxu0 %v3949
        %v4341 = vpop.f32.mrf.mxu0
        %v4342 = vadd.f32 %v4237, %v4341
        %v4343 = vpop.f32.mrf.mxu0
        %4344 = vmatprep.mubr.f32.mxu0 0.0
        %4345 = vmatmul.mubr.f32.gmra.mxu0 %v3954
        %v4346 = vpop.f32.mrf.mxu0
        %v4347 = vadd.f32 %v4242, %v4346
        %v4348 = vpop.f32.mrf.mxu0
        %4349 = vmatprep.mubr.f32.mxu0 0.0
        %4350 = vmatmul.mubr.f32.gmra.mxu0 %v3959
        %v4351 = vpop.f32.mrf.mxu0
        %v4352 = vadd.f32 %v4247, %v4351
        %v4353 = vpop.f32.mrf.mxu0
        %4354 = vmatprep.mubr.f32.mxu0 0.0
        %4355 = vmatmul.mubr.f32.gmra.mxu0 %v3964
        %v4356 = vpop.f32.mrf.mxu0
        %v4357 = vadd.f32 %v4252, %v4356
        %v4358 = vpop.f32.mrf.mxu0
        %4359 = vmatprep.mubr.f32.mxu0 0.0
        %4360 = vmatmul.mubr.f32.gmra.mxu0 %v3969
        %v4361 = vpop.f32.mrf.mxu0
        %v4362 = vadd.f32 %v4257, %v4361
        %v4363 = vpop.f32.mrf.mxu0
        %4364 = vmatprep.mubr.f32.mxu0 0.0
        %4365 = vmatmul.mubr.f32.gmra.mxu0 %v3974
        %v4366 = vpop.f32.mrf.mxu0
        %v4367 = vadd.f32 %v4262, %v4366
        %v4368 = vpop.f32.mrf.mxu0
        %4369 = vmatprep.mubr.f32.mxu0 0.0
        %4370 = vmatmul.mubr.f32.gmra.mxu0 %v3979
        %v4371 = vpop.f32.mrf.mxu0
        %v4372 = vadd.f32 %v4267, %v4371
        %v4373 = vpop.f32.mrf.mxu0
        %4374 = vmatprep.mubr.f32.mxu0 0.0
        %4375 = vmatmul.mubr.f32.gmra.mxu0 %v3984
        %v4376 = vpop.f32.mrf.mxu0
        %v4377 = vadd.f32 %v4272, %v4376
        %v4378 = vpop.f32.mrf.mxu0
        %4379 = vdwg.mxu0
        %4380 = vadd.xlane.f32.xlu0 %v4342
        %v4381 = vpop.xlane.xlu0 %4380
        %4382 = vadd.xlane.f32.xlu0 %v4347
        %v4383 = vpop.xlane.xlu0 %4382
        %4384 = vadd.xlane.f32.xlu0 %v4352
        %v4385 = vpop.xlane.xlu0 %4384
        %4386 = vadd.xlane.f32.xlu0 %v4357
        %v4387 = vpop.xlane.xlu0 %4386
        %4388 = vadd.xlane.f32.xlu0 %v4362
        %v4389 = vpop.xlane.xlu0 %4388
        %4390 = vadd.xlane.f32.xlu0 %v4367
        %v4391 = vpop.xlane.xlu0 %4390
        %4392 = vadd.xlane.f32.xlu0 %v4372
        %v4393 = vpop.xlane.xlu0 %4392
        %4394 = vadd.xlane.f32.xlu0 %v4377
        %v4395 = vpop.xlane.xlu0 %4394
        %v4396 = vmul.f32 %v4381, 0.015625
        %v4397 = vmul.f32 %v4383, 0.015625
        %v4398 = vmul.f32 %v4385, 0.015625
        %v4399 = vmul.f32 %v4387, 0.015625
        %v4400 = vmul.f32 %v4389, 0.015625
        %v4401 = vmul.f32 %v4391, 0.015625
        %v4402 = vmul.f32 %v4393, 0.015625
        %v4403 = vmul.f32 %v4395, 0.015625
        %v4404 = vld [vmem:[%s8] sm:$0xff]
        %v4405 = vld [vmem:[%s8 + $0x8] sm:$0xff]
        %v4406 = vld [vmem:[%s8 + $0x10] sm:$0xff]
        %v4407 = vld [vmem:[%s8 + $0x18] sm:$0xff]
        %v4408 = vld [vmem:[%s8 + $0x20] sm:$0xff]
        %v4409 = vld [vmem:[%s8 + $0x28] sm:$0xff]
        %v4410 = vld [vmem:[%s8 + $0x30] sm:$0xff]
        %v4411 = vld [vmem:[%s8 + $0x38] sm:$0xff]
        %v4412 = vadd.f32 %v4396, %v4404
        %v4413 = vadd.f32 %v4397, %v4405
        %v4414 = vadd.f32 %v4398, %v4406
        %v4415 = vadd.f32 %v4399, %v4407
        %v4416 = vadd.f32 %v4400, %v4408
        %v4417 = vadd.f32 %v4401, %v4409
        %v4418 = vadd.f32 %v4402, %v4410
        %v4419 = vadd.f32 %v4403, %v4411
        %vm4420 = vcmp.gt.f32.partialorder %v4412, 0.0
        %vm4421 = vcmp.gt.f32.partialorder %v4413, 0.0
        %vm4422 = vcmp.gt.f32.partialorder %v4414, 0.0
        %vm4423 = vcmp.gt.f32.partialorder %v4415, 0.0
        %vm4424 = vcmp.gt.f32.partialorder %v4416, 0.0
        %vm4425 = vcmp.gt.f32.partialorder %v4417, 0.0
        %vm4426 = vcmp.gt.f32.partialorder %v4418, 0.0
        %vm4427 = vcmp.gt.f32.partialorder %v4419, 0.0
        %v4428 = vmul.f32 %v4412, 0.01
        %v4429 = vmul.f32 %v4413, 0.01
        %v4430 = vmul.f32 %v4414, 0.01
        %v4431 = vmul.f32 %v4415, 0.01
        %v4432 = vmul.f32 %v4416, 0.01
        %v4433 = vmul.f32 %v4417, 0.01
        %v4434 = vmul.f32 %v4418, 0.01
        %v4435 = vmul.f32 %v4419, 0.01
        %v4436 = vsel %vm4420, %v4412, %v4428
        %v4437 = vsel %vm4421, %v4413, %v4429
        %v4438 = vsel %vm4422, %v4414, %v4430
        %v4439 = vsel %vm4423, %v4415, %v4431
        %v4440 = vsel %vm4424, %v4416, %v4432
        %v4441 = vsel %vm4425, %v4417, %v4433
        %v4442 = vsel %vm4426, %v4418, %v4434
        %v4443 = vsel %vm4427, %v4419, %v4435
        %v4444 = vlaneseq
        %v4445 = vshrl.u32 %v4444, 7
        %v4446 = vadd.s32 %v4445, 8
        %v4447 = vadd.s32 %v4445, 16
        %v4448 = vadd.s32 %v4445, 24
        %v4449 = vadd.s32 %v4445, 32
        %v4450 = vadd.s32 %v4445, 40
        %v4451 = vadd.s32 %v4445, 48
        %v4452 = vadd.s32 %v4445, 56
        %vm4453 = vcmp.eq.s32.totalorder %v4445, %v2720
        %vm4454 = vcmp.eq.s32.totalorder %v4446, %v2720
        %vm4455 = vcmp.eq.s32.totalorder %v4447, %v2720
        %vm4456 = vcmp.eq.s32.totalorder %v4448, %v2720
        %vm4457 = vcmp.eq.s32.totalorder %v4449, %v2720
        %vm4458 = vcmp.eq.s32.totalorder %v4450, %v2720
        %vm4459 = vcmp.eq.s32.totalorder %v4451, %v2720
        %vm4460 = vcmp.eq.s32.totalorder %v4452, %v2720
        %4462 = vset.pattern.permute.xlu0 0
        %4463 = vperm.xlu0 %4462, %v4436
        %v4464 = vpop.permute.xlu0 %4463
        %4467 = vset.pattern.permute.xlu0 0
        %4468 = vperm.xlu0 %4467, %v4437
        %v4469 = vpop.permute.xlu0 %4468
        %4472 = vset.pattern.permute.xlu0 0
        %4473 = vperm.xlu0 %4472, %v4438
        %v4474 = vpop.permute.xlu0 %4473
        %4477 = vset.pattern.permute.xlu0 0
        %4478 = vperm.xlu0 %4477, %v4439
        %v4479 = vpop.permute.xlu0 %4478
        %4482 = vset.pattern.permute.xlu0 0
        %4483 = vperm.xlu0 %4482, %v4440
        %v4484 = vpop.permute.xlu0 %4483
        %4487 = vset.pattern.permute.xlu0 0
        %4488 = vperm.xlu0 %4487, %v4441
        %v4489 = vpop.permute.xlu0 %4488
        %4492 = vset.pattern.permute.xlu0 0
        %4493 = vperm.xlu0 %4492, %v4442
        %v4494 = vpop.permute.xlu0 %4493
        %4497 = vset.pattern.permute.xlu0 0
        %4498 = vperm.xlu0 %4497, %v4443
        %v4499 = vpop.permute.xlu0 %4498
        %v4501 = vsel %vm4453, %v4464, 0.0
        %v4502 = vsel %vm4454, %v4469, 0.0
        %v4503 = vsel %vm4455, %v4474, 0.0
        %v4504 = vsel %vm4456, %v4479, 0.0
        %v4505 = vsel %vm4457, %v4484, 0.0
        %v4506 = vsel %vm4458, %v4489, 0.0
        %v4507 = vsel %vm4459, %v4494, 0.0
        %v4508 = vsel %vm4460, %v4499, 0.0
        %v4509 = vsel %vm2478, %v4501, 0.0
        %v4510 = vsel %vm2478, %v4502, 0.0
        %v4511 = vadd.f32 %v4509, %v4510
        %v4512 = vsel %vm2478, %v4503, 0.0
        %v4513 = vadd.f32 %v4511, %v4512
        %v4514 = vsel %vm2478, %v4504, 0.0
        %v4515 = vadd.f32 %v4513, %v4514
        %v4516 = vsel %vm2478, %v4505, 0.0
        %v4517 = vadd.f32 %v4515, %v4516
        %v4518 = vsel %vm2478, %v4506, 0.0
        %v4519 = vadd.f32 %v4517, %v4518
        %v4520 = vsel %vm2478, %v4507, 0.0
        %v4521 = vadd.f32 %v4519, %v4520
        %v4522 = vsel %vm2478, %v4508, 0.0
        %v4523 = vadd.f32 %v4521, %v4522
        %v4524 = vrot.slane %v4523, 4
        %v4525 = vadd.f32 %v4523, %v4524
        %v4526 = vrot.slane %v4525, 2
        %v4527 = vadd.f32 %v4525, %v4526
        %v4528 = vrot.slane %v4527, 1
        %v4529 = vadd.f32 %v4527, %v4528
        %v4530 = vld [vmem:[%s9] sm:$0xff]
        %v4531 = vld [vmem:[%s9 + $0x8] sm:$0xff]
        %v4532 = vld [vmem:[%s9 + $0x10] sm:$0xff]
        %v4533 = vld [vmem:[%s9 + $0x18] sm:$0xff]
        %v4534 = vld [vmem:[%s9 + $0x20] sm:$0xff]
        %v4535 = vld [vmem:[%s9 + $0x28] sm:$0xff]
        %v4536 = vld [vmem:[%s9 + $0x30] sm:$0xff]
        %v4537 = vld [vmem:[%s9 + $0x38] sm:$0xff]
        %v4538 = vld [vmem:[%s10] sm:$0x1]
        %v4540 = vsel %vm2478, %v4529, 0
        %4542 = vmatprep.subr.mxu0 0.0
        %4543 = vmatpush1.msra.mxu0 0.0
        %4544 = vmatprep.subr.mxu0 0.0
        %4545 = vmatpush1.msra.mxu0 0.0
        %4546 = vmatprep.subr.mxu0 0.0
        %4547 = vmatpush1.msra.mxu0 0.0
        %4548 = vmatprep.subr.mxu0 0.0
        %4549 = vmatpush1.msra.mxu0 0.0
        %4550 = vmatprep.subr.mxu0 0.0
        %4551 = vmatpush1.msra.mxu0 0.0
        %4552 = vmatprep.subr.mxu0 0.0
        %4553 = vmatpush1.msra.mxu0 0.0
        %4554 = vmatprep.subr.mxu0 0.0
        %4555 = vmatpush1.msra.mxu0 0.0
        %4556 = vmatprep.subr.mxu0 0.0
        %4557 = vmatpush1.msra.mxu0 0.0
        %4558 = vmatprep.subr.mxu0 0.0
        %4559 = vmatpush1.msra.mxu0 %v4537
        %4560 = vmatprep.subr.mxu0 0.0
        %4561 = vmatpush1.msra.mxu0 %v4536
        %4562 = vmatprep.subr.mxu0 0.0
        %4563 = vmatpush1.msra.mxu0 %v4535
        %4564 = vmatprep.subr.mxu0 0.0
        %4565 = vmatpush1.msra.mxu0 %v4534
        %4566 = vmatprep.subr.mxu0 0.0
        %4567 = vmatpush1.msra.mxu0 %v4533
        %4568 = vmatprep.subr.mxu0 0.0
        %4569 = vmatpush1.msra.mxu0 %v4532
        %4570 = vmatprep.subr.mxu0 0.0
        %4571 = vmatpush1.msra.mxu0 %v4531
        %4572 = vmatprep.subr.mxu0 0.0
        %4573 = vmatpush1.msra.mxu0 %v4530
        %4574 = vmatprep.subr.mxu0 0.0
        %4575 = vmatpush2.msra.mxu0 0.0
        %4576 = vmatprep.subr.mxu0 0.0
        %4577 = vmatpush2.msra.mxu0 0.0
        %4578 = vmatprep.subr.mxu0 0.0
        %4579 = vmatpush2.msra.mxu0 0.0
        %4580 = vmatprep.subr.mxu0 0.0
        %4581 = vmatpush2.msra.mxu0 0.0
        %4582 = vmatprep.subr.mxu0 0.0
        %4583 = vmatpush2.msra.mxu0 0.0
        %4584 = vmatprep.subr.mxu0 0.0
        %4585 = vmatpush2.msra.mxu0 0.0
        %4586 = vmatprep.subr.mxu0 0.0
        %4587 = vmatpush2.msra.mxu0 0.0
        %4588 = vmatprep.subr.mxu0 0.0
        %4589 = vmatpush2.msra.mxu0 0.0
        %4590 = vmatprep.subr.mxu0 0.0
        %4591 = vmatpush2.msra.mxu0 0.0
        %4592 = vmatprep.subr.mxu0 0.0
        %4593 = vmatpush2.msra.mxu0 0.0
        %4594 = vmatprep.subr.mxu0 0.0
        %4595 = vmatpush2.msra.mxu0 0.0
        %4596 = vmatprep.subr.mxu0 0.0
        %4597 = vmatpush2.msra.mxu0 0.0
        %4598 = vmatprep.subr.mxu0 0.0
        %4599 = vmatpush2.msra.mxu0 0.0
        %4600 = vmatprep.subr.mxu0 0.0
        %4601 = vmatpush2.msra.mxu0 0.0
        %4602 = vmatprep.subr.mxu0 0.0
        %4603 = vmatpush2.msra.mxu0 0.0
        %4604 = vmatprep.subr.mxu0 0.0
        %4605 = vmatpush2.msra.mxu0 0.0
        %4606 = vmatprep.mubr.f32.mxu0 0.0
        %4607 = vmatmul.mubr.f32.gmra.mxu0 %v4540
        %v4608 = vpop.f32.mrf.mxu0
        %v4609 = vadd.f32 %v4538, %v4608
        %v4610 = vpop.f32.mrf.mxu0
        %4611 = vdwg.mxu0
        %v4612 = vld [vmem:[%s15] sm:$0xff]
        %v4613 = vld [vmem:[%s15 + $0x8] sm:$0xff]
        %v4614 = vld [vmem:[%s15 + $0x10] sm:$0xff]
        %v4615 = vld [vmem:[%s15 + $0x18] sm:$0xff]
        %v4616 = vld [vmem:[%s15 + $0x20] sm:$0xff]
        %v4617 = vld [vmem:[%s15 + $0x28] sm:$0xff]
        %v4618 = vld [vmem:[%s15 + $0x30] sm:$0xff]
        %v4619 = vld [vmem:[%s15 + $0x38] sm:$0xff]
        %v4620 = vld [vmem:[%s15 + $0x40] sm:$0xff]
        %v4621 = vld [vmem:[%s15 + $0x48] sm:$0xff]
        %v4622 = vld [vmem:[%s15 + $0x50] sm:$0xff]
        %v4623 = vld [vmem:[%s15 + $0x58] sm:$0xff]
        %v4624 = vld [vmem:[%s15 + $0x60] sm:$0xff]
        %v4625 = vld [vmem:[%s15 + $0x68] sm:$0xff]
        %v4626 = vld [vmem:[%s15 + $0x70] sm:$0xff]
        %v4627 = vld [vmem:[%s15 + $0x78] sm:$0xff]
        %v4628 = vld [vmem:[#allocation3] sm:$0xff]
        %v4629 = vld [vmem:[#allocation3 + $0x8] sm:$0xff]
        %v4630 = vld [vmem:[#allocation3 + $0x10] sm:$0xff]
        %v4631 = vld [vmem:[#allocation3 + $0x18] sm:$0xff]
        %v4632 = vld [vmem:[#allocation3 + $0x20] sm:$0xff]
        %v4633 = vld [vmem:[#allocation3 + $0x28] sm:$0xff]
        %v4634 = vld [vmem:[#allocation3 + $0x30] sm:$0xff]
        %v4635 = vld [vmem:[#allocation3 + $0x38] sm:$0xff]
        %v4636 = vld [vmem:[#allocation3 + $0x40] sm:$0xff]
        %v4637 = vld [vmem:[#allocation3 + $0x48] sm:$0xff]
        %v4638 = vld [vmem:[#allocation3 + $0x50] sm:$0xff]
        %v4639 = vld [vmem:[#allocation3 + $0x58] sm:$0xff]
        %v4640 = vld [vmem:[#allocation3 + $0x60] sm:$0xff]
        %v4641 = vld [vmem:[#allocation3 + $0x68] sm:$0xff]
        %v4642 = vld [vmem:[#allocation3 + $0x70] sm:$0xff]
        %v4643 = vld [vmem:[#allocation3 + $0x78] sm:$0xff]
        %v4644 = vld [vmem:[#allocation3 + $0x80] sm:$0xff]
        %v4645 = vld [vmem:[#allocation3 + $0x88] sm:$0xff]
        %v4646 = vld [vmem:[#allocation3 + $0x90] sm:$0xff]
        %v4647 = vld [vmem:[#allocation3 + $0x98] sm:$0xff]
        %v4648 = vld [vmem:[#allocation3 + $0xa0] sm:$0xff]
        %v4649 = vld [vmem:[#allocation3 + $0xa8] sm:$0xff]
        %v4650 = vld [vmem:[#allocation3 + $0xb0] sm:$0xff]
        %v4651 = vld [vmem:[#allocation3 + $0xb8] sm:$0xff]
        %v4652 = vld [vmem:[#allocation3 + $0xc0] sm:$0xff]
        %v4653 = vld [vmem:[#allocation3 + $0xc8] sm:$0xff]
        %v4654 = vld [vmem:[#allocation3 + $0xd0] sm:$0xff]
        %v4655 = vld [vmem:[#allocation3 + $0xd8] sm:$0xff]
        %v4656 = vld [vmem:[#allocation3 + $0xe0] sm:$0xff]
        %v4657 = vld [vmem:[#allocation3 + $0xe8] sm:$0xff]
        %v4658 = vld [vmem:[#allocation3 + $0xf0] sm:$0xff]
        %v4659 = vld [vmem:[#allocation3 + $0xf8] sm:$0xff]
        %4660 = vmatprep.subr.mxu0 0.0
        %4661 = vmatpush1.msra.mxu0 %v4643
        %4662 = vmatprep.subr.mxu0 0.0
        %4663 = vmatpush1.msra.mxu0 %v4642
        %4664 = vmatprep.subr.mxu0 0.0
        %4665 = vmatpush1.msra.mxu0 %v4641
        %4666 = vmatprep.subr.mxu0 0.0
        %4667 = vmatpush1.msra.mxu0 %v4640
        %4668 = vmatprep.subr.mxu0 0.0
        %4669 = vmatpush1.msra.mxu0 %v4639
        %4670 = vmatprep.subr.mxu0 0.0
        %4671 = vmatpush1.msra.mxu0 %v4638
        %4672 = vmatprep.subr.mxu0 0.0
        %4673 = vmatpush1.msra.mxu0 %v4637
        %4674 = vmatprep.subr.mxu0 0.0
        %4675 = vmatpush1.msra.mxu0 %v4636
        %4676 = vmatprep.subr.mxu0 0.0
        %4677 = vmatpush1.msra.mxu0 %v4635
        %4678 = vmatprep.subr.mxu0 0.0
        %4679 = vmatpush1.msra.mxu0 %v4634
        %4680 = vmatprep.subr.mxu0 0.0
        %4681 = vmatpush1.msra.mxu0 %v4633
        %4682 = vmatprep.subr.mxu0 0.0
        %4683 = vmatpush1.msra.mxu0 %v4632
        %4684 = vmatprep.subr.mxu0 0.0
        %4685 = vmatpush1.msra.mxu0 %v4631
        %4686 = vmatprep.subr.mxu0 0.0
        %4687 = vmatpush1.msra.mxu0 %v4630
        %4688 = vmatprep.subr.mxu0 0.0
        %4689 = vmatpush1.msra.mxu0 %v4629
        %4690 = vmatprep.subr.mxu0 0.0
        %4691 = vmatpush1.msra.mxu0 %v4628
        %4692 = vmatprep.subr.mxu0 0.0
        %4693 = vmatpush2.msra.mxu0 %v4659
        %4694 = vmatprep.subr.mxu0 0.0
        %4695 = vmatpush2.msra.mxu0 %v4658
        %4696 = vmatprep.subr.mxu0 0.0
        %4697 = vmatpush2.msra.mxu0 %v4657
        %4698 = vmatprep.subr.mxu0 0.0
        %4699 = vmatpush2.msra.mxu0 %v4656
        %4700 = vmatprep.subr.mxu0 0.0
        %4701 = vmatpush2.msra.mxu0 %v4655
        %4702 = vmatprep.subr.mxu0 0.0
        %4703 = vmatpush2.msra.mxu0 %v4654
        %4704 = vmatprep.subr.mxu0 0.0
        %4705 = vmatpush2.msra.mxu0 %v4653
        %4706 = vmatprep.subr.mxu0 0.0
        %4707 = vmatpush2.msra.mxu0 %v4652
        %4708 = vmatprep.subr.mxu0 0.0
        %4709 = vmatpush2.msra.mxu0 %v4651
        %4710 = vmatprep.subr.mxu0 0.0
        %4711 = vmatpush2.msra.mxu0 %v4650
        %4712 = vmatprep.subr.mxu0 0.0
        %4713 = vmatpush2.msra.mxu0 %v4649
        %4714 = vmatprep.subr.mxu0 0.0
        %4715 = vmatpush2.msra.mxu0 %v4648
        %4716 = vmatprep.subr.mxu0 0.0
        %4717 = vmatpush2.msra.mxu0 %v4647
        %4718 = vmatprep.subr.mxu0 0.0
        %4719 = vmatpush2.msra.mxu0 %v4646
        %4720 = vmatprep.subr.mxu0 0.0
        %4721 = vmatpush2.msra.mxu0 %v4645
        %4722 = vmatprep.subr.mxu0 0.0
        %4723 = vmatpush2.msra.mxu0 %v4644
        %4724 = vmatprep.mubr.f32.mxu0 %v4613
        %4725 = vmatmul.mubr.f32.gmra.mxu0 %v4612
        %v4726 = vpop.f32.mrf.mxu0
        %v4727 = vadd.f32 0.0, %v4726
        %v4728 = vpop.f32.mrf.mxu0
        %4729 = vmatprep.mubr.f32.mxu0 %v4615
        %4730 = vmatmul.mubr.f32.gmra.mxu0 %v4614
        %v4731 = vpop.f32.mrf.mxu0
        %v4732 = vadd.f32 0.0, %v4731
        %v4733 = vpop.f32.mrf.mxu0
        %4734 = vmatprep.mubr.f32.mxu0 %v4617
        %4735 = vmatmul.mubr.f32.gmra.mxu0 %v4616
        %v4736 = vpop.f32.mrf.mxu0
        %v4737 = vadd.f32 0.0, %v4736
        %v4738 = vpop.f32.mrf.mxu0
        %4739 = vmatprep.mubr.f32.mxu0 %v4619
        %4740 = vmatmul.mubr.f32.gmra.mxu0 %v4618
        %v4741 = vpop.f32.mrf.mxu0
        %v4742 = vadd.f32 0.0, %v4741
        %v4743 = vpop.f32.mrf.mxu0
        %4744 = vmatprep.mubr.f32.mxu0 %v4621
        %4745 = vmatmul.mubr.f32.gmra.mxu0 %v4620
        %v4746 = vpop.f32.mrf.mxu0
        %v4747 = vadd.f32 0.0, %v4746
        %v4748 = vpop.f32.mrf.mxu0
        %4749 = vmatprep.mubr.f32.mxu0 %v4623
        %4750 = vmatmul.mubr.f32.gmra.mxu0 %v4622
        %v4751 = vpop.f32.mrf.mxu0
        %v4752 = vadd.f32 0.0, %v4751
        %v4753 = vpop.f32.mrf.mxu0
        %4754 = vmatprep.mubr.f32.mxu0 %v4625
        %4755 = vmatmul.mubr.f32.gmra.mxu0 %v4624
        %v4756 = vpop.f32.mrf.mxu0
        %v4757 = vadd.f32 0.0, %v4756
        %v4758 = vpop.f32.mrf.mxu0
        %4759 = vmatprep.mubr.f32.mxu0 %v4627
        %4760 = vmatmul.mubr.f32.gmra.mxu0 %v4626
        %v4761 = vpop.f32.mrf.mxu0
        %v4762 = vadd.f32 0.0, %v4761
        %v4763 = vpop.f32.mrf.mxu0
        %4764 = vdwg.mxu0
        %4765 = vadd.xlane.f32.xlu0 %v4727
        %v4766 = vpop.xlane.xlu0 %4765
        %4767 = vadd.xlane.f32.xlu0 %v4732
        %v4768 = vpop.xlane.xlu0 %4767
        %4769 = vadd.xlane.f32.xlu0 %v4737
        %v4770 = vpop.xlane.xlu0 %4769
        %4771 = vadd.xlane.f32.xlu0 %v4742
        %v4772 = vpop.xlane.xlu0 %4771
        %4773 = vadd.xlane.f32.xlu0 %v4747
        %v4774 = vpop.xlane.xlu0 %4773
        %4775 = vadd.xlane.f32.xlu0 %v4752
        %v4776 = vpop.xlane.xlu0 %4775
        %4777 = vadd.xlane.f32.xlu0 %v4757
        %v4778 = vpop.xlane.xlu0 %4777
        %4779 = vadd.xlane.f32.xlu0 %v4762
        %v4780 = vpop.xlane.xlu0 %4779
        %v4781 = vmul.f32 %v4766, 0.03125
        %v4782 = vmul.f32 %v4768, 0.03125
        %v4783 = vmul.f32 %v4770, 0.03125
        %v4784 = vmul.f32 %v4772, 0.03125
        %v4785 = vmul.f32 %v4774, 0.03125
        %v4786 = vmul.f32 %v4776, 0.03125
        %v4787 = vmul.f32 %v4778, 0.03125
        %v4788 = vmul.f32 %v4780, 0.03125
        %v4789 = vld [vmem:[%s16] sm:$0xff]
        %v4790 = vld [vmem:[%s16 + $0x8] sm:$0xff]
        %v4791 = vld [vmem:[%s16 + $0x10] sm:$0xff]
        %v4792 = vld [vmem:[%s16 + $0x18] sm:$0xff]
        %v4793 = vld [vmem:[%s16 + $0x20] sm:$0xff]
        %v4794 = vld [vmem:[%s16 + $0x28] sm:$0xff]
        %v4795 = vld [vmem:[%s16 + $0x30] sm:$0xff]
        %v4796 = vld [vmem:[%s16 + $0x38] sm:$0xff]
        %v4797 = vadd.f32 %v4781, %v4789
        %v4798 = vadd.f32 %v4782, %v4790
        %v4799 = vadd.f32 %v4783, %v4791
        %v4800 = vadd.f32 %v4784, %v4792
        %v4801 = vadd.f32 %v4785, %v4793
        %v4802 = vadd.f32 %v4786, %v4794
        %v4803 = vadd.f32 %v4787, %v4795
        %v4804 = vadd.f32 %v4788, %v4796
        %vm4805 = vcmp.gt.f32.partialorder %v4797, 0.0
        %vm4806 = vcmp.gt.f32.partialorder %v4798, 0.0
        %vm4807 = vcmp.gt.f32.partialorder %v4799, 0.0
        %vm4808 = vcmp.gt.f32.partialorder %v4800, 0.0
        %vm4809 = vcmp.gt.f32.partialorder %v4801, 0.0
        %vm4810 = vcmp.gt.f32.partialorder %v4802, 0.0
        %vm4811 = vcmp.gt.f32.partialorder %v4803, 0.0
        %vm4812 = vcmp.gt.f32.partialorder %v4804, 0.0
        %v4813 = vmul.f32 %v4797, 0.01
        %v4814 = vmul.f32 %v4798, 0.01
        %v4815 = vmul.f32 %v4799, 0.01
        %v4816 = vmul.f32 %v4800, 0.01
        %v4817 = vmul.f32 %v4801, 0.01
        %v4818 = vmul.f32 %v4802, 0.01
        %v4819 = vmul.f32 %v4803, 0.01
        %v4820 = vmul.f32 %v4804, 0.01
        %v4821 = vsel %vm4805, %v4797, %v4813
        %v4822 = vsel %vm4806, %v4798, %v4814
        %v4823 = vsel %vm4807, %v4799, %v4815
        %v4824 = vsel %vm4808, %v4800, %v4816
        %v4825 = vsel %vm4809, %v4801, %v4817
        %v4826 = vsel %vm4810, %v4802, %v4818
        %v4827 = vsel %vm4811, %v4803, %v4819
        %v4828 = vsel %vm4812, %v4804, %v4820
        %4830 = vset.pattern.permute.xlu0 0
        %4831 = vperm.xlu0 %4830, %v4821
        %v4832 = vpop.permute.xlu0 %4831
        %4835 = vset.pattern.permute.xlu0 0
        %4836 = vperm.xlu0 %4835, %v4822
        %v4837 = vpop.permute.xlu0 %4836
        %4840 = vset.pattern.permute.xlu0 0
        %4841 = vperm.xlu0 %4840, %v4823
        %v4842 = vpop.permute.xlu0 %4841
        %4845 = vset.pattern.permute.xlu0 0
        %4846 = vperm.xlu0 %4845, %v4824
        %v4847 = vpop.permute.xlu0 %4846
        %4850 = vset.pattern.permute.xlu0 0
        %4851 = vperm.xlu0 %4850, %v4825
        %v4852 = vpop.permute.xlu0 %4851
        %4855 = vset.pattern.permute.xlu0 0
        %4856 = vperm.xlu0 %4855, %v4826
        %v4857 = vpop.permute.xlu0 %4856
        %4860 = vset.pattern.permute.xlu0 0
        %4861 = vperm.xlu0 %4860, %v4827
        %v4862 = vpop.permute.xlu0 %4861
        %4865 = vset.pattern.permute.xlu0 0
        %4866 = vperm.xlu0 %4865, %v4828
        %v4867 = vpop.permute.xlu0 %4866
        %v4869 = vsel %vm4453, %v4832, 0.0
        %v4870 = vsel %vm4454, %v4837, 0.0
        %v4871 = vsel %vm4455, %v4842, 0.0
        %v4872 = vsel %vm4456, %v4847, 0.0
        %v4873 = vsel %vm4457, %v4852, 0.0
        %v4874 = vsel %vm4458, %v4857, 0.0
        %v4875 = vsel %vm4459, %v4862, 0.0
        %v4876 = vsel %vm4460, %v4867, 0.0
        %v4877 = vsel %vm2478, %v4869, 0.0
        %v4878 = vsel %vm2478, %v4870, 0.0
        %v4879 = vadd.f32 %v4877, %v4878
        %v4880 = vsel %vm2478, %v4871, 0.0
        %v4881 = vadd.f32 %v4879, %v4880
        %v4882 = vsel %vm2478, %v4872, 0.0
        %v4883 = vadd.f32 %v4881, %v4882
        %v4884 = vsel %vm2478, %v4873, 0.0
        %v4885 = vadd.f32 %v4883, %v4884
        %v4886 = vsel %vm2478, %v4874, 0.0
        %v4887 = vadd.f32 %v4885, %v4886
        %v4888 = vsel %vm2478, %v4875, 0.0
        %v4889 = vadd.f32 %v4887, %v4888
        %v4890 = vsel %vm2478, %v4876, 0.0
        %v4891 = vadd.f32 %v4889, %v4890
        %v4892 = vrot.slane %v4891, 4
        %v4893 = vadd.f32 %v4891, %v4892
        %v4894 = vrot.slane %v4893, 2
        %v4895 = vadd.f32 %v4893, %v4894
        %v4896 = vrot.slane %v4895, 1
        %v4897 = vadd.f32 %v4895, %v4896
        %v4898 = vld [vmem:[%s17] sm:$0xff]
        %v4899 = vld [vmem:[%s17 + $0x8] sm:$0xff]
        %v4900 = vld [vmem:[%s17 + $0x10] sm:$0xff]
        %v4901 = vld [vmem:[%s17 + $0x18] sm:$0xff]
        %v4902 = vld [vmem:[%s17 + $0x20] sm:$0xff]
        %v4903 = vld [vmem:[%s17 + $0x28] sm:$0xff]
        %v4904 = vld [vmem:[%s17 + $0x30] sm:$0xff]
        %v4905 = vld [vmem:[%s17 + $0x38] sm:$0xff]
        %v4906 = vld [vmem:[%s18] sm:$0x1]
        %v4908 = vsel %vm2478, %v4897, 0
        %4910 = vmatprep.subr.mxu0 0.0
        %4911 = vmatpush1.msra.mxu0 0.0
        %4912 = vmatprep.subr.mxu0 0.0
        %4913 = vmatpush1.msra.mxu0 0.0
        %4914 = vmatprep.subr.mxu0 0.0
        %4915 = vmatpush1.msra.mxu0 0.0
        %4916 = vmatprep.subr.mxu0 0.0
        %4917 = vmatpush1.msra.mxu0 0.0
        %4918 = vmatprep.subr.mxu0 0.0
        %4919 = vmatpush1.msra.mxu0 0.0
        %4920 = vmatprep.subr.mxu0 0.0
        %4921 = vmatpush1.msra.mxu0 0.0
        %4922 = vmatprep.subr.mxu0 0.0
        %4923 = vmatpush1.msra.mxu0 0.0
        %4924 = vmatprep.subr.mxu0 0.0
        %4925 = vmatpush1.msra.mxu0 0.0
        %4926 = vmatprep.subr.mxu0 0.0
        %4927 = vmatpush1.msra.mxu0 %v4905
        %4928 = vmatprep.subr.mxu0 0.0
        %4929 = vmatpush1.msra.mxu0 %v4904
        %4930 = vmatprep.subr.mxu0 0.0
        %4931 = vmatpush1.msra.mxu0 %v4903
        %4932 = vmatprep.subr.mxu0 0.0
        %4933 = vmatpush1.msra.mxu0 %v4902
        %4934 = vmatprep.subr.mxu0 0.0
        %4935 = vmatpush1.msra.mxu0 %v4901
        %4936 = vmatprep.subr.mxu0 0.0
        %4937 = vmatpush1.msra.mxu0 %v4900
        %4938 = vmatprep.subr.mxu0 0.0
        %4939 = vmatpush1.msra.mxu0 %v4899
        %4940 = vmatprep.subr.mxu0 0.0
        %4941 = vmatpush1.msra.mxu0 %v4898
        %4942 = vmatprep.subr.mxu0 0.0
        %4943 = vmatpush2.msra.mxu0 0.0
        %4944 = vmatprep.subr.mxu0 0.0
        %4945 = vmatpush2.msra.mxu0 0.0
        %4946 = vmatprep.subr.mxu0 0.0
        %4947 = vmatpush2.msra.mxu0 0.0
        %4948 = vmatprep.subr.mxu0 0.0
        %4949 = vmatpush2.msra.mxu0 0.0
        %4950 = vmatprep.subr.mxu0 0.0
        %4951 = vmatpush2.msra.mxu0 0.0
        %4952 = vmatprep.subr.mxu0 0.0
        %4953 = vmatpush2.msra.mxu0 0.0
        %4954 = vmatprep.subr.mxu0 0.0
        %4955 = vmatpush2.msra.mxu0 0.0
        %4956 = vmatprep.subr.mxu0 0.0
        %4957 = vmatpush2.msra.mxu0 0.0
        %4958 = vmatprep.subr.mxu0 0.0
        %4959 = vmatpush2.msra.mxu0 0.0
        %4960 = vmatprep.subr.mxu0 0.0
        %4961 = vmatpush2.msra.mxu0 0.0
        %4962 = vmatprep.subr.mxu0 0.0
        %4963 = vmatpush2.msra.mxu0 0.0
        %4964 = vmatprep.subr.mxu0 0.0
        %4965 = vmatpush2.msra.mxu0 0.0
        %4966 = vmatprep.subr.mxu0 0.0
        %4967 = vmatpush2.msra.mxu0 0.0
        %4968 = vmatprep.subr.mxu0 0.0
        %4969 = vmatpush2.msra.mxu0 0.0
        %4970 = vmatprep.subr.mxu0 0.0
        %4971 = vmatpush2.msra.mxu0 0.0
        %4972 = vmatprep.subr.mxu0 0.0
        %4973 = vmatpush2.msra.mxu0 0.0
        %4974 = vmatprep.mubr.f32.mxu0 0.0
        %4975 = vmatmul.mubr.f32.gmra.mxu0 %v4908
        %v4976 = vpop.f32.mrf.mxu0
        %v4977 = vadd.f32 %v4906, %v4976
        %v4978 = vpop.f32.mrf.mxu0
        %4979 = vdwg.mxu0
        %v4980 = vld [vmem:[%s766] sm:$0x1]
        %v4981 = vld [vmem:[%s11] sm:$0xff]
        %v4982 = vld [vmem:[%s11 + $0x8] sm:$0xff]
        %v4983 = vld [vmem:[%s11 + $0x10] sm:$0xff]
        %v4984 = vld [vmem:[%s11 + $0x18] sm:$0xff]
        %v4985 = vld [vmem:[%s11 + $0x20] sm:$0xff]
        %v4986 = vld [vmem:[%s11 + $0x28] sm:$0xff]
        %v4987 = vld [vmem:[%s11 + $0x30] sm:$0xff]
        %v4988 = vld [vmem:[%s11 + $0x38] sm:$0xff]
        %v4989 = vld [vmem:[%s12] sm:$0x1]
        %v4991 = vsel %vm2478, %v4980, 0
        %4993 = vmatprep.subr.mxu0 0.0
        %4994 = vmatpush1.msra.mxu0 0.0
        %4995 = vmatprep.subr.mxu0 0.0
        %4996 = vmatpush1.msra.mxu0 0.0
        %4997 = vmatprep.subr.mxu0 0.0
        %4998 = vmatpush1.msra.mxu0 0.0
        %4999 = vmatprep.subr.mxu0 0.0
        %5000 = vmatpush1.msra.mxu0 0.0
        %5001 = vmatprep.subr.mxu0 0.0
        %5002 = vmatpush1.msra.mxu0 0.0
        %5003 = vmatprep.subr.mxu0 0.0
        %5004 = vmatpush1.msra.mxu0 0.0
        %5005 = vmatprep.subr.mxu0 0.0
        %5006 = vmatpush1.msra.mxu0 0.0
        %5007 = vmatprep.subr.mxu0 0.0
        %5008 = vmatpush1.msra.mxu0 0.0
        %5009 = vmatprep.subr.mxu0 0.0
        %5010 = vmatpush1.msra.mxu0 %v4988
        %5011 = vmatprep.subr.mxu0 0.0
        %5012 = vmatpush1.msra.mxu0 %v4987
        %5013 = vmatprep.subr.mxu0 0.0
        %5014 = vmatpush1.msra.mxu0 %v4986
        %5015 = vmatprep.subr.mxu0 0.0
        %5016 = vmatpush1.msra.mxu0 %v4985
        %5017 = vmatprep.subr.mxu0 0.0
        %5018 = vmatpush1.msra.mxu0 %v4984
        %5019 = vmatprep.subr.mxu0 0.0
        %5020 = vmatpush1.msra.mxu0 %v4983
        %5021 = vmatprep.subr.mxu0 0.0
        %5022 = vmatpush1.msra.mxu0 %v4982
        %5023 = vmatprep.subr.mxu0 0.0
        %5024 = vmatpush1.msra.mxu0 %v4981
        %5025 = vmatprep.subr.mxu0 0.0
        %5026 = vmatpush2.msra.mxu0 0.0
        %5027 = vmatprep.subr.mxu0 0.0
        %5028 = vmatpush2.msra.mxu0 0.0
        %5029 = vmatprep.subr.mxu0 0.0
        %5030 = vmatpush2.msra.mxu0 0.0
        %5031 = vmatprep.subr.mxu0 0.0
        %5032 = vmatpush2.msra.mxu0 0.0
        %5033 = vmatprep.subr.mxu0 0.0
        %5034 = vmatpush2.msra.mxu0 0.0
        %5035 = vmatprep.subr.mxu0 0.0
        %5036 = vmatpush2.msra.mxu0 0.0
        %5037 = vmatprep.subr.mxu0 0.0
        %5038 = vmatpush2.msra.mxu0 0.0
        %5039 = vmatprep.subr.mxu0 0.0
        %5040 = vmatpush2.msra.mxu0 0.0
        %5041 = vmatprep.subr.mxu0 0.0
        %5042 = vmatpush2.msra.mxu0 0.0
        %5043 = vmatprep.subr.mxu0 0.0
        %5044 = vmatpush2.msra.mxu0 0.0
        %5045 = vmatprep.subr.mxu0 0.0
        %5046 = vmatpush2.msra.mxu0 0.0
        %5047 = vmatprep.subr.mxu0 0.0
        %5048 = vmatpush2.msra.mxu0 0.0
        %5049 = vmatprep.subr.mxu0 0.0
        %5050 = vmatpush2.msra.mxu0 0.0
        %5051 = vmatprep.subr.mxu0 0.0
        %5052 = vmatpush2.msra.mxu0 0.0
        %5053 = vmatprep.subr.mxu0 0.0
        %5054 = vmatpush2.msra.mxu0 0.0
        %5055 = vmatprep.subr.mxu0 0.0
        %5056 = vmatpush2.msra.mxu0 0.0
        %5057 = vmatprep.mubr.f32.mxu0 0.0
        %5058 = vmatmul.mubr.f32.gmra.mxu0 %v4991
        %v5059 = vpop.f32.mrf.mxu0
        %v5060 = vadd.f32 %v4989, %v5059
        %v5061 = vpop.f32.mrf.mxu0
        %5062 = vdwg.mxu0
        %vm5063 = vcmp.gt.f32.partialorder %v5060, 0.0
        %v5064 = vmul.f32 %v5060, 0.01
        %v5065 = vsel %vm5063, %v5060, %v5064
        %v5066 = vld [vmem:[%s13] sm:$0xff]
        %v5067 = vld [vmem:[%s13 + $0x8] sm:$0xff]
        %v5068 = vld [vmem:[%s13 + $0x10] sm:$0xff]
        %v5069 = vld [vmem:[%s13 + $0x18] sm:$0xff]
        %v5070 = vld [vmem:[%s13 + $0x20] sm:$0xff]
        %v5071 = vld [vmem:[%s13 + $0x28] sm:$0xff]
        %v5072 = vld [vmem:[%s13 + $0x30] sm:$0xff]
        %v5073 = vld [vmem:[%s13 + $0x38] sm:$0xff]
        %v5074 = vld [vmem:[%s14] sm:$0x1]
        %v5076 = vsel %vm2478, %v5065, 0
        %5078 = vmatprep.subr.mxu0 0.0
        %5079 = vmatpush1.msra.mxu0 0.0
        %5080 = vmatprep.subr.mxu0 0.0
        %5081 = vmatpush1.msra.mxu0 0.0
        %5082 = vmatprep.subr.mxu0 0.0
        %5083 = vmatpush1.msra.mxu0 0.0
        %5084 = vmatprep.subr.mxu0 0.0
        %5085 = vmatpush1.msra.mxu0 0.0
        %5086 = vmatprep.subr.mxu0 0.0
        %5087 = vmatpush1.msra.mxu0 0.0
        %5088 = vmatprep.subr.mxu0 0.0
        %5089 = vmatpush1.msra.mxu0 0.0
        %5090 = vmatprep.subr.mxu0 0.0
        %5091 = vmatpush1.msra.mxu0 0.0
        %5092 = vmatprep.subr.mxu0 0.0
        %5093 = vmatpush1.msra.mxu0 0.0
        %5094 = vmatprep.subr.mxu0 0.0
        %5095 = vmatpush1.msra.mxu0 %v5073
        %5096 = vmatprep.subr.mxu0 0.0
        %5097 = vmatpush1.msra.mxu0 %v5072
        %5098 = vmatprep.subr.mxu0 0.0
        %5099 = vmatpush1.msra.mxu0 %v5071
        %5100 = vmatprep.subr.mxu0 0.0
        %5101 = vmatpush1.msra.mxu0 %v5070
        %5102 = vmatprep.subr.mxu0 0.0
        %5103 = vmatpush1.msra.mxu0 %v5069
        %5104 = vmatprep.subr.mxu0 0.0
        %5105 = vmatpush1.msra.mxu0 %v5068
        %5106 = vmatprep.subr.mxu0 0.0
        %5107 = vmatpush1.msra.mxu0 %v5067
        %5108 = vmatprep.subr.mxu0 0.0
        %5109 = vmatpush1.msra.mxu0 %v5066
        %5110 = vmatprep.subr.mxu0 0.0
        %5111 = vmatpush2.msra.mxu0 0.0
        %5112 = vmatprep.subr.mxu0 0.0
        %5113 = vmatpush2.msra.mxu0 0.0
        %5114 = vmatprep.subr.mxu0 0.0
        %5115 = vmatpush2.msra.mxu0 0.0
        %5116 = vmatprep.subr.mxu0 0.0
        %5117 = vmatpush2.msra.mxu0 0.0
        %5118 = vmatprep.subr.mxu0 0.0
        %5119 = vmatpush2.msra.mxu0 0.0
        %5120 = vmatprep.subr.mxu0 0.0
        %5121 = vmatpush2.msra.mxu0 0.0
        %5122 = vmatprep.subr.mxu0 0.0
        %5123 = vmatpush2.msra.mxu0 0.0
        %5124 = vmatprep.subr.mxu0 0.0
        %5125 = vmatpush2.msra.mxu0 0.0
        %5126 = vmatprep.subr.mxu0 0.0
        %5127 = vmatpush2.msra.mxu0 0.0
        %5128 = vmatprep.subr.mxu0 0.0
        %5129 = vmatpush2.msra.mxu0 0.0
        %5130 = vmatprep.subr.mxu0 0.0
        %5131 = vmatpush2.msra.mxu0 0.0
        %5132 = vmatprep.subr.mxu0 0.0
        %5133 = vmatpush2.msra.mxu0 0.0
        %5134 = vmatprep.subr.mxu0 0.0
        %5135 = vmatpush2.msra.mxu0 0.0
        %5136 = vmatprep.subr.mxu0 0.0
        %5137 = vmatpush2.msra.mxu0 0.0
        %5138 = vmatprep.subr.mxu0 0.0
        %5139 = vmatpush2.msra.mxu0 0.0
        %5140 = vmatprep.subr.mxu0 0.0
        %5141 = vmatpush2.msra.mxu0 0.0
        %5142 = vmatprep.mubr.f32.mxu0 0.0
        %5143 = vmatmul.mubr.f32.gmra.mxu0 %v5076
        %v5144 = vpop.f32.mrf.mxu0
        %v5145 = vadd.f32 %v5074, %v5144
        %v5146 = vpop.f32.mrf.mxu0
        %5147 = vdwg.mxu0
        %5149 = vrot.lane.b32.xlu0 %v5145, 64
        %v5150 = vpop.permute.xlu0 %5149
        %v5152 = vsel %vm2478, %v4609, %v5150
        %v5153 = vld [vmem:[%s19] sm:$0xff]
        %v5154 = vld [vmem:[%s19 + $0x8] sm:$0xff]
        %v5155 = vld [vmem:[%s19 + $0x10] sm:$0xff]
        %v5156 = vld [vmem:[%s19 + $0x18] sm:$0xff]
        %v5157 = vld [vmem:[%s19 + $0x20] sm:$0xff]
        %v5158 = vld [vmem:[%s19 + $0x28] sm:$0xff]
        %v5159 = vld [vmem:[%s19 + $0x30] sm:$0xff]
        %v5160 = vld [vmem:[%s19 + $0x38] sm:$0xff]
        %v5161 = vld [vmem:[%s19 + $0x40] sm:$0xff]
        %v5162 = vld [vmem:[%s19 + $0x48] sm:$0xff]
        %v5163 = vld [vmem:[%s19 + $0x50] sm:$0xff]
        %v5164 = vld [vmem:[%s19 + $0x58] sm:$0xff]
        %v5165 = vld [vmem:[%s19 + $0x60] sm:$0xff]
        %v5166 = vld [vmem:[%s19 + $0x68] sm:$0xff]
        %v5167 = vld [vmem:[%s19 + $0x70] sm:$0xff]
        %v5168 = vld [vmem:[%s19 + $0x78] sm:$0xff]
        %v5169 = vld [vmem:[%s19 + $0x80] sm:$0xff]
        %v5170 = vld [vmem:[%s19 + $0x88] sm:$0xff]
        %v5171 = vld [vmem:[%s19 + $0x90] sm:$0xff]
        %v5172 = vld [vmem:[%s19 + $0x98] sm:$0xff]
        %v5173 = vld [vmem:[%s19 + $0xa0] sm:$0xff]
        %v5174 = vld [vmem:[%s19 + $0xa8] sm:$0xff]
        %v5175 = vld [vmem:[%s19 + $0xb0] sm:$0xff]
        %v5176 = vld [vmem:[%s19 + $0xb8] sm:$0xff]
        %v5177 = vld [vmem:[%s19 + $0xc0] sm:$0xff]
        %v5178 = vld [vmem:[%s19 + $0xc8] sm:$0xff]
        %v5179 = vld [vmem:[%s19 + $0xd0] sm:$0xff]
        %v5180 = vld [vmem:[%s19 + $0xd8] sm:$0xff]
        %v5181 = vld [vmem:[%s19 + $0xe0] sm:$0xff]
        %v5182 = vld [vmem:[%s19 + $0xe8] sm:$0xff]
        %v5183 = vld [vmem:[%s19 + $0xf0] sm:$0xff]
        %v5184 = vld [vmem:[%s19 + $0xf8] sm:$0xff]
        %v5185 = vld [vmem:[%s19 + $0x100] sm:$0xff]
        %v5186 = vld [vmem:[%s19 + $0x108] sm:$0xff]
        %v5187 = vld [vmem:[%s19 + $0x110] sm:$0xff]
        %v5188 = vld [vmem:[%s19 + $0x118] sm:$0xff]
        %v5189 = vld [vmem:[%s19 + $0x120] sm:$0xff]
        %v5190 = vld [vmem:[%s19 + $0x128] sm:$0xff]
        %v5191 = vld [vmem:[%s19 + $0x130] sm:$0xff]
        %v5192 = vld [vmem:[%s19 + $0x138] sm:$0xff]
        %v5193 = vld [vmem:[%s19 + $0x140] sm:$0xff]
        %v5194 = vld [vmem:[%s19 + $0x148] sm:$0xff]
        %v5195 = vld [vmem:[%s19 + $0x150] sm:$0xff]
        %v5196 = vld [vmem:[%s19 + $0x158] sm:$0xff]
        %v5197 = vld [vmem:[%s19 + $0x160] sm:$0xff]
        %v5198 = vld [vmem:[%s19 + $0x168] sm:$0xff]
        %v5199 = vld [vmem:[%s19 + $0x170] sm:$0xff]
        %v5200 = vld [vmem:[%s19 + $0x178] sm:$0xff]
        %v5201 = vld [vmem:[%s20] sm:$0x3]
        %v5203 = vlaneseq
        %v5204 = vshrl.u32 %v5203, 7
        %v5205 = vsub.s32 0, %v5204
        %v5206 = vrot.slane %v5201, %v5205
        %v5207 = vlaneseq
        %v5208 = vshrl.u32 %v5207, 7
        %v5209 = vsub.s32 1, %v5208
        %v5210 = vrot.slane %v5201, %v5209
        %v5214 = vsel %vm2478, %v4977, 0
        %5216 = vmatprep.subr.mxu0 %v5184
        %5217 = vmatpush1.msra.mxu0 %v5183
        %5218 = vmatprep.subr.mxu0 %v5182
        %5219 = vmatpush1.msra.mxu0 %v5181
        %5220 = vmatprep.subr.mxu0 %v5180
        %5221 = vmatpush1.msra.mxu0 %v5179
        %5222 = vmatprep.subr.mxu0 %v5178
        %5223 = vmatpush1.msra.mxu0 %v5177
        %5224 = vmatprep.subr.mxu0 %v5176
        %5225 = vmatpush1.msra.mxu0 %v5175
        %5226 = vmatprep.subr.mxu0 %v5174
        %5227 = vmatpush1.msra.mxu0 %v5173
        %5228 = vmatprep.subr.mxu0 %v5172
        %5229 = vmatpush1.msra.mxu0 %v5171
        %5230 = vmatprep.subr.mxu0 %v5170
        %5231 = vmatpush1.msra.mxu0 %v5169
        %5232 = vmatprep.subr.mxu0 %v5168
        %5233 = vmatpush1.msra.mxu0 %v5167
        %5234 = vmatprep.subr.mxu0 %v5166
        %5235 = vmatpush1.msra.mxu0 %v5165
        %5236 = vmatprep.subr.mxu0 %v5164
        %5237 = vmatpush1.msra.mxu0 %v5163
        %5238 = vmatprep.subr.mxu0 %v5162
        %5239 = vmatpush1.msra.mxu0 %v5161
        %5240 = vmatprep.subr.mxu0 %v5160
        %5241 = vmatpush1.msra.mxu0 %v5159
        %5242 = vmatprep.subr.mxu0 %v5158
        %5243 = vmatpush1.msra.mxu0 %v5157
        %5244 = vmatprep.subr.mxu0 %v5156
        %5245 = vmatpush1.msra.mxu0 %v5155
        %5246 = vmatprep.subr.mxu0 %v5154
        %5247 = vmatpush1.msra.mxu0 %v5153
        %5248 = vmatprep.subr.mxu0 0.0
        %5249 = vmatpush2.msra.mxu0 0.0
        %5250 = vmatprep.subr.mxu0 0.0
        %5251 = vmatpush2.msra.mxu0 0.0
        %5252 = vmatprep.subr.mxu0 0.0
        %5253 = vmatpush2.msra.mxu0 0.0
        %5254 = vmatprep.subr.mxu0 0.0
        %5255 = vmatpush2.msra.mxu0 0.0
        %5256 = vmatprep.subr.mxu0 0.0
        %5257 = vmatpush2.msra.mxu0 0.0
        %5258 = vmatprep.subr.mxu0 0.0
        %5259 = vmatpush2.msra.mxu0 0.0
        %5260 = vmatprep.subr.mxu0 0.0
        %5261 = vmatpush2.msra.mxu0 0.0
        %5262 = vmatprep.subr.mxu0 0.0
        %5263 = vmatpush2.msra.mxu0 0.0
        %5264 = vmatprep.subr.mxu0 %v5200
        %5265 = vmatpush2.msra.mxu0 %v5199
        %5266 = vmatprep.subr.mxu0 %v5198
        %5267 = vmatpush2.msra.mxu0 %v5197
        %5268 = vmatprep.subr.mxu0 %v5196
        %5269 = vmatpush2.msra.mxu0 %v5195
        %5270 = vmatprep.subr.mxu0 %v5194
        %5271 = vmatpush2.msra.mxu0 %v5193
        %5272 = vmatprep.subr.mxu0 %v5192
        %5273 = vmatpush2.msra.mxu0 %v5191
        %5274 = vmatprep.subr.mxu0 %v5190
        %5275 = vmatpush2.msra.mxu0 %v5189
        %5276 = vmatprep.subr.mxu0 %v5188
        %5277 = vmatpush2.msra.mxu0 %v5187
        %5278 = vmatprep.subr.mxu0 %v5186
        %5279 = vmatpush2.msra.mxu0 %v5185
        %5280 = vmatprep.mubr.f32.mxu0 %v5214
        %5281 = vmatmul.mubr.f32.gmra.mxu0 %v5152
        %v5282 = vpop.f32.mrf.mxu0
        %v5283 = vadd.f32 %v5206, %v5282
        %v5284 = vpop.f32.mrf.mxu0
        %v5285 = vadd.f32 %v5210, %v5284
        %5286 = vdwg.mxu0
        %vm5287 = vcmp.gt.f32.partialorder %v5283, 0.0
        %vm5288 = vcmp.gt.f32.partialorder %v5285, 0.0
        %v5289 = vmul.f32 %v5283, 0.01
        %v5290 = vmul.f32 %v5285, 0.01
        %v5291 = vsel %vm5287, %v5283, %v5289
        %v5292 = vsel %vm5288, %v5285, %v5290
        %v5293 = vld [vmem:[%s21] sm:$0xff]
        %v5294 = vld [vmem:[%s21 + $0x8] sm:$0xff]
        %v5295 = vld [vmem:[%s21 + $0x10] sm:$0xff]
        %v5296 = vld [vmem:[%s21 + $0x18] sm:$0xff]
        %v5297 = vld [vmem:[%s21 + $0x20] sm:$0xff]
        %v5298 = vld [vmem:[%s21 + $0x28] sm:$0xff]
        %v5299 = vld [vmem:[%s21 + $0x30] sm:$0xff]
        %v5300 = vld [vmem:[%s21 + $0x38] sm:$0xff]
        %v5301 = vld [vmem:[%s21 + $0x40] sm:$0xff]
        %v5302 = vld [vmem:[%s21 + $0x48] sm:$0xff]
        %v5303 = vld [vmem:[%s21 + $0x50] sm:$0xff]
        %v5304 = vld [vmem:[%s21 + $0x58] sm:$0xff]
        %v5305 = vld [vmem:[%s21 + $0x60] sm:$0xff]
        %v5306 = vld [vmem:[%s21 + $0x68] sm:$0xff]
        %v5307 = vld [vmem:[%s21 + $0x70] sm:$0xff]
        %v5308 = vld [vmem:[%s21 + $0x78] sm:$0xff]
        %v5309 = vld [vmem:[%s21 + $0x80] sm:$0xff]
        %v5310 = vld [vmem:[%s21 + $0x88] sm:$0xff]
        %v5311 = vld [vmem:[%s21 + $0x90] sm:$0xff]
        %v5312 = vld [vmem:[%s21 + $0x98] sm:$0xff]
        %v5313 = vld [vmem:[%s21 + $0xa0] sm:$0xff]
        %v5314 = vld [vmem:[%s21 + $0xa8] sm:$0xff]
        %v5315 = vld [vmem:[%s21 + $0xb0] sm:$0xff]
        %v5316 = vld [vmem:[%s21 + $0xb8] sm:$0xff]
        %v5317 = vld [vmem:[%s21 + $0xc0] sm:$0xff]
        %v5318 = vld [vmem:[%s21 + $0xc8] sm:$0xff]
        %v5319 = vld [vmem:[%s21 + $0xd0] sm:$0xff]
        %v5320 = vld [vmem:[%s21 + $0xd8] sm:$0xff]
        %v5321 = vld [vmem:[%s21 + $0xe0] sm:$0xff]
        %v5322 = vld [vmem:[%s21 + $0xe8] sm:$0xff]
        %v5323 = vld [vmem:[%s21 + $0xf0] sm:$0xff]
        %v5324 = vld [vmem:[%s21 + $0xf8] sm:$0xff]
        %v5325 = vld [vmem:[%s21 + $0x100] sm:$0xff]
        %v5326 = vld [vmem:[%s21 + $0x108] sm:$0xff]
        %v5327 = vld [vmem:[%s21 + $0x110] sm:$0xff]
        %v5328 = vld [vmem:[%s21 + $0x118] sm:$0xff]
        %v5329 = vld [vmem:[%s21 + $0x120] sm:$0xff]
        %v5330 = vld [vmem:[%s21 + $0x128] sm:$0xff]
        %v5331 = vld [vmem:[%s21 + $0x130] sm:$0xff]
        %v5332 = vld [vmem:[%s21 + $0x138] sm:$0xff]
        %v5333 = vld [vmem:[%s21 + $0x140] sm:$0xff]
        %v5334 = vld [vmem:[%s21 + $0x148] sm:$0xff]
        %v5335 = vld [vmem:[%s21 + $0x150] sm:$0xff]
        %v5336 = vld [vmem:[%s21 + $0x158] sm:$0xff]
        %v5337 = vld [vmem:[%s21 + $0x160] sm:$0xff]
        %v5338 = vld [vmem:[%s21 + $0x168] sm:$0xff]
        %v5339 = vld [vmem:[%s21 + $0x170] sm:$0xff]
        %v5340 = vld [vmem:[%s21 + $0x178] sm:$0xff]
        %v5341 = vld [vmem:[%s21 + $0x180] sm:$0xff]
        %v5342 = vld [vmem:[%s21 + $0x188] sm:$0xff]
        %v5343 = vld [vmem:[%s21 + $0x190] sm:$0xff]
        %v5344 = vld [vmem:[%s21 + $0x198] sm:$0xff]
        %v5345 = vld [vmem:[%s21 + $0x1a0] sm:$0xff]
        %v5346 = vld [vmem:[%s21 + $0x1a8] sm:$0xff]
        %v5347 = vld [vmem:[%s21 + $0x1b0] sm:$0xff]
        %v5348 = vld [vmem:[%s21 + $0x1b8] sm:$0xff]
        %v5349 = vld [vmem:[%s21 + $0x1c0] sm:$0xff]
        %v5350 = vld [vmem:[%s21 + $0x1c8] sm:$0xff]
        %v5351 = vld [vmem:[%s21 + $0x1d0] sm:$0xff]
        %v5352 = vld [vmem:[%s21 + $0x1d8] sm:$0xff]
        %v5353 = vld [vmem:[%s21 + $0x1e0] sm:$0xff]
        %v5354 = vld [vmem:[%s21 + $0x1e8] sm:$0xff]
        %v5355 = vld [vmem:[%s21 + $0x1f0] sm:$0xff]
        %v5356 = vld [vmem:[%s21 + $0x1f8] sm:$0xff]
        %v5357 = vld [vmem:[%s22] sm:$0x3]
        %v5359 = vlaneseq
        %v5360 = vshrl.u32 %v5359, 7
        %v5361 = vsub.s32 0, %v5360
        %v5362 = vrot.slane %v5357, %v5361
        %v5363 = vlaneseq
        %v5364 = vshrl.u32 %v5363, 7
        %v5365 = vsub.s32 1, %v5364
        %v5366 = vrot.slane %v5357, %v5365
        %5369 = vmatprep.subr.mxu0 %v5324
        %5370 = vmatpush1.msra.mxu0 %v5323
        %5371 = vmatprep.subr.mxu0 %v5322
        %5372 = vmatpush1.msra.mxu0 %v5321
        %5373 = vmatprep.subr.mxu0 %v5320
        %5374 = vmatpush1.msra.mxu0 %v5319
        %5375 = vmatprep.subr.mxu0 %v5318
        %5376 = vmatpush1.msra.mxu0 %v5317
        %5377 = vmatprep.subr.mxu0 %v5316
        %5378 = vmatpush1.msra.mxu0 %v5315
        %5379 = vmatprep.subr.mxu0 %v5314
        %5380 = vmatpush1.msra.mxu0 %v5313
        %5381 = vmatprep.subr.mxu0 %v5312
        %5382 = vmatpush1.msra.mxu0 %v5311
        %5383 = vmatprep.subr.mxu0 %v5310
        %5384 = vmatpush1.msra.mxu0 %v5309
        %5385 = vmatprep.subr.mxu0 %v5308
        %5386 = vmatpush1.msra.mxu0 %v5307
        %5387 = vmatprep.subr.mxu0 %v5306
        %5388 = vmatpush1.msra.mxu0 %v5305
        %5389 = vmatprep.subr.mxu0 %v5304
        %5390 = vmatpush1.msra.mxu0 %v5303
        %5391 = vmatprep.subr.mxu0 %v5302
        %5392 = vmatpush1.msra.mxu0 %v5301
        %5393 = vmatprep.subr.mxu0 %v5300
        %5394 = vmatpush1.msra.mxu0 %v5299
        %5395 = vmatprep.subr.mxu0 %v5298
        %5396 = vmatpush1.msra.mxu0 %v5297
        %5397 = vmatprep.subr.mxu0 %v5296
        %5398 = vmatpush1.msra.mxu0 %v5295
        %5399 = vmatprep.subr.mxu0 %v5294
        %5400 = vmatpush1.msra.mxu0 %v5293
        %5401 = vmatprep.subr.mxu0 %v5356
        %5402 = vmatpush2.msra.mxu0 %v5355
        %5403 = vmatprep.subr.mxu0 %v5354
        %5404 = vmatpush2.msra.mxu0 %v5353
        %5405 = vmatprep.subr.mxu0 %v5352
        %5406 = vmatpush2.msra.mxu0 %v5351
        %5407 = vmatprep.subr.mxu0 %v5350
        %5408 = vmatpush2.msra.mxu0 %v5349
        %5409 = vmatprep.subr.mxu0 %v5348
        %5410 = vmatpush2.msra.mxu0 %v5347
        %5411 = vmatprep.subr.mxu0 %v5346
        %5412 = vmatpush2.msra.mxu0 %v5345
        %5413 = vmatprep.subr.mxu0 %v5344
        %5414 = vmatpush2.msra.mxu0 %v5343
        %5415 = vmatprep.subr.mxu0 %v5342
        %5416 = vmatpush2.msra.mxu0 %v5341
        %5417 = vmatprep.subr.mxu0 %v5340
        %5418 = vmatpush2.msra.mxu0 %v5339
        %5419 = vmatprep.subr.mxu0 %v5338
        %5420 = vmatpush2.msra.mxu0 %v5337
        %5421 = vmatprep.subr.mxu0 %v5336
        %5422 = vmatpush2.msra.mxu0 %v5335
        %5423 = vmatprep.subr.mxu0 %v5334
        %5424 = vmatpush2.msra.mxu0 %v5333
        %5425 = vmatprep.subr.mxu0 %v5332
        %5426 = vmatpush2.msra.mxu0 %v5331
        %5427 = vmatprep.subr.mxu0 %v5330
        %5428 = vmatpush2.msra.mxu0 %v5329
        %5429 = vmatprep.subr.mxu0 %v5328
        %5430 = vmatpush2.msra.mxu0 %v5327
        %5431 = vmatprep.subr.mxu0 %v5326
        %5432 = vmatpush2.msra.mxu0 %v5325
        %5433 = vmatprep.mubr.f32.mxu0 %v5292
        %5434 = vmatmul.mubr.f32.gmra.mxu0 %v5291
        %v5435 = vpop.f32.mrf.mxu0
        %v5436 = vadd.f32 %v5362, %v5435
        %v5437 = vpop.f32.mrf.mxu0
        %v5438 = vadd.f32 %v5366, %v5437
        %5439 = vdwg.mxu0
        %5441 = vrot.lane.b32.xlu0 %v5152, 64
        %v5442 = vpop.permute.xlu0 %5441
        %5443 = vrot.lane.b32.xlu0 %v4977, 64
        %v5444 = vpop.permute.xlu0 %5443
        %v5445 = vsel %vm2478, %v5442, %v5444
        %v5447 = vsel %vm2478, %v5438, %v5442
        %v5450 = vcombine.low %v5436, %v5447
        %v5452 = vunpack.c.l.s4 1966171168
        %v5453 = vunpack.c.0.s8 %v5452
        %v5454 = vlaneseq
        %v5455 = vshrl.u32 %v5454, 7
        %v5456 = vsub.s32 %v5453, %v5455
        %v5457 = vrot.slane %v5450, %v5456
        %v5459 = vunpack.c.l.s4 1966171168
        %v5460 = vunpack.c.0.s8 %v5459
        %v5461 = vlaneseq
        %v5462 = vshrl.u32 %v5461, 7
        %v5463 = vsub.s32 %v5460, %v5462
        %v5464 = vrot.slane %v5445, %v5463
        %v5465 = vcombine.low %v5457, %v5464
        %v5467 = vunpack.c.l.s4 1966171168
        %v5468 = vunpack.c.0.s8 %v5467
        %v5469 = vlaneseq
        %v5470 = vshrl.u32 %v5469, 7
        %v5471 = vsub.s32 %v5468, %v5470
        %v5472 = vrot.slane %v5465, %v5471
        %v5474 = vlaneseq
        %vm5475 = vcmp.ge.s32.totalorder %v5474, 0
        %vm5476 = vcmp.lt.s32.totalorder %v5474, 384
        %vm5477 = vmand %vm5475, %vm5476
        %5478 = vst.msk [vmem:[%s770] sm:$0x7] %vm5477, %v5472
      $region120: #{posenet_forward.1} parent=111 // pred_fallthru
        _
      %p5479 = scmp.lt.s32.totalorder %s38, 1
      %s5480 = scalar_select %p5479, %s38, 1
      %s5481 = smul.addr %s5480, 3
      %s5482 = scalar_lea.vmem %s23, %s5481
      // Predicated region
      $region121: #{posenet_forward.1} parent=111 // pred_check
        %p5483 = pneg %p566
      $region122: #{posenet_forward.1} parent=111 // pred_check_branch
        %5485 = sbr.rel (%p5483) target = $region124
      $region123: #{posenet_forward.1} parent=111 // pred_region
        _
      $region124: #{posenet_forward.1} parent=111 // pred_fallthru
        _
    $region112: #{posenet_forward.1} parent=5 // pred_fallthru
      _
    %p5486 = scmp.le.s32.totalorder 2, %s29
    // Predicated region
    $region125: #{posenet_forward.1} parent=5 // pred_check
      %p5487 = pneg %p5486
    $region126: #{posenet_forward.1} parent=5 // pred_check_branch
      %5489 = sbr.rel (%p5487) target = $region128
    $region127: #{posenet_forward.1} parent=5 // pred_region
      %s5490 = ssub.s32 %s29, 2
      // Predicated region
      $region129: #{posenet_forward.1} parent=127 // pred_check
        %p5491 = pneg %p572
      $region130: #{posenet_forward.1} parent=127 // pred_check_branch
        %5493 = sbr.rel (%p5491) target = $region132
      $region131: #{posenet_forward.1} parent=127 // pred_region
        %p5494 = scmp.lt.s32.totalorder %s40, 1
        %s5495 = scalar_select %p5494, %s40, 1
        %s5496 = smul.addr %s5495, 3
        %s5497 = scalar_lea.vmem %s23, %s5496
      $region132: #{posenet_forward.1} parent=127 // pred_fallthru
        _
    $region128: #{posenet_forward.1} parent=5 // pred_fallthru
      _
  $region6: #{posenet_forward.1} parent=0 // loop_footer
    %s33 = sadd.s32 1, %s29
  $region7: #{posenet_forward.1} parent=0 // loop_footer_branch
    %28 = sbr.rel target = $region3
  $region8: #{posenet_forward.1} parent=0 // loop_exit
    _

</llo_original>
